<compile_context>
chip_gen: v7x
topology: tpu7x:2x2x1
jax: 0.10.0
libtpu: 0.0.40
codegen_flags: <defaults>
</compile_context>

<pallas_src>
import jax
import jax.numpy as jnp
from jax.experimental import pallas as pl
from jax.experimental.pallas import tpu as pltpu

IN_FEATURES = 8 * 8 * 6 * 2          # 768
H1, H2, H3, OUT = 700, 600, 500, 1   # logical (PyTorch) widths
H1P, H2P, H3P, OUTP = 768, 640, 512, 128  # lane/MXU-aligned padded widths


def _round_up(x, m):
    return ((x + m - 1) // m) * m


def _mlp_kernel(x_ref,
                w1_ref, b1_ref,
                w2_ref, b2_ref,
                w3_ref, b3_ref,
                w4_ref, b4_ref,
                o_ref):
    # Layer 1: Linear(768 -> 768pad) + ReLU   (bf16 matmul, f32 accumulate)
    h = jnp.dot(x_ref[...], w1_ref[...], preferred_element_type=jnp.float32)
    h = jnp.maximum(h + b1_ref[...], 0.0).astype(jnp.bfloat16)
    # Layer 2: Linear(768pad -> 640pad) + ReLU
    h = jnp.dot(h, w2_ref[...], preferred_element_type=jnp.float32)
    h = jnp.maximum(h + b2_ref[...], 0.0).astype(jnp.bfloat16)
    # Layer 3: Linear(640pad -> 512pad) + ReLU
    h = jnp.dot(h, w3_ref[...], preferred_element_type=jnp.float32)
    h = jnp.maximum(h + b3_ref[...], 0.0).astype(jnp.bfloat16)
    # Layer 4: Linear(512pad -> 128pad) + Sigmoid (only column 0 is real)
    z = jnp.dot(h, w4_ref[...], preferred_element_type=jnp.float32) + b4_ref[...]
    o_ref[...] = jax.nn.sigmoid(z).astype(o_ref.dtype)


def init_params(key):
    """Deterministic init mirroring nn.Linear's U(-1/sqrt(fan_in), 1/sqrt(fan_in)).

    Weights stored as (in_features, out_features) so x @ W + b == PyTorch x @ W.T + b.
    """
    dims = [(IN_FEATURES, H1), (H1, H2), (H2, H3), (H3, OUT)]
    params = []
    keys = jax.random.split(key, 2 * len(dims))
    for i, (fan_in, fan_out) in enumerate(dims):
        bound = 1.0 / (fan_in ** 0.5)
        w = jax.random.uniform(keys[2 * i], (fan_in, fan_out),
                               minval=-bound, maxval=bound, dtype=jnp.float32)
        b = jax.random.uniform(keys[2 * i + 1], (1, fan_out),
                               minval=-bound, maxval=bound, dtype=jnp.float32)
        params.extend([w, b])
    return tuple(params)


def prepare_params(params):
    """Zero-pad to MXU-friendly widths, cast weights to bf16 (done once)."""
    w1, b1, w2, b2, w3, b3, w4, b4 = params

    def pad_w(w, rows, cols):
        return jnp.pad(w, ((0, rows - w.shape[0]), (0, cols - w.shape[1])))

    def pad_b(b, cols):
        return jnp.pad(b, ((0, 0), (0, cols - b.shape[1])))

    w1p = pad_w(w1, IN_FEATURES, H1P).astype(jnp.bfloat16)
    w2p = pad_w(w2, H1P, H2P).astype(jnp.bfloat16)
    w3p = pad_w(w3, H2P, H3P).astype(jnp.bfloat16)
    w4p = pad_w(w4, H3P, OUTP).astype(jnp.bfloat16)
    b1p = pad_b(b1, H1P).astype(jnp.float32)
    b2p = pad_b(b2, H2P).astype(jnp.float32)
    b3p = pad_b(b3, H3P).astype(jnp.float32)
    b4p = pad_b(b4, OUTP).astype(jnp.float32)
    return (w1p, b1p, w2p, b2p, w3p, b3p, w4p, b4p)


def neural_network4_forward(x, padded_params, *, tm=256):
    """x: (B, ...) flattening to 768 features.  Returns (B, 1) float32 probs."""
    B = x.shape[0]
    x2d = x.reshape(B, -1).astype(jnp.float32)
    assert x2d.shape[1] == IN_FEATURES, x2d.shape

    # Batch tiling: pad B to a multiple of the tile so the last tile is full.
    tm_eff = min(tm, _round_up(B, 8))
    b_pad = _round_up(B, tm_eff)
    if b_pad != B:
        x2d = jnp.pad(x2d, ((0, b_pad - B), (0, 0)))
    x_bf16 = x2d.astype(jnp.bfloat16)

    (w1, b1, w2, b2, w3, b3, w4, b4) = padded_params

    def x_map(i):
        return (i, 0)

    def const_map(i):
        return (0, 0)

    in_specs = [
        pl.BlockSpec((tm_eff, IN_FEATURES), x_map),        # x tile (pipelined)
        pl.BlockSpec((IN_FEATURES, H1P), const_map),       # resident weights
        pl.BlockSpec((1, H1P), const_map),
        pl.BlockSpec((H1P, H2P), const_map),
        pl.BlockSpec((1, H2P), const_map),
        pl.BlockSpec((H2P, H3P), const_map),
        pl.BlockSpec((1, H3P), const_map),
        pl.BlockSpec((H3P, OUTP), const_map),
        pl.BlockSpec((1, OUTP), const_map),
    ]
    out_spec = pl.BlockSpec((tm_eff, OUTP), x_map)

    out = pl.pallas_call(
        _mlp_kernel,
        out_shape=jax.ShapeDtypeStruct((b_pad, OUTP), jnp.float32),
        grid=(b_pad // tm_eff,),
        in_specs=in_specs,
        out_specs=out_spec,
        compiler_params=pltpu.CompilerParams(
            dimension_semantics=("parallel",),
            vmem_limit_bytes=32 << 20,
        ),
    )(x_bf16, w1, b1, w2, b2, w3, b3, w4, b4)

    # Un-pad: only the first B rows and output column 0 are real.
    return out[:B, :OUT]


if __name__ == "__main__":
    key = jax.random.PRNGKey(0)
    pkey, xkey = jax.random.split(key)

    params = init_params(pkey)
    padded_params = prepare_params(params)

    # Input shaped like the (8, 8, 6, 2) board encoding implied by 8*8*6*2 = 768.
    B = 2
    x = jax.random.normal(xkey, (B, 8, 8, 6, 2), dtype=jnp.float32)

    probs = neural_network4_forward(x, padded_params)
    jax.block_until_ready(probs)

    # Pure-JAX f32 reference of the same math (unpadded weights).
    def ref_forward(x, params):
        w1, b1, w2, b2, w3, b3, w4, b4 = params
        h = x.reshape(x.shape[0], -1)
        h = jnp.maximum(h @ w1 + b1, 0.0)
        h = jnp.maximum(h @ w2 + b2, 0.0)
        h = jnp.maximum(h @ w3 + b3, 0.0)
        return jax.nn.sigmoid(h @ w4 + b4)

    ref = ref_forward(x, params)
    assert probs.shape == (B, OUT), probs.shape
    # Kernel uses bf16 matmul inputs with f32 accumulation -> loose tolerance
    # vs the f32 reference.
    assert jnp.allclose(probs, ref, atol=2e-2, rtol=0.0), (probs, ref)

    print("KERNEL_OK")
</pallas_src>

<mosaic_0001>
module attributes {stable_mosaic.version = 11 : i64} {
  func.func @_mlp_kernel(%arg0: i32, %arg1: memref<8x768xbf16, #tpu.memory_space<vmem>>, %arg2: memref<768x768xbf16, #tpu.memory_space<vmem>>, %arg3: memref<1x768xf32, #tpu.memory_space<vmem>>, %arg4: memref<768x640xbf16, #tpu.memory_space<vmem>>, %arg5: memref<1x640xf32, #tpu.memory_space<vmem>>, %arg6: memref<640x512xbf16, #tpu.memory_space<vmem>>, %arg7: memref<1x512xf32, #tpu.memory_space<vmem>>, %arg8: memref<512x128xbf16, #tpu.memory_space<vmem>>, %arg9: memref<1x128xf32, #tpu.memory_space<vmem>>, %arg10: memref<8x128xf32, #tpu.memory_space<vmem>>) attributes {dimension_semantics = [#tpu.dimension_semantics<parallel>], iteration_bounds = array<i64: 1>, scalar_prefetch = 0 : i64, scratch_operands = 0 : i64, tpu.core_type = #tpu.core_type<tc>, window_params = [{transform_indices = @transform_0, window_bounds = array<i64: 8, 768>}, {pipeline_mode = #tpu.pipeline_mode<synchronous>, transform_indices = @transform_1, window_bounds = array<i64: 768, 768>}, {pipeline_mode = #tpu.pipeline_mode<synchronous>, transform_indices = @transform_2, window_bounds = array<i64: 1, 768>}, {pipeline_mode = #tpu.pipeline_mode<synchronous>, transform_indices = @transform_3, window_bounds = array<i64: 768, 640>}, {pipeline_mode = #tpu.pipeline_mode<synchronous>, transform_indices = @transform_4, window_bounds = array<i64: 1, 640>}, {pipeline_mode = #tpu.pipeline_mode<synchronous>, transform_indices = @transform_5, window_bounds = array<i64: 640, 512>}, {pipeline_mode = #tpu.pipeline_mode<synchronous>, transform_indices = @transform_6, window_bounds = array<i64: 1, 512>}, {pipeline_mode = #tpu.pipeline_mode<synchronous>, transform_indices = @transform_7, window_bounds = array<i64: 512, 128>}, {pipeline_mode = #tpu.pipeline_mode<synchronous>, transform_indices = @transform_8, window_bounds = array<i64: 1, 128>}, {transform_indices = @transform_9, window_bounds = array<i64: 8, 128>}]} {
    %c0 = arith.constant 0 : index
    %c0_0 = arith.constant 0 : index
    %0 = vector.load %arg1[%c0, %c0_0] : memref<8x768xbf16, #tpu.memory_space<vmem>>, vector<8x768xbf16>
    %c0_1 = arith.constant 0 : index
    %c0_2 = arith.constant 0 : index
    %1 = vector.load %arg2[%c0_1, %c0_2] : memref<768x768xbf16, #tpu.memory_space<vmem>>, vector<768x768xbf16>
    %cst = arith.constant dense<0.000000e+00> : vector<8x768xf32>
    %2 = tpu.matmul %0, %1, %cst {dimension_numbers = #tpu.dot_dimension_numbers<[1], [0], [0], [1], [0, 0, 1, 1], [], []>} : vector<8x768xbf16>, vector<768x768xbf16>, vector<8x768xf32> -> vector<8x768xf32>
    %c0_3 = arith.constant 0 : index
    %c0_4 = arith.constant 0 : index
    %3 = vector.load %arg3[%c0_3, %c0_4] : memref<1x768xf32, #tpu.memory_space<vmem>>, vector<1x768xf32>
    %4 = vector.broadcast %3 : vector<1x768xf32> to vector<8x768xf32>
    %5 = arith.addf %2, %4 : vector<8x768xf32>
    %cst_5 = arith.constant 0.000000e+00 : f32
    %6 = vector.broadcast %cst_5 : f32 to vector<8x768xf32>
    %7 = arith.maximumf %5, %6 : vector<8x768xf32>
    %8 = arith.truncf %7 : vector<8x768xf32> to vector<8x768xbf16>
    %c0_6 = arith.constant 0 : index
    %c0_7 = arith.constant 0 : index
    %9 = vector.load %arg4[%c0_6, %c0_7] : memref<768x640xbf16, #tpu.memory_space<vmem>>, vector<768x640xbf16>
    %cst_8 = arith.constant dense<0.000000e+00> : vector<8x640xf32>
    %10 = tpu.matmul %8, %9, %cst_8 {dimension_numbers = #tpu.dot_dimension_numbers<[1], [0], [0], [1], [0, 0, 1, 1], [], []>} : vector<8x768xbf16>, vector<768x640xbf16>, vector<8x640xf32> -> vector<8x640xf32>
    %c0_9 = arith.constant 0 : index
    %c0_10 = arith.constant 0 : index
    %11 = vector.load %arg5[%c0_9, %c0_10] : memref<1x640xf32, #tpu.memory_space<vmem>>, vector<1x640xf32>
    %12 = vector.broadcast %11 : vector<1x640xf32> to vector<8x640xf32>
    %13 = arith.addf %10, %12 : vector<8x640xf32>
    %cst_11 = arith.constant 0.000000e+00 : f32
    %14 = vector.broadcast %cst_11 : f32 to vector<8x640xf32>
    %15 = arith.maximumf %13, %14 : vector<8x640xf32>
    %16 = arith.truncf %15 : vector<8x640xf32> to vector<8x640xbf16>
    %c0_12 = arith.constant 0 : index
    %c0_13 = arith.constant 0 : index
    %17 = vector.load %arg6[%c0_12, %c0_13] : memref<640x512xbf16, #tpu.memory_space<vmem>>, vector<640x512xbf16>
    %cst_14 = arith.constant dense<0.000000e+00> : vector<8x512xf32>
    %18 = tpu.matmul %16, %17, %cst_14 {dimension_numbers = #tpu.dot_dimension_numbers<[1], [0], [0], [1], [0, 0, 1, 1], [], []>} : vector<8x640xbf16>, vector<640x512xbf16>, vector<8x512xf32> -> vector<8x512xf32>
    %c0_15 = arith.constant 0 : index
    %c0_16 = arith.constant 0 : index
    %19 = vector.load %arg7[%c0_15, %c0_16] : memref<1x512xf32, #tpu.memory_space<vmem>>, vector<1x512xf32>
    %20 = vector.broadcast %19 : vector<1x512xf32> to vector<8x512xf32>
    %21 = arith.addf %18, %20 : vector<8x512xf32>
    %cst_17 = arith.constant 0.000000e+00 : f32
    %22 = vector.broadcast %cst_17 : f32 to vector<8x512xf32>
    %23 = arith.maximumf %21, %22 : vector<8x512xf32>
    %24 = arith.truncf %23 : vector<8x512xf32> to vector<8x512xbf16>
    %c0_18 = arith.constant 0 : index
    %c0_19 = arith.constant 0 : index
    %25 = vector.load %arg8[%c0_18, %c0_19] : memref<512x128xbf16, #tpu.memory_space<vmem>>, vector<512x128xbf16>
    %cst_20 = arith.constant dense<0.000000e+00> : vector<8x128xf32>
    %26 = tpu.matmul %24, %25, %cst_20 {dimension_numbers = #tpu.dot_dimension_numbers<[1], [0], [0], [1], [0, 0, 1, 1], [], []>} : vector<8x512xbf16>, vector<512x128xbf16>, vector<8x128xf32> -> vector<8x128xf32>
    %c0_21 = arith.constant 0 : index
    %c0_22 = arith.constant 0 : index
    %27 = vector.load %arg9[%c0_21, %c0_22] : memref<1x128xf32, #tpu.memory_space<vmem>>, vector<1x128xf32>
    %28 = vector.broadcast %27 : vector<1x128xf32> to vector<8x128xf32>
    %29 = arith.addf %26, %28 : vector<8x128xf32>
    %30 = arith.negf %29 : vector<8x128xf32>
    %31 = math.exp %30 : vector<8x128xf32>
    %cst_23 = arith.constant 1.000000e+00 : f32
    %32 = vector.broadcast %cst_23 : f32 to vector<8x128xf32>
    %33 = arith.addf %32, %31 : vector<8x128xf32>
    %34 = arith.divf %32, %33 : vector<8x128xf32>
    %c0_24 = arith.constant 0 : index
    %c0_25 = arith.constant 0 : index
    %35 = vector.load %arg10[%c0_24, %c0_25] : memref<8x128xf32, #tpu.memory_space<vmem>>, vector<8x128xf32>
    tpu.vector_store %arg10[%c0_24, %c0_25], %34 {strides = array<i32>} : memref<8x128xf32, #tpu.memory_space<vmem>>, vector<8x128xf32>,
    return
  }
  func.func @transform_0(%arg0: i32) -> (i32, i32) {
    %c0_i32 = arith.constant 0 : i32
    %c0_i32_0 = arith.constant 0 : i32
    return %arg0, %c0_i32 : i32, i32
  }
  func.func @transform_1(%arg0: i32) -> (i32, i32) {
    %c0_i32 = arith.constant 0 : i32
    %c0_i32_0 = arith.constant 0 : i32
    %c0_i32_1 = arith.constant 0 : i32
    return %c0_i32, %c0_i32_0 : i32, i32
  }
  func.func @transform_2(%arg0: i32) -> (i32, i32) {
    %c0_i32 = arith.constant 0 : i32
    %c0_i32_0 = arith.constant 0 : i32
    %c0_i32_1 = arith.constant 0 : i32
    return %c0_i32, %c0_i32_0 : i32, i32
  }
  func.func @transform_3(%arg0: i32) -> (i32, i32) {
    %c0_i32 = arith.constant 0 : i32
    %c0_i32_0 = arith.constant 0 : i32
    %c0_i32_1 = arith.constant 0 : i32
    return %c0_i32, %c0_i32_0 : i32, i32
  }
  func.func @transform_4(%arg0: i32) -> (i32, i32) {
    %c0_i32 = arith.constant 0 : i32
    %c0_i32_0 = arith.constant 0 : i32
    %c0_i32_1 = arith.constant 0 : i32
    return %c0_i32, %c0_i32_0 : i32, i32
  }
  func.func @transform_5(%arg0: i32) -> (i32, i32) {
    %c0_i32 = arith.constant 0 : i32
    %c0_i32_0 = arith.constant 0 : i32
    %c0_i32_1 = arith.constant 0 : i32
    return %c0_i32, %c0_i32_0 : i32, i32
  }
  func.func @transform_6(%arg0: i32) -> (i32, i32) {
    %c0_i32 = arith.constant 0 : i32
    %c0_i32_0 = arith.constant 0 : i32
    %c0_i32_1 = arith.constant 0 : i32
    return %c0_i32, %c0_i32_0 : i32, i32
  }
  func.func @transform_7(%arg0: i32) -> (i32, i32) {
    %c0_i32 = arith.constant 0 : i32
    %c0_i32_0 = arith.constant 0 : i32
    %c0_i32_1 = arith.constant 0 : i32
    return %c0_i32, %c0_i32_0 : i32, i32
  }
  func.func @transform_8(%arg0: i32) -> (i32, i32) {
    %c0_i32 = arith.constant 0 : i32
    %c0_i32_0 = arith.constant 0 : i32
    %c0_i32_1 = arith.constant 0 : i32
    return %c0_i32, %c0_i32_0 : i32, i32
  }
  func.func @transform_9(%arg0: i32) -> (i32, i32) {
    %c0_i32 = arith.constant 0 : i32
    %c0_i32_0 = arith.constant 0 : i32
    return %arg0, %c0_i32 : i32, i32
  }
}

</mosaic_0001>

<llo_original>
// kernel: tpu_custom_call.1
$region0: #{tpu_custom_call.1}
  #allocation0 [shape = 'u32[]', space=smem, size = 0x4, offset = 0x4, fixed_abs, tag = 'smem constant byte address 0x4 - core index']
  #allocation1 [shape = 'u32[144,128]{1,0:T(1,128)}', space=vmem, size = 0x12000, scoped, tag = 'internal scratch']
  %s0 = inlined_call_operand.hbm [shape: bf16[8,768], index: 0, kind: input, shape index: {}]
  %s1 = inlined_call_operand.hbm [shape: bf16[768,768], index: 1, kind: input, shape index: {}]
  %s2 = inlined_call_operand.hbm [shape: f32[1,768], index: 2, kind: input, shape index: {}]
  %s3 = inlined_call_operand.hbm [shape: bf16[768,640], index: 3, kind: input, shape index: {}]
  %s4 = inlined_call_operand.hbm [shape: f32[1,640], index: 4, kind: input, shape index: {}]
  %s5 = inlined_call_operand.hbm [shape: bf16[640,512], index: 5, kind: input, shape index: {}]
  %s6 = inlined_call_operand.hbm [shape: f32[1,512], index: 6, kind: input, shape index: {}]
  %s7 = inlined_call_operand.hbm [shape: bf16[512,128], index: 7, kind: input, shape index: {}]
  %s8 = inlined_call_operand.hbm [shape: f32[1,128], index: 8, kind: input, shape index: {}]
  %s9 = inlined_call_operand.hbm [shape: f32[8,128], index: 9, kind: output, shape index: {}]
  %s10 = sld [smem:[#allocation0]]
  $region82: #{tpu_custom_call.1} parent=0
    _
  %s12 = ssub.s32 1, %s10
  %s13 = scalar_select 0, %s12, %s10
  $region1: #{tpu_custom_call.1} parent=0
    #allocation2 [shape = 'u8[12288]{0}', space=vmem, size = 0x3000, scoped, tag = 'input window, operand 0, single buffered']
    #allocation3 [shape = 's32[1]{0}', space=sflag, size = 0x4, scoped, tag = 'scoped memory for tpu_custom_call.1']
    #allocation4 [shape = 's32[1]{0}', space=sflag, size = 0x4, scoped, tag = 'scoped memory for tpu_custom_call.1']
    #allocation5 [shape = 'u8[1179648]{0}', space=vmem, size = 0x120000, scoped, tag = 'input window, operand 1, single buffered']
    #allocation6 [shape = 's32[1]{0}', space=sflag, size = 0x4, scoped, tag = 'scoped memory for tpu_custom_call.1']
    #allocation7 [shape = 'u8[3072]{0}', space=vmem, size = 0xc00, scoped, tag = 'input window, operand 2, single buffered']
    #allocation8 [shape = 'u8[983040]{0}', space=vmem, size = 0xf0000, scoped, tag = 'input window, operand 3, single buffered']
    #allocation9 [shape = 's32[1]{0}', space=sflag, size = 0x4, scoped, tag = 'scoped memory for tpu_custom_call.1']
    #allocation10 [shape = 'u8[2560]{0}', space=vmem, size = 0xc00, scoped, tag = 'input window, operand 4, single buffered']
    #allocation11 [shape = 'u8[655360]{0}', space=vmem, size = 0xa0000, scoped, tag = 'input window, operand 5, single buffered']
    #allocation12 [shape = 's32[1]{0}', space=sflag, size = 0x4, scoped, tag = 'scoped memory for tpu_custom_call.1']
    #allocation13 [shape = 'u8[2048]{0}', space=vmem, size = 0x800, scoped, tag = 'input window, operand 6, single buffered']
    #allocation14 [shape = 'u8[131072]{0}', space=vmem, size = 0x20000, scoped, tag = 'input window, operand 7, single buffered']
    #allocation15 [shape = 's32[1]{0}', space=sflag, size = 0x4, scoped, tag = 'scoped memory for tpu_custom_call.1']
    #allocation16 [shape = 'u8[512]{0}', space=vmem, size = 0x400, scoped, tag = 'input window, operand 8, single buffered']
    #allocation17 [shape = 'u8[4096]{0}', space=vmem, size = 0x1000, scoped, tag = 'output window, operand 0, single buffered']
    %14 = vsyncpa [#allocation3], 0
    %15 = vsyncpa [#allocation6], 0
    %16 = vsyncpa [#allocation9], 0
    %17 = vsyncpa [#allocation12], 0
    %18 = vsyncpa [#allocation15], 0
    %19 = vsyncpa [#allocation4], 0
    // Predicated region
    $region2: #{tpu_custom_call.1} parent=1 // pred_check
      _
    $region3: #{tpu_custom_call.1} parent=1 // pred_check_branch
      %21 = sbr.rel (0) target = $region5
    $region4: #{tpu_custom_call.1} parent=1 // pred_region
      %s23 = ssub.s32 384, 384
      %24 = vsyncadd [#allocation3], %s23
      %s26 = sshll.u32 [#allocation2], 4
      %s27 = int_to_ptr.vmem [resolvable:$true] %s26
      %29 = dma.hbm_to_vmem [thread:$0]  %s0, 384, %s27, [#allocation3]
    $region5: #{tpu_custom_call.1} parent=1 // pred_fallthru
      _
    // Predicated region
    $region6: #{tpu_custom_call.1} parent=1 // pred_check
      _
    $region7: #{tpu_custom_call.1} parent=1 // pred_check_branch
      %31 = sbr.rel (0) target = $region9
    $region8: #{tpu_custom_call.1} parent=1 // pred_region
      %s33 = ssub.s32 36864, 36864
      %34 = vsyncadd [#allocation6], %s33
      %s35 = sshll.u32 [#allocation5], 4
      %s36 = int_to_ptr.vmem [resolvable:$true] %s35
      %41 = dma.hbm_to_vmem [thread:$0]  %s1, 36864, %s36, [#allocation6], 384, 384, 24
    $region9: #{tpu_custom_call.1} parent=1 // pred_fallthru
      _
    // Predicated region
    $region10: #{tpu_custom_call.1} parent=1 // pred_check
      _
    $region11: #{tpu_custom_call.1} parent=1 // pred_check_branch
      %43 = sbr.rel (0) target = $region13
    $region12: #{tpu_custom_call.1} parent=1 // pred_region
      %s45 = ssub.s32 96, 96
      %46 = vsyncadd [#allocation6], %s45
      %s48 = sshll.u32 [#allocation7], 4
      %s49 = int_to_ptr.vmem [resolvable:$true] %s48
      %51 = dma.hbm_to_vmem [thread:$0]  %s2, 96, %s49, [#allocation6]
    $region13: #{tpu_custom_call.1} parent=1 // pred_fallthru
      _
    // Predicated region
    $region14: #{tpu_custom_call.1} parent=1 // pred_check
      _
    $region15: #{tpu_custom_call.1} parent=1 // pred_check_branch
      %53 = sbr.rel (0) target = $region17
    $region16: #{tpu_custom_call.1} parent=1 // pred_region
      %s55 = ssub.s32 30720, 30720
      %56 = vsyncadd [#allocation9], %s55
      %s57 = sshll.u32 [#allocation8], 4
      %s58 = int_to_ptr.vmem [resolvable:$true] %s57
      %63 = dma.hbm_to_vmem [thread:$0]  %s3, 30720, %s58, [#allocation9], 320, 320, 20
    $region17: #{tpu_custom_call.1} parent=1 // pred_fallthru
      _
    // Predicated region
    $region18: #{tpu_custom_call.1} parent=1 // pred_check
      _
    $region19: #{tpu_custom_call.1} parent=1 // pred_check_branch
      %65 = sbr.rel (0) target = $region21
    $region20: #{tpu_custom_call.1} parent=1 // pred_region
      %s67 = ssub.s32 80, 80
      %68 = vsyncadd [#allocation9], %s67
      %s70 = sshll.u32 [#allocation10], 4
      %s71 = int_to_ptr.vmem [resolvable:$true] %s70
      %73 = dma.hbm_to_vmem [thread:$0]  %s4, 80, %s71, [#allocation9]
    $region21: #{tpu_custom_call.1} parent=1 // pred_fallthru
      _
    // Predicated region
    $region22: #{tpu_custom_call.1} parent=1 // pred_check
      _
    $region23: #{tpu_custom_call.1} parent=1 // pred_check_branch
      %75 = sbr.rel (0) target = $region25
    $region24: #{tpu_custom_call.1} parent=1 // pred_region
      %s77 = ssub.s32 20480, 20480
      %78 = vsyncadd [#allocation12], %s77
      %s79 = sshll.u32 [#allocation11], 4
      %s80 = int_to_ptr.vmem [resolvable:$true] %s79
      %85 = dma.hbm_to_vmem [thread:$0]  %s5, 20480, %s80, [#allocation12], 256, 256, 16
    $region25: #{tpu_custom_call.1} parent=1 // pred_fallthru
      _
    // Predicated region
    $region26: #{tpu_custom_call.1} parent=1 // pred_check
      _
    $region27: #{tpu_custom_call.1} parent=1 // pred_check_branch
      %87 = sbr.rel (0) target = $region29
    $region28: #{tpu_custom_call.1} parent=1 // pred_region
      %s89 = ssub.s32 64, 64
      %90 = vsyncadd [#allocation12], %s89
      %s92 = sshll.u32 [#allocation13], 4
      %s93 = int_to_ptr.vmem [resolvable:$true] %s92
      %95 = dma.hbm_to_vmem [thread:$0]  %s6, 64, %s93, [#allocation12]
    $region29: #{tpu_custom_call.1} parent=1 // pred_fallthru
      _
    // Predicated region
    $region30: #{tpu_custom_call.1} parent=1 // pred_check
      _
    $region31: #{tpu_custom_call.1} parent=1 // pred_check_branch
      %97 = sbr.rel (0) target = $region33
    $region32: #{tpu_custom_call.1} parent=1 // pred_region
      %s99 = ssub.s32 4096, 4096
      %100 = vsyncadd [#allocation15], %s99
      %s101 = sshll.u32 [#allocation14], 4
      %s102 = int_to_ptr.vmem [resolvable:$true] %s101
      %107 = dma.hbm_to_vmem [thread:$0]  %s7, 4096, %s102, [#allocation15], 64, 64, 4
    $region33: #{tpu_custom_call.1} parent=1 // pred_fallthru
      _
    // Predicated region
    $region34: #{tpu_custom_call.1} parent=1 // pred_check
      _
    $region35: #{tpu_custom_call.1} parent=1 // pred_check_branch
      %109 = sbr.rel (0) target = $region37
    $region36: #{tpu_custom_call.1} parent=1 // pred_region
      %s111 = ssub.s32 16, 16
      %112 = vsyncadd [#allocation15], %s111
      %s114 = sshll.u32 [#allocation16], 4
      %s115 = int_to_ptr.vmem [resolvable:$true] %s114
      %117 = dma.hbm_to_vmem [thread:$0]  %s8, 16, %s115, [#allocation15]
    $region37: #{tpu_custom_call.1} parent=1 // pred_fallthru
      _
    // Predicated region
    $region38: #{tpu_custom_call.1} parent=1 // pred_check
      _
    $region39: #{tpu_custom_call.1} parent=1 // pred_check_branch
      %119 = sbr.rel (0) target = $region41
    $region40: #{tpu_custom_call.1} parent=1 // pred_region
      %120 = dma.done [#allocation3], 384
    $region41: #{tpu_custom_call.1} parent=1 // pred_fallthru
      _
    // Predicated region
    $region42: #{tpu_custom_call.1} parent=1 // pred_check
      _
    $region43: #{tpu_custom_call.1} parent=1 // pred_check_branch
      %122 = sbr.rel (0) target = $region45
    $region44: #{tpu_custom_call.1} parent=1 // pred_region
      %123 = dma.done [#allocation6], 36864
    $region45: #{tpu_custom_call.1} parent=1 // pred_fallthru
      _
    // Predicated region
    $region46: #{tpu_custom_call.1} parent=1 // pred_check
      _
    $region47: #{tpu_custom_call.1} parent=1 // pred_check_branch
      %125 = sbr.rel (0) target = $region49
    $region48: #{tpu_custom_call.1} parent=1 // pred_region
      %126 = dma.done [#allocation6], 96
    $region49: #{tpu_custom_call.1} parent=1 // pred_fallthru
      _
    // Predicated region
    $region50: #{tpu_custom_call.1} parent=1 // pred_check
      _
    $region51: #{tpu_custom_call.1} parent=1 // pred_check_branch
      %128 = sbr.rel (0) target = $region53
    $region52: #{tpu_custom_call.1} parent=1 // pred_region
      %129 = dma.done [#allocation9], 30720
    $region53: #{tpu_custom_call.1} parent=1 // pred_fallthru
      _
    // Predicated region
    $region54: #{tpu_custom_call.1} parent=1 // pred_check
      _
    $region55: #{tpu_custom_call.1} parent=1 // pred_check_branch
      %131 = sbr.rel (0) target = $region57
    $region56: #{tpu_custom_call.1} parent=1 // pred_region
      %132 = dma.done [#allocation9], 80
    $region57: #{tpu_custom_call.1} parent=1 // pred_fallthru
      _
    // Predicated region
    $region58: #{tpu_custom_call.1} parent=1 // pred_check
      _
    $region59: #{tpu_custom_call.1} parent=1 // pred_check_branch
      %134 = sbr.rel (0) target = $region61
    $region60: #{tpu_custom_call.1} parent=1 // pred_region
      %135 = dma.done [#allocation12], 20480
    $region61: #{tpu_custom_call.1} parent=1 // pred_fallthru
      _
    // Predicated region
    $region62: #{tpu_custom_call.1} parent=1 // pred_check
      _
    $region63: #{tpu_custom_call.1} parent=1 // pred_check_branch
      %137 = sbr.rel (0) target = $region65
    $region64: #{tpu_custom_call.1} parent=1 // pred_region
      %138 = dma.done [#allocation12], 64
    $region65: #{tpu_custom_call.1} parent=1 // pred_fallthru
      _
    // Predicated region
    $region66: #{tpu_custom_call.1} parent=1 // pred_check
      _
    $region67: #{tpu_custom_call.1} parent=1 // pred_check_branch
      %140 = sbr.rel (0) target = $region69
    $region68: #{tpu_custom_call.1} parent=1 // pred_region
      %141 = dma.done [#allocation15], 4096
    $region69: #{tpu_custom_call.1} parent=1 // pred_fallthru
      _
    // Predicated region
    $region70: #{tpu_custom_call.1} parent=1 // pred_check
      _
    $region71: #{tpu_custom_call.1} parent=1 // pred_check_branch
      %143 = sbr.rel (0) target = $region73
    $region72: #{tpu_custom_call.1} parent=1 // pred_region
      %144 = dma.done [#allocation15], 16
    $region73: #{tpu_custom_call.1} parent=1 // pred_fallthru
      _
    %v146 = vld [vmem:[#allocation2] sm:$0xff]
    %v147 = vld [vmem:[#allocation2 + $0x8] sm:$0xff]
    %v148 = vld [vmem:[#allocation2 + $0x10] sm:$0xff]
    %v149 = vld [vmem:[#allocation5] sm:$0xff]
    %v150 = vld [vmem:[#allocation5 + $0x8] sm:$0xff]
    %v151 = vld [vmem:[#allocation5 + $0x10] sm:$0xff]
    %v152 = vld [vmem:[#allocation5 + $0x18] sm:$0xff]
    %v153 = vld [vmem:[#allocation5 + $0x20] sm:$0xff]
    %v154 = vld [vmem:[#allocation5 + $0x28] sm:$0xff]
    %v155 = vld [vmem:[#allocation5 + $0x30] sm:$0xff]
    %v156 = vld [vmem:[#allocation5 + $0x38] sm:$0xff]
    %v157 = vld [vmem:[#allocation5 + $0x40] sm:$0xff]
    %v158 = vld [vmem:[#allocation5 + $0x48] sm:$0xff]
    %v159 = vld [vmem:[#allocation5 + $0x50] sm:$0xff]
    %v160 = vld [vmem:[#allocation5 + $0x58] sm:$0xff]
    %v161 = vld [vmem:[#allocation5 + $0x60] sm:$0xff]
    %v162 = vld [vmem:[#allocation5 + $0x68] sm:$0xff]
    %v163 = vld [vmem:[#allocation5 + $0x70] sm:$0xff]
    %v164 = vld [vmem:[#allocation5 + $0x78] sm:$0xff]
    %v165 = vld [vmem:[#allocation5 + $0x80] sm:$0xff]
    %v166 = vld [vmem:[#allocation5 + $0x88] sm:$0xff]
    %v167 = vld [vmem:[#allocation5 + $0x90] sm:$0xff]
    %v168 = vld [vmem:[#allocation5 + $0x98] sm:$0xff]
    %v169 = vld [vmem:[#allocation5 + $0xa0] sm:$0xff]
    %v170 = vld [vmem:[#allocation5 + $0xa8] sm:$0xff]
    %v171 = vld [vmem:[#allocation5 + $0xb0] sm:$0xff]
    %v172 = vld [vmem:[#allocation5 + $0xb8] sm:$0xff]
    %v173 = vld [vmem:[#allocation5 + $0xc0] sm:$0xff]
    %v174 = vld [vmem:[#allocation5 + $0xc8] sm:$0xff]
    %v175 = vld [vmem:[#allocation5 + $0xd0] sm:$0xff]
    %v176 = vld [vmem:[#allocation5 + $0xd8] sm:$0xff]
    %v177 = vld [vmem:[#allocation5 + $0xe0] sm:$0xff]
    %v178 = vld [vmem:[#allocation5 + $0xe8] sm:$0xff]
    %v179 = vld [vmem:[#allocation5 + $0xf0] sm:$0xff]
    %v180 = vld [vmem:[#allocation5 + $0xf8] sm:$0xff]
    %v181 = vld [vmem:[#allocation5 + $0x100] sm:$0xff]
    %v182 = vld [vmem:[#allocation5 + $0x108] sm:$0xff]
    %v183 = vld [vmem:[#allocation5 + $0x110] sm:$0xff]
    %v184 = vld [vmem:[#allocation5 + $0x118] sm:$0xff]
    %v185 = vld [vmem:[#allocation5 + $0x120] sm:$0xff]
    %v186 = vld [vmem:[#allocation5 + $0x128] sm:$0xff]
    %v187 = vld [vmem:[#allocation5 + $0x130] sm:$0xff]
    %v188 = vld [vmem:[#allocation5 + $0x138] sm:$0xff]
    %v189 = vld [vmem:[#allocation5 + $0x140] sm:$0xff]
    %v190 = vld [vmem:[#allocation5 + $0x148] sm:$0xff]
    %v191 = vld [vmem:[#allocation5 + $0x150] sm:$0xff]
    %v192 = vld [vmem:[#allocation5 + $0x158] sm:$0xff]
    %v193 = vld [vmem:[#allocation5 + $0x160] sm:$0xff]
    %v194 = vld [vmem:[#allocation5 + $0x168] sm:$0xff]
    %v195 = vld [vmem:[#allocation5 + $0x170] sm:$0xff]
    %v196 = vld [vmem:[#allocation5 + $0x178] sm:$0xff]
    %v197 = vld [vmem:[#allocation5 + $0x180] sm:$0xff]
    %v198 = vld [vmem:[#allocation5 + $0x188] sm:$0xff]
    %v199 = vld [vmem:[#allocation5 + $0x190] sm:$0xff]
    %v200 = vld [vmem:[#allocation5 + $0x198] sm:$0xff]
    %v201 = vld [vmem:[#allocation5 + $0x1a0] sm:$0xff]
    %v202 = vld [vmem:[#allocation5 + $0x1a8] sm:$0xff]
    %v203 = vld [vmem:[#allocation5 + $0x1b0] sm:$0xff]
    %v204 = vld [vmem:[#allocation5 + $0x1b8] sm:$0xff]
    %v205 = vld [vmem:[#allocation5 + $0x1c0] sm:$0xff]
    %v206 = vld [vmem:[#allocation5 + $0x1c8] sm:$0xff]
    %v207 = vld [vmem:[#allocation5 + $0x1d0] sm:$0xff]
    %v208 = vld [vmem:[#allocation5 + $0x1d8] sm:$0xff]
    %v209 = vld [vmem:[#allocation5 + $0x1e0] sm:$0xff]
    %v210 = vld [vmem:[#allocation5 + $0x1e8] sm:$0xff]
    %v211 = vld [vmem:[#allocation5 + $0x1f0] sm:$0xff]
    %v212 = vld [vmem:[#allocation5 + $0x1f8] sm:$0xff]
    %v213 = vld [vmem:[#allocation5 + $0x200] sm:$0xff]
    %v214 = vld [vmem:[#allocation5 + $0x208] sm:$0xff]
    %v215 = vld [vmem:[#allocation5 + $0x210] sm:$0xff]
    %v216 = vld [vmem:[#allocation5 + $0x218] sm:$0xff]
    %v217 = vld [vmem:[#allocation5 + $0x220] sm:$0xff]
    %v218 = vld [vmem:[#allocation5 + $0x228] sm:$0xff]
    %v219 = vld [vmem:[#allocation5 + $0x230] sm:$0xff]
    %v220 = vld [vmem:[#allocation5 + $0x238] sm:$0xff]
    %v221 = vld [vmem:[#allocation5 + $0x240] sm:$0xff]
    %v222 = vld [vmem:[#allocation5 + $0x248] sm:$0xff]
    %v223 = vld [vmem:[#allocation5 + $0x250] sm:$0xff]
    %v224 = vld [vmem:[#allocation5 + $0x258] sm:$0xff]
    %v225 = vld [vmem:[#allocation5 + $0x260] sm:$0xff]
    %v226 = vld [vmem:[#allocation5 + $0x268] sm:$0xff]
    %v227 = vld [vmem:[#allocation5 + $0x270] sm:$0xff]
    %v228 = vld [vmem:[#allocation5 + $0x278] sm:$0xff]
    %v229 = vld [vmem:[#allocation5 + $0x280] sm:$0xff]
    %v230 = vld [vmem:[#allocation5 + $0x288] sm:$0xff]
    %v231 = vld [vmem:[#allocation5 + $0x290] sm:$0xff]
    %v232 = vld [vmem:[#allocation5 + $0x298] sm:$0xff]
    %v233 = vld [vmem:[#allocation5 + $0x2a0] sm:$0xff]
    %v234 = vld [vmem:[#allocation5 + $0x2a8] sm:$0xff]
    %v235 = vld [vmem:[#allocation5 + $0x2b0] sm:$0xff]
    %v236 = vld [vmem:[#allocation5 + $0x2b8] sm:$0xff]
    %v237 = vld [vmem:[#allocation5 + $0x2c0] sm:$0xff]
    %v238 = vld [vmem:[#allocation5 + $0x2c8] sm:$0xff]
    %v239 = vld [vmem:[#allocation5 + $0x2d0] sm:$0xff]
    %v240 = vld [vmem:[#allocation5 + $0x2d8] sm:$0xff]
    %v241 = vld [vmem:[#allocation5 + $0x2e0] sm:$0xff]
    %v242 = vld [vmem:[#allocation5 + $0x2e8] sm:$0xff]
    %v243 = vld [vmem:[#allocation5 + $0x2f0] sm:$0xff]
    %v244 = vld [vmem:[#allocation5 + $0x2f8] sm:$0xff]
    %v245 = vld [vmem:[#allocation5 + $0x300] sm:$0xff]
    %v246 = vld [vmem:[#allocation5 + $0x308] sm:$0xff]
    %v247 = vld [vmem:[#allocation5 + $0x310] sm:$0xff]
    %v248 = vld [vmem:[#allocation5 + $0x318] sm:$0xff]
    %v249 = vld [vmem:[#allocation5 + $0x320] sm:$0xff]
    %v250 = vld [vmem:[#allocation5 + $0x328] sm:$0xff]
    %v251 = vld [vmem:[#allocation5 + $0x330] sm:$0xff]
    %v252 = vld [vmem:[#allocation5 + $0x338] sm:$0xff]
    %v253 = vld [vmem:[#allocation5 + $0x340] sm:$0xff]
    %v254 = vld [vmem:[#allocation5 + $0x348] sm:$0xff]
    %v255 = vld [vmem:[#allocation5 + $0x350] sm:$0xff]
    %v256 = vld [vmem:[#allocation5 + $0x358] sm:$0xff]
    %v257 = vld [vmem:[#allocation5 + $0x360] sm:$0xff]
    %v258 = vld [vmem:[#allocation5 + $0x368] sm:$0xff]
    %v259 = vld [vmem:[#allocation5 + $0x370] sm:$0xff]
    %v260 = vld [vmem:[#allocation5 + $0x378] sm:$0xff]
    %v261 = vld [vmem:[#allocation5 + $0x380] sm:$0xff]
    %v262 = vld [vmem:[#allocation5 + $0x388] sm:$0xff]
    %v263 = vld [vmem:[#allocation5 + $0x390] sm:$0xff]
    %v264 = vld [vmem:[#allocation5 + $0x398] sm:$0xff]
    %v265 = vld [vmem:[#allocation5 + $0x3a0] sm:$0xff]
    %v266 = vld [vmem:[#allocation5 + $0x3a8] sm:$0xff]
    %v267 = vld [vmem:[#allocation5 + $0x3b0] sm:$0xff]
    %v268 = vld [vmem:[#allocation5 + $0x3b8] sm:$0xff]
    %v269 = vld [vmem:[#allocation5 + $0x3c0] sm:$0xff]
    %v270 = vld [vmem:[#allocation5 + $0x3c8] sm:$0xff]
    %v271 = vld [vmem:[#allocation5 + $0x3d0] sm:$0xff]
    %v272 = vld [vmem:[#allocation5 + $0x3d8] sm:$0xff]
    %v273 = vld [vmem:[#allocation5 + $0x3e0] sm:$0xff]
    %v274 = vld [vmem:[#allocation5 + $0x3e8] sm:$0xff]
    %v275 = vld [vmem:[#allocation5 + $0x3f0] sm:$0xff]
    %v276 = vld [vmem:[#allocation5 + $0x3f8] sm:$0xff]
    %v277 = vld [vmem:[#allocation5 + $0x400] sm:$0xff]
    %v278 = vld [vmem:[#allocation5 + $0x408] sm:$0xff]
    %v279 = vld [vmem:[#allocation5 + $0x410] sm:$0xff]
    %v280 = vld [vmem:[#allocation5 + $0x418] sm:$0xff]
    %v281 = vld [vmem:[#allocation5 + $0x420] sm:$0xff]
    %v282 = vld [vmem:[#allocation5 + $0x428] sm:$0xff]
    %v283 = vld [vmem:[#allocation5 + $0x430] sm:$0xff]
    %v284 = vld [vmem:[#allocation5 + $0x438] sm:$0xff]
    %v285 = vld [vmem:[#allocation5 + $0x440] sm:$0xff]
    %v286 = vld [vmem:[#allocation5 + $0x448] sm:$0xff]
    %v287 = vld [vmem:[#allocation5 + $0x450] sm:$0xff]
    %v288 = vld [vmem:[#allocation5 + $0x458] sm:$0xff]
    %v289 = vld [vmem:[#allocation5 + $0x460] sm:$0xff]
    %v290 = vld [vmem:[#allocation5 + $0x468] sm:$0xff]
    %v291 = vld [vmem:[#allocation5 + $0x470] sm:$0xff]
    %v292 = vld [vmem:[#allocation5 + $0x478] sm:$0xff]
    %v293 = vld [vmem:[#allocation5 + $0x480] sm:$0xff]
    %v294 = vld [vmem:[#allocation5 + $0x488] sm:$0xff]
    %v295 = vld [vmem:[#allocation5 + $0x490] sm:$0xff]
    %v296 = vld [vmem:[#allocation5 + $0x498] sm:$0xff]
    %v297 = vld [vmem:[#allocation5 + $0x4a0] sm:$0xff]
    %v298 = vld [vmem:[#allocation5 + $0x4a8] sm:$0xff]
    %v299 = vld [vmem:[#allocation5 + $0x4b0] sm:$0xff]
    %v300 = vld [vmem:[#allocation5 + $0x4b8] sm:$0xff]
    %v301 = vld [vmem:[#allocation5 + $0x4c0] sm:$0xff]
    %v302 = vld [vmem:[#allocation5 + $0x4c8] sm:$0xff]
    %v303 = vld [vmem:[#allocation5 + $0x4d0] sm:$0xff]
    %v304 = vld [vmem:[#allocation5 + $0x4d8] sm:$0xff]
    %v305 = vld [vmem:[#allocation5 + $0x4e0] sm:$0xff]
    %v306 = vld [vmem:[#allocation5 + $0x4e8] sm:$0xff]
    %v307 = vld [vmem:[#allocation5 + $0x4f0] sm:$0xff]
    %v308 = vld [vmem:[#allocation5 + $0x4f8] sm:$0xff]
    %v309 = vld [vmem:[#allocation5 + $0x500] sm:$0xff]
    %v310 = vld [vmem:[#allocation5 + $0x508] sm:$0xff]
    %v311 = vld [vmem:[#allocation5 + $0x510] sm:$0xff]
    %v312 = vld [vmem:[#allocation5 + $0x518] sm:$0xff]
    %v313 = vld [vmem:[#allocation5 + $0x520] sm:$0xff]
    %v314 = vld [vmem:[#allocation5 + $0x528] sm:$0xff]
    %v315 = vld [vmem:[#allocation5 + $0x530] sm:$0xff]
    %v316 = vld [vmem:[#allocation5 + $0x538] sm:$0xff]
    %v317 = vld [vmem:[#allocation5 + $0x540] sm:$0xff]
    %v318 = vld [vmem:[#allocation5 + $0x548] sm:$0xff]
    %v319 = vld [vmem:[#allocation5 + $0x550] sm:$0xff]
    %v320 = vld [vmem:[#allocation5 + $0x558] sm:$0xff]
    %v321 = vld [vmem:[#allocation5 + $0x560] sm:$0xff]
    %v322 = vld [vmem:[#allocation5 + $0x568] sm:$0xff]
    %v323 = vld [vmem:[#allocation5 + $0x570] sm:$0xff]
    %v324 = vld [vmem:[#allocation5 + $0x578] sm:$0xff]
    %v325 = vld [vmem:[#allocation5 + $0x580] sm:$0xff]
    %v326 = vld [vmem:[#allocation5 + $0x588] sm:$0xff]
    %v327 = vld [vmem:[#allocation5 + $0x590] sm:$0xff]
    %v328 = vld [vmem:[#allocation5 + $0x598] sm:$0xff]
    %v329 = vld [vmem:[#allocation5 + $0x5a0] sm:$0xff]
    %v330 = vld [vmem:[#allocation5 + $0x5a8] sm:$0xff]
    %v331 = vld [vmem:[#allocation5 + $0x5b0] sm:$0xff]
    %v332 = vld [vmem:[#allocation5 + $0x5b8] sm:$0xff]
    %v333 = vld [vmem:[#allocation5 + $0x5c0] sm:$0xff]
    %v334 = vld [vmem:[#allocation5 + $0x5c8] sm:$0xff]
    %v335 = vld [vmem:[#allocation5 + $0x5d0] sm:$0xff]
    %v336 = vld [vmem:[#allocation5 + $0x5d8] sm:$0xff]
    %v337 = vld [vmem:[#allocation5 + $0x5e0] sm:$0xff]
    %v338 = vld [vmem:[#allocation5 + $0x5e8] sm:$0xff]
    %v339 = vld [vmem:[#allocation5 + $0x5f0] sm:$0xff]
    %v340 = vld [vmem:[#allocation5 + $0x5f8] sm:$0xff]
    %v341 = vld [vmem:[#allocation5 + $0x600] sm:$0xff]
    %v342 = vld [vmem:[#allocation5 + $0x608] sm:$0xff]
    %v343 = vld [vmem:[#allocation5 + $0x610] sm:$0xff]
    %v344 = vld [vmem:[#allocation5 + $0x618] sm:$0xff]
    %v345 = vld [vmem:[#allocation5 + $0x620] sm:$0xff]
    %v346 = vld [vmem:[#allocation5 + $0x628] sm:$0xff]
    %v347 = vld [vmem:[#allocation5 + $0x630] sm:$0xff]
    %v348 = vld [vmem:[#allocation5 + $0x638] sm:$0xff]
    %v349 = vld [vmem:[#allocation5 + $0x640] sm:$0xff]
    %v350 = vld [vmem:[#allocation5 + $0x648] sm:$0xff]
    %v351 = vld [vmem:[#allocation5 + $0x650] sm:$0xff]
    %v352 = vld [vmem:[#allocation5 + $0x658] sm:$0xff]
    %v353 = vld [vmem:[#allocation5 + $0x660] sm:$0xff]
    %v354 = vld [vmem:[#allocation5 + $0x668] sm:$0xff]
    %v355 = vld [vmem:[#allocation5 + $0x670] sm:$0xff]
    %v356 = vld [vmem:[#allocation5 + $0x678] sm:$0xff]
    %v357 = vld [vmem:[#allocation5 + $0x680] sm:$0xff]
    %v358 = vld [vmem:[#allocation5 + $0x688] sm:$0xff]
    %v359 = vld [vmem:[#allocation5 + $0x690] sm:$0xff]
    %v360 = vld [vmem:[#allocation5 + $0x698] sm:$0xff]
    %v361 = vld [vmem:[#allocation5 + $0x6a0] sm:$0xff]
    %v362 = vld [vmem:[#allocation5 + $0x6a8] sm:$0xff]
    %v363 = vld [vmem:[#allocation5 + $0x6b0] sm:$0xff]
    %v364 = vld [vmem:[#allocation5 + $0x6b8] sm:$0xff]
    %v365 = vld [vmem:[#allocation5 + $0x6c0] sm:$0xff]
    %v366 = vld [vmem:[#allocation5 + $0x6c8] sm:$0xff]
    %v367 = vld [vmem:[#allocation5 + $0x6d0] sm:$0xff]
    %v368 = vld [vmem:[#allocation5 + $0x6d8] sm:$0xff]
    %v369 = vld [vmem:[#allocation5 + $0x6e0] sm:$0xff]
    %v370 = vld [vmem:[#allocation5 + $0x6e8] sm:$0xff]
    %v371 = vld [vmem:[#allocation5 + $0x6f0] sm:$0xff]
    %v372 = vld [vmem:[#allocation5 + $0x6f8] sm:$0xff]
    %v373 = vld [vmem:[#allocation5 + $0x700] sm:$0xff]
    %v374 = vld [vmem:[#allocation5 + $0x708] sm:$0xff]
    %v375 = vld [vmem:[#allocation5 + $0x710] sm:$0xff]
    %v376 = vld [vmem:[#allocation5 + $0x718] sm:$0xff]
    %v377 = vld [vmem:[#allocation5 + $0x720] sm:$0xff]
    %v378 = vld [vmem:[#allocation5 + $0x728] sm:$0xff]
    %v379 = vld [vmem:[#allocation5 + $0x730] sm:$0xff]
    %v380 = vld [vmem:[#allocation5 + $0x738] sm:$0xff]
    %v381 = vld [vmem:[#allocation5 + $0x740] sm:$0xff]
    %v382 = vld [vmem:[#allocation5 + $0x748] sm:$0xff]
    %v383 = vld [vmem:[#allocation5 + $0x750] sm:$0xff]
    %v384 = vld [vmem:[#allocation5 + $0x758] sm:$0xff]
    %v385 = vld [vmem:[#allocation5 + $0x760] sm:$0xff]
    %v386 = vld [vmem:[#allocation5 + $0x768] sm:$0xff]
    %v387 = vld [vmem:[#allocation5 + $0x770] sm:$0xff]
    %v388 = vld [vmem:[#allocation5 + $0x778] sm:$0xff]
    %v389 = vld [vmem:[#allocation5 + $0x780] sm:$0xff]
    %v390 = vld [vmem:[#allocation5 + $0x788] sm:$0xff]
    %v391 = vld [vmem:[#allocation5 + $0x790] sm:$0xff]
    %v392 = vld [vmem:[#allocation5 + $0x798] sm:$0xff]
    %v393 = vld [vmem:[#allocation5 + $0x7a0] sm:$0xff]
    %v394 = vld [vmem:[#allocation5 + $0x7a8] sm:$0xff]
    %v395 = vld [vmem:[#allocation5 + $0x7b0] sm:$0xff]
    %v396 = vld [vmem:[#allocation5 + $0x7b8] sm:$0xff]
    %v397 = vld [vmem:[#allocation5 + $0x7c0] sm:$0xff]
    %v398 = vld [vmem:[#allocation5 + $0x7c8] sm:$0xff]
    %v399 = vld [vmem:[#allocation5 + $0x7d0] sm:$0xff]
    %v400 = vld [vmem:[#allocation5 + $0x7d8] sm:$0xff]
    %v401 = vld [vmem:[#allocation5 + $0x7e0] sm:$0xff]
    %v402 = vld [vmem:[#allocation5 + $0x7e8] sm:$0xff]
    %v403 = vld [vmem:[#allocation5 + $0x7f0] sm:$0xff]
    %v404 = vld [vmem:[#allocation5 + $0x7f8] sm:$0xff]
    %v405 = vld [vmem:[#allocation5 + $0x800] sm:$0xff]
    %v406 = vld [vmem:[#allocation5 + $0x808] sm:$0xff]
    %v407 = vld [vmem:[#allocation5 + $0x810] sm:$0xff]
    %v408 = vld [vmem:[#allocation5 + $0x818] sm:$0xff]
    %v409 = vld [vmem:[#allocation5 + $0x820] sm:$0xff]
    %v410 = vld [vmem:[#allocation5 + $0x828] sm:$0xff]
    %v411 = vld [vmem:[#allocation5 + $0x830] sm:$0xff]
    %v412 = vld [vmem:[#allocation5 + $0x838] sm:$0xff]
    %v413 = vld [vmem:[#allocation5 + $0x840] sm:$0xff]
    %v414 = vld [vmem:[#allocation5 + $0x848] sm:$0xff]
    %v415 = vld [vmem:[#allocation5 + $0x850] sm:$0xff]
    %v416 = vld [vmem:[#allocation5 + $0x858] sm:$0xff]
    %v417 = vld [vmem:[#allocation5 + $0x860] sm:$0xff]
    %v418 = vld [vmem:[#allocation5 + $0x868] sm:$0xff]
    %v419 = vld [vmem:[#allocation5 + $0x870] sm:$0xff]
    %v420 = vld [vmem:[#allocation5 + $0x878] sm:$0xff]
    %v421 = vld [vmem:[#allocation5 + $0x880] sm:$0xff]
    %v422 = vld [vmem:[#allocation5 + $0x888] sm:$0xff]
    %v423 = vld [vmem:[#allocation5 + $0x890] sm:$0xff]
    %v424 = vld [vmem:[#allocation5 + $0x898] sm:$0xff]
    %v425 = vld [vmem:[#allocation5 + $0x8a0] sm:$0xff]
    %v426 = vld [vmem:[#allocation5 + $0x8a8] sm:$0xff]
    %v427 = vld [vmem:[#allocation5 + $0x8b0] sm:$0xff]
    %v428 = vld [vmem:[#allocation5 + $0x8b8] sm:$0xff]
    %v429 = vld [vmem:[#allocation5 + $0x8c0] sm:$0xff]
    %v430 = vld [vmem:[#allocation5 + $0x8c8] sm:$0xff]
    %v431 = vld [vmem:[#allocation5 + $0x8d0] sm:$0xff]
    %v432 = vld [vmem:[#allocation5 + $0x8d8] sm:$0xff]
    %v433 = vld [vmem:[#allocation5 + $0x8e0] sm:$0xff]
    %v434 = vld [vmem:[#allocation5 + $0x8e8] sm:$0xff]
    %v435 = vld [vmem:[#allocation5 + $0x8f0] sm:$0xff]
    %v436 = vld [vmem:[#allocation5 + $0x8f8] sm:$0xff]
    %v437 = vld [vmem:[#allocation7] sm:$0x3f]
    %v439 = vlaneseq
    %v440 = vshrl.u32 %v439, 7
    %v441 = vsub.s32 0, %v440
    %v442 = vrot.slane %v437, %v441
    %v443 = vlaneseq
    %v444 = vshrl.u32 %v443, 7
    %v445 = vsub.s32 1, %v444
    %v446 = vrot.slane %v437, %v445
    %v447 = vlaneseq
    %v448 = vshrl.u32 %v447, 7
    %v449 = vsub.s32 2, %v448
    %v450 = vrot.slane %v437, %v449
    %v451 = vlaneseq
    %v452 = vshrl.u32 %v451, 7
    %v453 = vsub.s32 3, %v452
    %v454 = vrot.slane %v437, %v453
    %v455 = vlaneseq
    %v456 = vshrl.u32 %v455, 7
    %v457 = vsub.s32 4, %v456
    %v458 = vrot.slane %v437, %v457
    %v459 = vlaneseq
    %v460 = vshrl.u32 %v459, 7
    %v461 = vsub.s32 5, %v460
    %v462 = vrot.slane %v437, %v461
    %v472 = vunpack.c.l.b16 %v146
    %v473 = vunpack.c.h.b16 %v146
    %v474 = vunpack.c.l.b16 %v147
    %v475 = vunpack.c.h.b16 %v147
    %v476 = vunpack.c.l.b16 %v148
    %v477 = vunpack.c.h.b16 %v148
    %v478 = vpack.c.b16 %v472, %v472
    %v479 = vpack.c.b16 %v473, %v473
    %v480 = vpack.c.b16 %v474, %v474
    %v481 = vpack.c.b16 %v475, %v475
    %v482 = vpack.c.b16 %v476, %v476
    %v483 = vpack.c.b16 %v477, %v477
    %v778 = vunpack.c.l.b16 %v149
    %v779 = vunpack.c.h.b16 %v149
    %v780 = vunpack.c.l.b16 %v150
    %v781 = vunpack.c.h.b16 %v150
    %v782 = vunpack.c.l.b16 %v151
    %v783 = vunpack.c.h.b16 %v151
    %v784 = vunpack.c.l.b16 %v152
    %v785 = vunpack.c.h.b16 %v152
    %v786 = vunpack.c.l.b16 %v153
    %v787 = vunpack.c.h.b16 %v153
    %v788 = vunpack.c.l.b16 %v154
    %v789 = vunpack.c.h.b16 %v154
    %v790 = vunpack.c.l.b16 %v155
    %v791 = vunpack.c.h.b16 %v155
    %v792 = vunpack.c.l.b16 %v156
    %v793 = vunpack.c.h.b16 %v156
    %v794 = vunpack.c.l.b16 %v157
    %v795 = vunpack.c.h.b16 %v157
    %v796 = vunpack.c.l.b16 %v158
    %v797 = vunpack.c.h.b16 %v158
    %v798 = vunpack.c.l.b16 %v159
    %v799 = vunpack.c.h.b16 %v159
    %v800 = vunpack.c.l.b16 %v160
    %v801 = vunpack.c.h.b16 %v160
    %v802 = vunpack.c.l.b16 %v161
    %v803 = vunpack.c.h.b16 %v161
    %v804 = vunpack.c.l.b16 %v162
    %v805 = vunpack.c.h.b16 %v162
    %v806 = vunpack.c.l.b16 %v163
    %v807 = vunpack.c.h.b16 %v163
    %v808 = vunpack.c.l.b16 %v164
    %v809 = vunpack.c.h.b16 %v164
    %v810 = vunpack.c.l.b16 %v165
    %v811 = vunpack.c.h.b16 %v165
    %v812 = vunpack.c.l.b16 %v166
    %v813 = vunpack.c.h.b16 %v166
    %v814 = vunpack.c.l.b16 %v167
    %v815 = vunpack.c.h.b16 %v167
    %v816 = vunpack.c.l.b16 %v168
    %v817 = vunpack.c.h.b16 %v168
    %v818 = vunpack.c.l.b16 %v169
    %v819 = vunpack.c.h.b16 %v169
    %v820 = vunpack.c.l.b16 %v170
    %v821 = vunpack.c.h.b16 %v170
    %v822 = vunpack.c.l.b16 %v171
    %v823 = vunpack.c.h.b16 %v171
    %v824 = vunpack.c.l.b16 %v172
    %v825 = vunpack.c.h.b16 %v172
    %v826 = vunpack.c.l.b16 %v173
    %v827 = vunpack.c.h.b16 %v173
    %v828 = vunpack.c.l.b16 %v174
    %v829 = vunpack.c.h.b16 %v174
    %v830 = vunpack.c.l.b16 %v175
    %v831 = vunpack.c.h.b16 %v175
    %v832 = vunpack.c.l.b16 %v176
    %v833 = vunpack.c.h.b16 %v176
    %v834 = vunpack.c.l.b16 %v177
    %v835 = vunpack.c.h.b16 %v177
    %v836 = vunpack.c.l.b16 %v178
    %v837 = vunpack.c.h.b16 %v178
    %v838 = vunpack.c.l.b16 %v179
    %v839 = vunpack.c.h.b16 %v179
    %v840 = vunpack.c.l.b16 %v180
    %v841 = vunpack.c.h.b16 %v180
    %v842 = vunpack.c.l.b16 %v181
    %v843 = vunpack.c.h.b16 %v181
    %v844 = vunpack.c.l.b16 %v182
    %v845 = vunpack.c.h.b16 %v182
    %v846 = vunpack.c.l.b16 %v183
    %v847 = vunpack.c.h.b16 %v183
    %v848 = vunpack.c.l.b16 %v184
    %v849 = vunpack.c.h.b16 %v184
    %v850 = vunpack.c.l.b16 %v185
    %v851 = vunpack.c.h.b16 %v185
    %v852 = vunpack.c.l.b16 %v186
    %v853 = vunpack.c.h.b16 %v186
    %v854 = vunpack.c.l.b16 %v187
    %v855 = vunpack.c.h.b16 %v187
    %v856 = vunpack.c.l.b16 %v188
    %v857 = vunpack.c.h.b16 %v188
    %v858 = vunpack.c.l.b16 %v189
    %v859 = vunpack.c.h.b16 %v189
    %v860 = vunpack.c.l.b16 %v190
    %v861 = vunpack.c.h.b16 %v190
    %v862 = vunpack.c.l.b16 %v191
    %v863 = vunpack.c.h.b16 %v191
    %v864 = vunpack.c.l.b16 %v192
    %v865 = vunpack.c.h.b16 %v192
    %v866 = vunpack.c.l.b16 %v193
    %v867 = vunpack.c.h.b16 %v193
    %v868 = vunpack.c.l.b16 %v194
    %v869 = vunpack.c.h.b16 %v194
    %v870 = vunpack.c.l.b16 %v195
    %v871 = vunpack.c.h.b16 %v195
    %v872 = vunpack.c.l.b16 %v196
    %v873 = vunpack.c.h.b16 %v196
    %v874 = vunpack.c.l.b16 %v197
    %v875 = vunpack.c.h.b16 %v197
    %v876 = vunpack.c.l.b16 %v198
    %v877 = vunpack.c.h.b16 %v198
    %v878 = vunpack.c.l.b16 %v199
    %v879 = vunpack.c.h.b16 %v199
    %v880 = vunpack.c.l.b16 %v200
    %v881 = vunpack.c.h.b16 %v200
    %v882 = vunpack.c.l.b16 %v201
    %v883 = vunpack.c.h.b16 %v201
    %v884 = vunpack.c.l.b16 %v202
    %v885 = vunpack.c.h.b16 %v202
    %v886 = vunpack.c.l.b16 %v203
    %v887 = vunpack.c.h.b16 %v203
    %v888 = vunpack.c.l.b16 %v204
    %v889 = vunpack.c.h.b16 %v204
    %v890 = vunpack.c.l.b16 %v205
    %v891 = vunpack.c.h.b16 %v205
    %v892 = vunpack.c.l.b16 %v206
    %v893 = vunpack.c.h.b16 %v206
    %v894 = vunpack.c.l.b16 %v207
    %v895 = vunpack.c.h.b16 %v207
    %v896 = vunpack.c.l.b16 %v208
    %v897 = vunpack.c.h.b16 %v208
    %v898 = vunpack.c.l.b16 %v209
    %v899 = vunpack.c.h.b16 %v209
    %v900 = vunpack.c.l.b16 %v210
    %v901 = vunpack.c.h.b16 %v210
    %v902 = vunpack.c.l.b16 %v211
    %v903 = vunpack.c.h.b16 %v211
    %v904 = vunpack.c.l.b16 %v212
    %v905 = vunpack.c.h.b16 %v212
    %v906 = vunpack.c.l.b16 %v213
    %v907 = vunpack.c.h.b16 %v213
    %v908 = vunpack.c.l.b16 %v214
    %v909 = vunpack.c.h.b16 %v214
    %v910 = vunpack.c.l.b16 %v215
    %v911 = vunpack.c.h.b16 %v215
    %v912 = vunpack.c.l.b16 %v216
    %v913 = vunpack.c.h.b16 %v216
    %v914 = vunpack.c.l.b16 %v217
    %v915 = vunpack.c.h.b16 %v217
    %v916 = vunpack.c.l.b16 %v218
    %v917 = vunpack.c.h.b16 %v218
    %v918 = vunpack.c.l.b16 %v219
    %v919 = vunpack.c.h.b16 %v219
    %v920 = vunpack.c.l.b16 %v220
    %v921 = vunpack.c.h.b16 %v220
    %v922 = vunpack.c.l.b16 %v221
    %v923 = vunpack.c.h.b16 %v221
    %v924 = vunpack.c.l.b16 %v222
    %v925 = vunpack.c.h.b16 %v222
    %v926 = vunpack.c.l.b16 %v223
    %v927 = vunpack.c.h.b16 %v223
    %v928 = vunpack.c.l.b16 %v224
    %v929 = vunpack.c.h.b16 %v224
    %v930 = vunpack.c.l.b16 %v225
    %v931 = vunpack.c.h.b16 %v225
    %v932 = vunpack.c.l.b16 %v226
    %v933 = vunpack.c.h.b16 %v226
    %v934 = vunpack.c.l.b16 %v227
    %v935 = vunpack.c.h.b16 %v227
    %v936 = vunpack.c.l.b16 %v228
    %v937 = vunpack.c.h.b16 %v228
    %v938 = vunpack.c.l.b16 %v229
    %v939 = vunpack.c.h.b16 %v229
    %v940 = vunpack.c.l.b16 %v230
    %v941 = vunpack.c.h.b16 %v230
    %v942 = vunpack.c.l.b16 %v231
    %v943 = vunpack.c.h.b16 %v231
    %v944 = vunpack.c.l.b16 %v232
    %v945 = vunpack.c.h.b16 %v232
    %v946 = vunpack.c.l.b16 %v233
    %v947 = vunpack.c.h.b16 %v233
    %v948 = vunpack.c.l.b16 %v234
    %v949 = vunpack.c.h.b16 %v234
    %v950 = vunpack.c.l.b16 %v235
    %v951 = vunpack.c.h.b16 %v235
    %v952 = vunpack.c.l.b16 %v236
    %v953 = vunpack.c.h.b16 %v236
    %v954 = vunpack.c.l.b16 %v237
    %v955 = vunpack.c.h.b16 %v237
    %v956 = vunpack.c.l.b16 %v238
    %v957 = vunpack.c.h.b16 %v238
    %v958 = vunpack.c.l.b16 %v239
    %v959 = vunpack.c.h.b16 %v239
    %v960 = vunpack.c.l.b16 %v240
    %v961 = vunpack.c.h.b16 %v240
    %v962 = vunpack.c.l.b16 %v241
    %v963 = vunpack.c.h.b16 %v241
    %v964 = vunpack.c.l.b16 %v242
    %v965 = vunpack.c.h.b16 %v242
    %v966 = vunpack.c.l.b16 %v243
    %v967 = vunpack.c.h.b16 %v243
    %v968 = vunpack.c.l.b16 %v244
    %v969 = vunpack.c.h.b16 %v244
    %v970 = vunpack.c.l.b16 %v245
    %v971 = vunpack.c.h.b16 %v245
    %v972 = vunpack.c.l.b16 %v246
    %v973 = vunpack.c.h.b16 %v246
    %v974 = vunpack.c.l.b16 %v247
    %v975 = vunpack.c.h.b16 %v247
    %v976 = vunpack.c.l.b16 %v248
    %v977 = vunpack.c.h.b16 %v248
    %v978 = vunpack.c.l.b16 %v249
    %v979 = vunpack.c.h.b16 %v249
    %v980 = vunpack.c.l.b16 %v250
    %v981 = vunpack.c.h.b16 %v250
    %v982 = vunpack.c.l.b16 %v251
    %v983 = vunpack.c.h.b16 %v251
    %v984 = vunpack.c.l.b16 %v252
    %v985 = vunpack.c.h.b16 %v252
    %v986 = vunpack.c.l.b16 %v253
    %v987 = vunpack.c.h.b16 %v253
    %v988 = vunpack.c.l.b16 %v254
    %v989 = vunpack.c.h.b16 %v254
    %v990 = vunpack.c.l.b16 %v255
    %v991 = vunpack.c.h.b16 %v255
    %v992 = vunpack.c.l.b16 %v256
    %v993 = vunpack.c.h.b16 %v256
    %v994 = vunpack.c.l.b16 %v257
    %v995 = vunpack.c.h.b16 %v257
    %v996 = vunpack.c.l.b16 %v258
    %v997 = vunpack.c.h.b16 %v258
    %v998 = vunpack.c.l.b16 %v259
    %v999 = vunpack.c.h.b16 %v259
    %v1000 = vunpack.c.l.b16 %v260
    %v1001 = vunpack.c.h.b16 %v260
    %v1002 = vunpack.c.l.b16 %v261
    %v1003 = vunpack.c.h.b16 %v261
    %v1004 = vunpack.c.l.b16 %v262
    %v1005 = vunpack.c.h.b16 %v262
    %v1006 = vunpack.c.l.b16 %v263
    %v1007 = vunpack.c.h.b16 %v263
    %v1008 = vunpack.c.l.b16 %v264
    %v1009 = vunpack.c.h.b16 %v264
    %v1010 = vunpack.c.l.b16 %v265
    %v1011 = vunpack.c.h.b16 %v265
    %v1012 = vunpack.c.l.b16 %v266
    %v1013 = vunpack.c.h.b16 %v266
    %v1014 = vunpack.c.l.b16 %v267
    %v1015 = vunpack.c.h.b16 %v267
    %v1016 = vunpack.c.l.b16 %v268
    %v1017 = vunpack.c.h.b16 %v268
    %v1018 = vunpack.c.l.b16 %v269
    %v1019 = vunpack.c.h.b16 %v269
    %v1020 = vunpack.c.l.b16 %v270
    %v1021 = vunpack.c.h.b16 %v270
    %v1022 = vunpack.c.l.b16 %v271
    %v1023 = vunpack.c.h.b16 %v271
    %v1024 = vunpack.c.l.b16 %v272
    %v1025 = vunpack.c.h.b16 %v272
    %v1026 = vunpack.c.l.b16 %v273
    %v1027 = vunpack.c.h.b16 %v273
    %v1028 = vunpack.c.l.b16 %v274
    %v1029 = vunpack.c.h.b16 %v274
    %v1030 = vunpack.c.l.b16 %v275
    %v1031 = vunpack.c.h.b16 %v275
    %v1032 = vunpack.c.l.b16 %v276
    %v1033 = vunpack.c.h.b16 %v276
    %v1034 = vunpack.c.l.b16 %v277
    %v1035 = vunpack.c.h.b16 %v277
    %v1036 = vunpack.c.l.b16 %v278
    %v1037 = vunpack.c.h.b16 %v278
    %v1038 = vunpack.c.l.b16 %v279
    %v1039 = vunpack.c.h.b16 %v279
    %v1040 = vunpack.c.l.b16 %v280
    %v1041 = vunpack.c.h.b16 %v280
    %v1042 = vunpack.c.l.b16 %v281
    %v1043 = vunpack.c.h.b16 %v281
    %v1044 = vunpack.c.l.b16 %v282
    %v1045 = vunpack.c.h.b16 %v282
    %v1046 = vunpack.c.l.b16 %v283
    %v1047 = vunpack.c.h.b16 %v283
    %v1048 = vunpack.c.l.b16 %v284
    %v1049 = vunpack.c.h.b16 %v284
    %v1050 = vunpack.c.l.b16 %v285
    %v1051 = vunpack.c.h.b16 %v285
    %v1052 = vunpack.c.l.b16 %v286
    %v1053 = vunpack.c.h.b16 %v286
    %v1054 = vunpack.c.l.b16 %v287
    %v1055 = vunpack.c.h.b16 %v287
    %v1056 = vunpack.c.l.b16 %v288
    %v1057 = vunpack.c.h.b16 %v288
    %v1058 = vunpack.c.l.b16 %v289
    %v1059 = vunpack.c.h.b16 %v289
    %v1060 = vunpack.c.l.b16 %v290
    %v1061 = vunpack.c.h.b16 %v290
    %v1062 = vunpack.c.l.b16 %v291
    %v1063 = vunpack.c.h.b16 %v291
    %v1064 = vunpack.c.l.b16 %v292
    %v1065 = vunpack.c.h.b16 %v292
    %v1066 = vunpack.c.l.b16 %v293
    %v1067 = vunpack.c.h.b16 %v293
    %v1068 = vunpack.c.l.b16 %v294
    %v1069 = vunpack.c.h.b16 %v294
    %v1070 = vunpack.c.l.b16 %v295
    %v1071 = vunpack.c.h.b16 %v295
    %v1072 = vunpack.c.l.b16 %v296
    %v1073 = vunpack.c.h.b16 %v296
    %v1074 = vunpack.c.l.b16 %v297
    %v1075 = vunpack.c.h.b16 %v297
    %v1076 = vunpack.c.l.b16 %v298
    %v1077 = vunpack.c.h.b16 %v298
    %v1078 = vunpack.c.l.b16 %v299
    %v1079 = vunpack.c.h.b16 %v299
    %v1080 = vunpack.c.l.b16 %v300
    %v1081 = vunpack.c.h.b16 %v300
    %v1082 = vunpack.c.l.b16 %v301
    %v1083 = vunpack.c.h.b16 %v301
    %v1084 = vunpack.c.l.b16 %v302
    %v1085 = vunpack.c.h.b16 %v302
    %v1086 = vunpack.c.l.b16 %v303
    %v1087 = vunpack.c.h.b16 %v303
    %v1088 = vunpack.c.l.b16 %v304
    %v1089 = vunpack.c.h.b16 %v304
    %v1090 = vunpack.c.l.b16 %v305
    %v1091 = vunpack.c.h.b16 %v305
    %v1092 = vunpack.c.l.b16 %v306
    %v1093 = vunpack.c.h.b16 %v306
    %v1094 = vunpack.c.l.b16 %v307
    %v1095 = vunpack.c.h.b16 %v307
    %v1096 = vunpack.c.l.b16 %v308
    %v1097 = vunpack.c.h.b16 %v308
    %v1098 = vunpack.c.l.b16 %v309
    %v1099 = vunpack.c.h.b16 %v309
    %v1100 = vunpack.c.l.b16 %v310
    %v1101 = vunpack.c.h.b16 %v310
    %v1102 = vunpack.c.l.b16 %v311
    %v1103 = vunpack.c.h.b16 %v311
    %v1104 = vunpack.c.l.b16 %v312
    %v1105 = vunpack.c.h.b16 %v312
    %v1106 = vunpack.c.l.b16 %v313
    %v1107 = vunpack.c.h.b16 %v313
    %v1108 = vunpack.c.l.b16 %v314
    %v1109 = vunpack.c.h.b16 %v314
    %v1110 = vunpack.c.l.b16 %v315
    %v1111 = vunpack.c.h.b16 %v315
    %v1112 = vunpack.c.l.b16 %v316
    %v1113 = vunpack.c.h.b16 %v316
    %v1114 = vunpack.c.l.b16 %v317
    %v1115 = vunpack.c.h.b16 %v317
    %v1116 = vunpack.c.l.b16 %v318
    %v1117 = vunpack.c.h.b16 %v318
    %v1118 = vunpack.c.l.b16 %v319
    %v1119 = vunpack.c.h.b16 %v319
    %v1120 = vunpack.c.l.b16 %v320
    %v1121 = vunpack.c.h.b16 %v320
    %v1122 = vunpack.c.l.b16 %v321
    %v1123 = vunpack.c.h.b16 %v321
    %v1124 = vunpack.c.l.b16 %v322
    %v1125 = vunpack.c.h.b16 %v322
    %v1126 = vunpack.c.l.b16 %v323
    %v1127 = vunpack.c.h.b16 %v323
    %v1128 = vunpack.c.l.b16 %v324
    %v1129 = vunpack.c.h.b16 %v324
    %v1130 = vunpack.c.l.b16 %v325
    %v1131 = vunpack.c.h.b16 %v325
    %v1132 = vunpack.c.l.b16 %v326
    %v1133 = vunpack.c.h.b16 %v326
    %v1134 = vunpack.c.l.b16 %v327
    %v1135 = vunpack.c.h.b16 %v327
    %v1136 = vunpack.c.l.b16 %v328
    %v1137 = vunpack.c.h.b16 %v328
    %v1138 = vunpack.c.l.b16 %v329
    %v1139 = vunpack.c.h.b16 %v329
    %v1140 = vunpack.c.l.b16 %v330
    %v1141 = vunpack.c.h.b16 %v330
    %v1142 = vunpack.c.l.b16 %v331
    %v1143 = vunpack.c.h.b16 %v331
    %v1144 = vunpack.c.l.b16 %v332
    %v1145 = vunpack.c.h.b16 %v332
    %v1146 = vunpack.c.l.b16 %v333
    %v1147 = vunpack.c.h.b16 %v333
    %v1148 = vunpack.c.l.b16 %v334
    %v1149 = vunpack.c.h.b16 %v334
    %v1150 = vunpack.c.l.b16 %v335
    %v1151 = vunpack.c.h.b16 %v335
    %v1152 = vunpack.c.l.b16 %v336
    %v1153 = vunpack.c.h.b16 %v336
    %v1154 = vunpack.c.l.b16 %v337
    %v1155 = vunpack.c.h.b16 %v337
    %v1156 = vunpack.c.l.b16 %v338
    %v1157 = vunpack.c.h.b16 %v338
    %v1158 = vunpack.c.l.b16 %v339
    %v1159 = vunpack.c.h.b16 %v339
    %v1160 = vunpack.c.l.b16 %v340
    %v1161 = vunpack.c.h.b16 %v340
    %v1162 = vunpack.c.l.b16 %v341
    %v1163 = vunpack.c.h.b16 %v341
    %v1164 = vunpack.c.l.b16 %v342
    %v1165 = vunpack.c.h.b16 %v342
    %v1166 = vunpack.c.l.b16 %v343
    %v1167 = vunpack.c.h.b16 %v343
    %v1168 = vunpack.c.l.b16 %v344
    %v1169 = vunpack.c.h.b16 %v344
    %v1170 = vunpack.c.l.b16 %v345
    %v1171 = vunpack.c.h.b16 %v345
    %v1172 = vunpack.c.l.b16 %v346
    %v1173 = vunpack.c.h.b16 %v346
    %v1174 = vunpack.c.l.b16 %v347
    %v1175 = vunpack.c.h.b16 %v347
    %v1176 = vunpack.c.l.b16 %v348
    %v1177 = vunpack.c.h.b16 %v348
    %v1178 = vunpack.c.l.b16 %v349
    %v1179 = vunpack.c.h.b16 %v349
    %v1180 = vunpack.c.l.b16 %v350
    %v1181 = vunpack.c.h.b16 %v350
    %v1182 = vunpack.c.l.b16 %v351
    %v1183 = vunpack.c.h.b16 %v351
    %v1184 = vunpack.c.l.b16 %v352
    %v1185 = vunpack.c.h.b16 %v352
    %v1186 = vunpack.c.l.b16 %v353
    %v1187 = vunpack.c.h.b16 %v353
    %v1188 = vunpack.c.l.b16 %v354
    %v1189 = vunpack.c.h.b16 %v354
    %v1190 = vunpack.c.l.b16 %v355
    %v1191 = vunpack.c.h.b16 %v355
    %v1192 = vunpack.c.l.b16 %v356
    %v1193 = vunpack.c.h.b16 %v356
    %v1194 = vunpack.c.l.b16 %v357
    %v1195 = vunpack.c.h.b16 %v357
    %v1196 = vunpack.c.l.b16 %v358
    %v1197 = vunpack.c.h.b16 %v358
    %v1198 = vunpack.c.l.b16 %v359
    %v1199 = vunpack.c.h.b16 %v359
    %v1200 = vunpack.c.l.b16 %v360
    %v1201 = vunpack.c.h.b16 %v360
    %v1202 = vunpack.c.l.b16 %v361
    %v1203 = vunpack.c.h.b16 %v361
    %v1204 = vunpack.c.l.b16 %v362
    %v1205 = vunpack.c.h.b16 %v362
    %v1206 = vunpack.c.l.b16 %v363
    %v1207 = vunpack.c.h.b16 %v363
    %v1208 = vunpack.c.l.b16 %v364
    %v1209 = vunpack.c.h.b16 %v364
    %v1210 = vunpack.c.l.b16 %v365
    %v1211 = vunpack.c.h.b16 %v365
    %v1212 = vunpack.c.l.b16 %v366
    %v1213 = vunpack.c.h.b16 %v366
    %v1214 = vunpack.c.l.b16 %v367
    %v1215 = vunpack.c.h.b16 %v367
    %v1216 = vunpack.c.l.b16 %v368
    %v1217 = vunpack.c.h.b16 %v368
    %v1218 = vunpack.c.l.b16 %v369
    %v1219 = vunpack.c.h.b16 %v369
    %v1220 = vunpack.c.l.b16 %v370
    %v1221 = vunpack.c.h.b16 %v370
    %v1222 = vunpack.c.l.b16 %v371
    %v1223 = vunpack.c.h.b16 %v371
    %v1224 = vunpack.c.l.b16 %v372
    %v1225 = vunpack.c.h.b16 %v372
    %v1226 = vunpack.c.l.b16 %v373
    %v1227 = vunpack.c.h.b16 %v373
    %v1228 = vunpack.c.l.b16 %v374
    %v1229 = vunpack.c.h.b16 %v374
    %v1230 = vunpack.c.l.b16 %v375
    %v1231 = vunpack.c.h.b16 %v375
    %v1232 = vunpack.c.l.b16 %v376
    %v1233 = vunpack.c.h.b16 %v376
    %v1234 = vunpack.c.l.b16 %v377
    %v1235 = vunpack.c.h.b16 %v377
    %v1236 = vunpack.c.l.b16 %v378
    %v1237 = vunpack.c.h.b16 %v378
    %v1238 = vunpack.c.l.b16 %v379
    %v1239 = vunpack.c.h.b16 %v379
    %v1240 = vunpack.c.l.b16 %v380
    %v1241 = vunpack.c.h.b16 %v380
    %v1242 = vunpack.c.l.b16 %v381
    %v1243 = vunpack.c.h.b16 %v381
    %v1244 = vunpack.c.l.b16 %v382
    %v1245 = vunpack.c.h.b16 %v382
    %v1246 = vunpack.c.l.b16 %v383
    %v1247 = vunpack.c.h.b16 %v383
    %v1248 = vunpack.c.l.b16 %v384
    %v1249 = vunpack.c.h.b16 %v384
    %v1250 = vunpack.c.l.b16 %v385
    %v1251 = vunpack.c.h.b16 %v385
    %v1252 = vunpack.c.l.b16 %v386
    %v1253 = vunpack.c.h.b16 %v386
    %v1254 = vunpack.c.l.b16 %v387
    %v1255 = vunpack.c.h.b16 %v387
    %v1256 = vunpack.c.l.b16 %v388
    %v1257 = vunpack.c.h.b16 %v388
    %v1258 = vunpack.c.l.b16 %v389
    %v1259 = vunpack.c.h.b16 %v389
    %v1260 = vunpack.c.l.b16 %v390
    %v1261 = vunpack.c.h.b16 %v390
    %v1262 = vunpack.c.l.b16 %v391
    %v1263 = vunpack.c.h.b16 %v391
    %v1264 = vunpack.c.l.b16 %v392
    %v1265 = vunpack.c.h.b16 %v392
    %v1266 = vunpack.c.l.b16 %v393
    %v1267 = vunpack.c.h.b16 %v393
    %v1268 = vunpack.c.l.b16 %v394
    %v1269 = vunpack.c.h.b16 %v394
    %v1270 = vunpack.c.l.b16 %v395
    %v1271 = vunpack.c.h.b16 %v395
    %v1272 = vunpack.c.l.b16 %v396
    %v1273 = vunpack.c.h.b16 %v396
    %v1274 = vunpack.c.l.b16 %v397
    %v1275 = vunpack.c.h.b16 %v397
    %v1276 = vunpack.c.l.b16 %v398
    %v1277 = vunpack.c.h.b16 %v398
    %v1278 = vunpack.c.l.b16 %v399
    %v1279 = vunpack.c.h.b16 %v399
    %v1280 = vunpack.c.l.b16 %v400
    %v1281 = vunpack.c.h.b16 %v400
    %v1282 = vunpack.c.l.b16 %v401
    %v1283 = vunpack.c.h.b16 %v401
    %v1284 = vunpack.c.l.b16 %v402
    %v1285 = vunpack.c.h.b16 %v402
    %v1286 = vunpack.c.l.b16 %v403
    %v1287 = vunpack.c.h.b16 %v403
    %v1288 = vunpack.c.l.b16 %v404
    %v1289 = vunpack.c.h.b16 %v404
    %v1290 = vunpack.c.l.b16 %v405
    %v1291 = vunpack.c.h.b16 %v405
    %v1292 = vunpack.c.l.b16 %v406
    %v1293 = vunpack.c.h.b16 %v406
    %v1294 = vunpack.c.l.b16 %v407
    %v1295 = vunpack.c.h.b16 %v407
    %v1296 = vunpack.c.l.b16 %v408
    %v1297 = vunpack.c.h.b16 %v408
    %v1298 = vunpack.c.l.b16 %v409
    %v1299 = vunpack.c.h.b16 %v409
    %v1300 = vunpack.c.l.b16 %v410
    %v1301 = vunpack.c.h.b16 %v410
    %v1302 = vunpack.c.l.b16 %v411
    %v1303 = vunpack.c.h.b16 %v411
    %v1304 = vunpack.c.l.b16 %v412
    %v1305 = vunpack.c.h.b16 %v412
    %v1306 = vunpack.c.l.b16 %v413
    %v1307 = vunpack.c.h.b16 %v413
    %v1308 = vunpack.c.l.b16 %v414
    %v1309 = vunpack.c.h.b16 %v414
    %v1310 = vunpack.c.l.b16 %v415
    %v1311 = vunpack.c.h.b16 %v415
    %v1312 = vunpack.c.l.b16 %v416
    %v1313 = vunpack.c.h.b16 %v416
    %v1314 = vunpack.c.l.b16 %v417
    %v1315 = vunpack.c.h.b16 %v417
    %v1316 = vunpack.c.l.b16 %v418
    %v1317 = vunpack.c.h.b16 %v418
    %v1318 = vunpack.c.l.b16 %v419
    %v1319 = vunpack.c.h.b16 %v419
    %v1320 = vunpack.c.l.b16 %v420
    %v1321 = vunpack.c.h.b16 %v420
    %v1322 = vunpack.c.l.b16 %v421
    %v1323 = vunpack.c.h.b16 %v421
    %v1324 = vunpack.c.l.b16 %v422
    %v1325 = vunpack.c.h.b16 %v422
    %v1326 = vunpack.c.l.b16 %v423
    %v1327 = vunpack.c.h.b16 %v423
    %v1328 = vunpack.c.l.b16 %v424
    %v1329 = vunpack.c.h.b16 %v424
    %v1330 = vunpack.c.l.b16 %v425
    %v1331 = vunpack.c.h.b16 %v425
    %v1332 = vunpack.c.l.b16 %v426
    %v1333 = vunpack.c.h.b16 %v426
    %v1334 = vunpack.c.l.b16 %v427
    %v1335 = vunpack.c.h.b16 %v427
    %v1336 = vunpack.c.l.b16 %v428
    %v1337 = vunpack.c.h.b16 %v428
    %v1338 = vunpack.c.l.b16 %v429
    %v1339 = vunpack.c.h.b16 %v429
    %v1340 = vunpack.c.l.b16 %v430
    %v1341 = vunpack.c.h.b16 %v430
    %v1342 = vunpack.c.l.b16 %v431
    %v1343 = vunpack.c.h.b16 %v431
    %v1344 = vunpack.c.l.b16 %v432
    %v1345 = vunpack.c.h.b16 %v432
    %v1346 = vunpack.c.l.b16 %v433
    %v1347 = vunpack.c.h.b16 %v433
    %v1348 = vunpack.c.l.b16 %v434
    %v1349 = vunpack.c.h.b16 %v434
    %v1350 = vunpack.c.l.b16 %v435
    %v1351 = vunpack.c.h.b16 %v435
    %v1352 = vunpack.c.l.b16 %v436
    %v1353 = vunpack.c.h.b16 %v436
    %v1354 = vpack.c.b16 %v784, %v778
    %v1355 = vpack.c.b16 %v785, %v779
    %v1356 = vpack.c.b16 %v786, %v780
    %v1357 = vpack.c.b16 %v787, %v781
    %v1358 = vpack.c.b16 %v788, %v782
    %v1359 = vpack.c.b16 %v789, %v783
    %v1360 = vpack.c.b16 %v796, %v790
    %v1361 = vpack.c.b16 %v797, %v791
    %v1362 = vpack.c.b16 %v798, %v792
    %v1363 = vpack.c.b16 %v799, %v793
    %v1364 = vpack.c.b16 %v800, %v794
    %v1365 = vpack.c.b16 %v801, %v795
    %v1366 = vpack.c.b16 %v808, %v802
    %v1367 = vpack.c.b16 %v809, %v803
    %v1368 = vpack.c.b16 %v810, %v804
    %v1369 = vpack.c.b16 %v811, %v805
    %v1370 = vpack.c.b16 %v812, %v806
    %v1371 = vpack.c.b16 %v813, %v807
    %v1372 = vpack.c.b16 %v820, %v814
    %v1373 = vpack.c.b16 %v821, %v815
    %v1374 = vpack.c.b16 %v822, %v816
    %v1375 = vpack.c.b16 %v823, %v817
    %v1376 = vpack.c.b16 %v824, %v818
    %v1377 = vpack.c.b16 %v825, %v819
    %v1378 = vpack.c.b16 %v832, %v826
    %v1379 = vpack.c.b16 %v833, %v827
    %v1380 = vpack.c.b16 %v834, %v828
    %v1381 = vpack.c.b16 %v835, %v829
    %v1382 = vpack.c.b16 %v836, %v830
    %v1383 = vpack.c.b16 %v837, %v831
    %v1384 = vpack.c.b16 %v844, %v838
    %v1385 = vpack.c.b16 %v845, %v839
    %v1386 = vpack.c.b16 %v846, %v840
    %v1387 = vpack.c.b16 %v847, %v841
    %v1388 = vpack.c.b16 %v848, %v842
    %v1389 = vpack.c.b16 %v849, %v843
    %v1390 = vpack.c.b16 %v856, %v850
    %v1391 = vpack.c.b16 %v857, %v851
    %v1392 = vpack.c.b16 %v858, %v852
    %v1393 = vpack.c.b16 %v859, %v853
    %v1394 = vpack.c.b16 %v860, %v854
    %v1395 = vpack.c.b16 %v861, %v855
    %v1396 = vpack.c.b16 %v868, %v862
    %v1397 = vpack.c.b16 %v869, %v863
    %v1398 = vpack.c.b16 %v870, %v864
    %v1399 = vpack.c.b16 %v871, %v865
    %v1400 = vpack.c.b16 %v872, %v866
    %v1401 = vpack.c.b16 %v873, %v867
    %v1402 = vpack.c.b16 %v880, %v874
    %v1403 = vpack.c.b16 %v881, %v875
    %v1404 = vpack.c.b16 %v882, %v876
    %v1405 = vpack.c.b16 %v883, %v877
    %v1406 = vpack.c.b16 %v884, %v878
    %v1407 = vpack.c.b16 %v885, %v879
    %v1408 = vpack.c.b16 %v892, %v886
    %v1409 = vpack.c.b16 %v893, %v887
    %v1410 = vpack.c.b16 %v894, %v888
    %v1411 = vpack.c.b16 %v895, %v889
    %v1412 = vpack.c.b16 %v896, %v890
    %v1413 = vpack.c.b16 %v897, %v891
    %v1414 = vpack.c.b16 %v904, %v898
    %v1415 = vpack.c.b16 %v905, %v899
    %v1416 = vpack.c.b16 %v906, %v900
    %v1417 = vpack.c.b16 %v907, %v901
    %v1418 = vpack.c.b16 %v908, %v902
    %v1419 = vpack.c.b16 %v909, %v903
    %v1420 = vpack.c.b16 %v916, %v910
    %v1421 = vpack.c.b16 %v917, %v911
    %v1422 = vpack.c.b16 %v918, %v912
    %v1423 = vpack.c.b16 %v919, %v913
    %v1424 = vpack.c.b16 %v920, %v914
    %v1425 = vpack.c.b16 %v921, %v915
    %v1426 = vpack.c.b16 %v928, %v922
    %v1427 = vpack.c.b16 %v929, %v923
    %v1428 = vpack.c.b16 %v930, %v924
    %v1429 = vpack.c.b16 %v931, %v925
    %v1430 = vpack.c.b16 %v932, %v926
    %v1431 = vpack.c.b16 %v933, %v927
    %v1432 = vpack.c.b16 %v940, %v934
    %v1433 = vpack.c.b16 %v941, %v935
    %v1434 = vpack.c.b16 %v942, %v936
    %v1435 = vpack.c.b16 %v943, %v937
    %v1436 = vpack.c.b16 %v944, %v938
    %v1437 = vpack.c.b16 %v945, %v939
    %v1438 = vpack.c.b16 %v952, %v946
    %v1439 = vpack.c.b16 %v953, %v947
    %v1440 = vpack.c.b16 %v954, %v948
    %v1441 = vpack.c.b16 %v955, %v949
    %v1442 = vpack.c.b16 %v956, %v950
    %v1443 = vpack.c.b16 %v957, %v951
    %v1444 = vpack.c.b16 %v964, %v958
    %v1445 = vpack.c.b16 %v965, %v959
    %v1446 = vpack.c.b16 %v966, %v960
    %v1447 = vpack.c.b16 %v967, %v961
    %v1448 = vpack.c.b16 %v968, %v962
    %v1449 = vpack.c.b16 %v969, %v963
    %v1450 = vpack.c.b16 %v976, %v970
    %v1451 = vpack.c.b16 %v977, %v971
    %v1452 = vpack.c.b16 %v978, %v972
    %v1453 = vpack.c.b16 %v979, %v973
    %v1454 = vpack.c.b16 %v980, %v974
    %v1455 = vpack.c.b16 %v981, %v975
    %v1456 = vpack.c.b16 %v988, %v982
    %v1457 = vpack.c.b16 %v989, %v983
    %v1458 = vpack.c.b16 %v990, %v984
    %v1459 = vpack.c.b16 %v991, %v985
    %v1460 = vpack.c.b16 %v992, %v986
    %v1461 = vpack.c.b16 %v993, %v987
    %v1462 = vpack.c.b16 %v1000, %v994
    %v1463 = vpack.c.b16 %v1001, %v995
    %v1464 = vpack.c.b16 %v1002, %v996
    %v1465 = vpack.c.b16 %v1003, %v997
    %v1466 = vpack.c.b16 %v1004, %v998
    %v1467 = vpack.c.b16 %v1005, %v999
    %v1468 = vpack.c.b16 %v1012, %v1006
    %v1469 = vpack.c.b16 %v1013, %v1007
    %v1470 = vpack.c.b16 %v1014, %v1008
    %v1471 = vpack.c.b16 %v1015, %v1009
    %v1472 = vpack.c.b16 %v1016, %v1010
    %v1473 = vpack.c.b16 %v1017, %v1011
    %v1474 = vpack.c.b16 %v1024, %v1018
    %v1475 = vpack.c.b16 %v1025, %v1019
    %v1476 = vpack.c.b16 %v1026, %v1020
    %v1477 = vpack.c.b16 %v1027, %v1021
    %v1478 = vpack.c.b16 %v1028, %v1022
    %v1479 = vpack.c.b16 %v1029, %v1023
    %v1480 = vpack.c.b16 %v1036, %v1030
    %v1481 = vpack.c.b16 %v1037, %v1031
    %v1482 = vpack.c.b16 %v1038, %v1032
    %v1483 = vpack.c.b16 %v1039, %v1033
    %v1484 = vpack.c.b16 %v1040, %v1034
    %v1485 = vpack.c.b16 %v1041, %v1035
    %v1486 = vpack.c.b16 %v1048, %v1042
    %v1487 = vpack.c.b16 %v1049, %v1043
    %v1488 = vpack.c.b16 %v1050, %v1044
    %v1489 = vpack.c.b16 %v1051, %v1045
    %v1490 = vpack.c.b16 %v1052, %v1046
    %v1491 = vpack.c.b16 %v1053, %v1047
    %v1492 = vpack.c.b16 %v1060, %v1054
    %v1493 = vpack.c.b16 %v1061, %v1055
    %v1494 = vpack.c.b16 %v1062, %v1056
    %v1495 = vpack.c.b16 %v1063, %v1057
    %v1496 = vpack.c.b16 %v1064, %v1058
    %v1497 = vpack.c.b16 %v1065, %v1059
    %v1498 = vpack.c.b16 %v1072, %v1066
    %v1499 = vpack.c.b16 %v1073, %v1067
    %v1500 = vpack.c.b16 %v1074, %v1068
    %v1501 = vpack.c.b16 %v1075, %v1069
    %v1502 = vpack.c.b16 %v1076, %v1070
    %v1503 = vpack.c.b16 %v1077, %v1071
    %v1504 = vpack.c.b16 %v1084, %v1078
    %v1505 = vpack.c.b16 %v1085, %v1079
    %v1506 = vpack.c.b16 %v1086, %v1080
    %v1507 = vpack.c.b16 %v1087, %v1081
    %v1508 = vpack.c.b16 %v1088, %v1082
    %v1509 = vpack.c.b16 %v1089, %v1083
    %v1510 = vpack.c.b16 %v1096, %v1090
    %v1511 = vpack.c.b16 %v1097, %v1091
    %v1512 = vpack.c.b16 %v1098, %v1092
    %v1513 = vpack.c.b16 %v1099, %v1093
    %v1514 = vpack.c.b16 %v1100, %v1094
    %v1515 = vpack.c.b16 %v1101, %v1095
    %v1516 = vpack.c.b16 %v1108, %v1102
    %v1517 = vpack.c.b16 %v1109, %v1103
    %v1518 = vpack.c.b16 %v1110, %v1104
    %v1519 = vpack.c.b16 %v1111, %v1105
    %v1520 = vpack.c.b16 %v1112, %v1106
    %v1521 = vpack.c.b16 %v1113, %v1107
    %v1522 = vpack.c.b16 %v1120, %v1114
    %v1523 = vpack.c.b16 %v1121, %v1115
    %v1524 = vpack.c.b16 %v1122, %v1116
    %v1525 = vpack.c.b16 %v1123, %v1117
    %v1526 = vpack.c.b16 %v1124, %v1118
    %v1527 = vpack.c.b16 %v1125, %v1119
    %v1528 = vpack.c.b16 %v1132, %v1126
    %v1529 = vpack.c.b16 %v1133, %v1127
    %v1530 = vpack.c.b16 %v1134, %v1128
    %v1531 = vpack.c.b16 %v1135, %v1129
    %v1532 = vpack.c.b16 %v1136, %v1130
    %v1533 = vpack.c.b16 %v1137, %v1131
    %v1534 = vpack.c.b16 %v1144, %v1138
    %v1535 = vpack.c.b16 %v1145, %v1139
    %v1536 = vpack.c.b16 %v1146, %v1140
    %v1537 = vpack.c.b16 %v1147, %v1141
    %v1538 = vpack.c.b16 %v1148, %v1142
    %v1539 = vpack.c.b16 %v1149, %v1143
    %v1540 = vpack.c.b16 %v1156, %v1150
    %v1541 = vpack.c.b16 %v1157, %v1151
    %v1542 = vpack.c.b16 %v1158, %v1152
    %v1543 = vpack.c.b16 %v1159, %v1153
    %v1544 = vpack.c.b16 %v1160, %v1154
    %v1545 = vpack.c.b16 %v1161, %v1155
    %v1546 = vpack.c.b16 %v1168, %v1162
    %v1547 = vpack.c.b16 %v1169, %v1163
    %v1548 = vpack.c.b16 %v1170, %v1164
    %v1549 = vpack.c.b16 %v1171, %v1165
    %v1550 = vpack.c.b16 %v1172, %v1166
    %v1551 = vpack.c.b16 %v1173, %v1167
    %v1552 = vpack.c.b16 %v1180, %v1174
    %v1553 = vpack.c.b16 %v1181, %v1175
    %v1554 = vpack.c.b16 %v1182, %v1176
    %v1555 = vpack.c.b16 %v1183, %v1177
    %v1556 = vpack.c.b16 %v1184, %v1178
    %v1557 = vpack.c.b16 %v1185, %v1179
    %v1558 = vpack.c.b16 %v1192, %v1186
    %v1559 = vpack.c.b16 %v1193, %v1187
    %v1560 = vpack.c.b16 %v1194, %v1188
    %v1561 = vpack.c.b16 %v1195, %v1189
    %v1562 = vpack.c.b16 %v1196, %v1190
    %v1563 = vpack.c.b16 %v1197, %v1191
    %v1564 = vpack.c.b16 %v1204, %v1198
    %v1565 = vpack.c.b16 %v1205, %v1199
    %v1566 = vpack.c.b16 %v1206, %v1200
    %v1567 = vpack.c.b16 %v1207, %v1201
    %v1568 = vpack.c.b16 %v1208, %v1202
    %v1569 = vpack.c.b16 %v1209, %v1203
    %v1570 = vpack.c.b16 %v1216, %v1210
    %v1571 = vpack.c.b16 %v1217, %v1211
    %v1572 = vpack.c.b16 %v1218, %v1212
    %v1573 = vpack.c.b16 %v1219, %v1213
    %v1574 = vpack.c.b16 %v1220, %v1214
    %v1575 = vpack.c.b16 %v1221, %v1215
    %v1576 = vpack.c.b16 %v1228, %v1222
    %v1577 = vpack.c.b16 %v1229, %v1223
    %v1578 = vpack.c.b16 %v1230, %v1224
    %v1579 = vpack.c.b16 %v1231, %v1225
    %v1580 = vpack.c.b16 %v1232, %v1226
    %v1581 = vpack.c.b16 %v1233, %v1227
    %v1582 = vpack.c.b16 %v1240, %v1234
    %v1583 = vpack.c.b16 %v1241, %v1235
    %v1584 = vpack.c.b16 %v1242, %v1236
    %v1585 = vpack.c.b16 %v1243, %v1237
    %v1586 = vpack.c.b16 %v1244, %v1238
    %v1587 = vpack.c.b16 %v1245, %v1239
    %v1588 = vpack.c.b16 %v1252, %v1246
    %v1589 = vpack.c.b16 %v1253, %v1247
    %v1590 = vpack.c.b16 %v1254, %v1248
    %v1591 = vpack.c.b16 %v1255, %v1249
    %v1592 = vpack.c.b16 %v1256, %v1250
    %v1593 = vpack.c.b16 %v1257, %v1251
    %v1594 = vpack.c.b16 %v1264, %v1258
    %v1595 = vpack.c.b16 %v1265, %v1259
    %v1596 = vpack.c.b16 %v1266, %v1260
    %v1597 = vpack.c.b16 %v1267, %v1261
    %v1598 = vpack.c.b16 %v1268, %v1262
    %v1599 = vpack.c.b16 %v1269, %v1263
    %v1600 = vpack.c.b16 %v1276, %v1270
    %v1601 = vpack.c.b16 %v1277, %v1271
    %v1602 = vpack.c.b16 %v1278, %v1272
    %v1603 = vpack.c.b16 %v1279, %v1273
    %v1604 = vpack.c.b16 %v1280, %v1274
    %v1605 = vpack.c.b16 %v1281, %v1275
    %v1606 = vpack.c.b16 %v1288, %v1282
    %v1607 = vpack.c.b16 %v1289, %v1283
    %v1608 = vpack.c.b16 %v1290, %v1284
    %v1609 = vpack.c.b16 %v1291, %v1285
    %v1610 = vpack.c.b16 %v1292, %v1286
    %v1611 = vpack.c.b16 %v1293, %v1287
    %v1612 = vpack.c.b16 %v1300, %v1294
    %v1613 = vpack.c.b16 %v1301, %v1295
    %v1614 = vpack.c.b16 %v1302, %v1296
    %v1615 = vpack.c.b16 %v1303, %v1297
    %v1616 = vpack.c.b16 %v1304, %v1298
    %v1617 = vpack.c.b16 %v1305, %v1299
    %v1618 = vpack.c.b16 %v1312, %v1306
    %v1619 = vpack.c.b16 %v1313, %v1307
    %v1620 = vpack.c.b16 %v1314, %v1308
    %v1621 = vpack.c.b16 %v1315, %v1309
    %v1622 = vpack.c.b16 %v1316, %v1310
    %v1623 = vpack.c.b16 %v1317, %v1311
    %v1624 = vpack.c.b16 %v1324, %v1318
    %v1625 = vpack.c.b16 %v1325, %v1319
    %v1626 = vpack.c.b16 %v1326, %v1320
    %v1627 = vpack.c.b16 %v1327, %v1321
    %v1628 = vpack.c.b16 %v1328, %v1322
    %v1629 = vpack.c.b16 %v1329, %v1323
    %v1630 = vpack.c.b16 %v1336, %v1330
    %v1631 = vpack.c.b16 %v1337, %v1331
    %v1632 = vpack.c.b16 %v1338, %v1332
    %v1633 = vpack.c.b16 %v1339, %v1333
    %v1634 = vpack.c.b16 %v1340, %v1334
    %v1635 = vpack.c.b16 %v1341, %v1335
    %v1636 = vpack.c.b16 %v1348, %v1342
    %v1637 = vpack.c.b16 %v1349, %v1343
    %v1638 = vpack.c.b16 %v1350, %v1344
    %v1639 = vpack.c.b16 %v1351, %v1345
    %v1640 = vpack.c.b16 %v1352, %v1346
    %v1641 = vpack.c.b16 %v1353, %v1347
    %1930 = vmatprep.subr.bf16.mxu0 %v1355
    %1931 = vmatpush1.bf16.msra.mxu0 %v1354
    %1932 = vmatprep.subr.bf16.mxu0 %v1361
    %1933 = vmatpush1.bf16.msra.mxu0 %v1360
    %1934 = vmatprep.subr.bf16.mxu0 %v1367
    %1935 = vmatpush1.bf16.msra.mxu0 %v1366
    %1936 = vmatprep.subr.bf16.mxu0 %v1373
    %1937 = vmatpush1.bf16.msra.mxu0 %v1372
    %1938 = vmatprep.subr.bf16.mxu0 %v1379
    %1939 = vmatpush1.bf16.msra.mxu0 %v1378
    %1940 = vmatprep.subr.bf16.mxu0 %v1385
    %1941 = vmatpush1.bf16.msra.mxu0 %v1384
    %1942 = vmatprep.subr.bf16.mxu0 %v1391
    %1943 = vmatpush1.bf16.msra.mxu0 %v1390
    %1944 = vmatprep.subr.bf16.mxu0 %v1397
    %1945 = vmatpush1.bf16.msra.mxu0 %v1396
    %1946 = vmatprep.subr.bf16.mxu0 %v1403
    %1947 = vmatpush1.bf16.msra.mxu0 %v1402
    %1948 = vmatprep.subr.bf16.mxu0 %v1409
    %1949 = vmatpush1.bf16.msra.mxu0 %v1408
    %1950 = vmatprep.subr.bf16.mxu0 %v1415
    %1951 = vmatpush1.bf16.msra.mxu0 %v1414
    %1952 = vmatprep.subr.bf16.mxu0 %v1421
    %1953 = vmatpush1.bf16.msra.mxu0 %v1420
    %1954 = vmatprep.subr.bf16.mxu0 %v1427
    %1955 = vmatpush1.bf16.msra.mxu0 %v1426
    %1956 = vmatprep.subr.bf16.mxu0 %v1433
    %1957 = vmatpush1.bf16.msra.mxu0 %v1432
    %1958 = vmatprep.subr.bf16.mxu0 %v1439
    %1959 = vmatpush1.bf16.msra.mxu0 %v1438
    %1960 = vmatprep.subr.bf16.mxu0 %v1445
    %1961 = vmatpush1.bf16.msra.mxu0 %v1444
    %1962 = vmatprep.mubr.bf16.mxu0 %v479
    %1963 = vmatmul.mubr.bf16.gmra.mrb[0].mxu0 %v478
    %v1964 = vpop.f32.mrb[0].mxu0
    %v1965 = vadd.f32 %v442, %v1964
    %v1966 = vpop.f32.mrb[0].mxu0
    %v1967 = vadd.f32 %v446, %v1966
    %v1968 = vpop.f32.mrb[0].mxu0
    %v1969 = vpop.f32.mrb[0].mxu0
    %1970 = vdwg.mxu0
    %1971 = vmatprep.subr.bf16.mxu0 %v1451
    %1972 = vmatpush1.bf16.msra.mxu0 %v1450
    %1973 = vmatprep.subr.bf16.mxu0 %v1457
    %1974 = vmatpush1.bf16.msra.mxu0 %v1456
    %1975 = vmatprep.subr.bf16.mxu0 %v1463
    %1976 = vmatpush1.bf16.msra.mxu0 %v1462
    %1977 = vmatprep.subr.bf16.mxu0 %v1469
    %1978 = vmatpush1.bf16.msra.mxu0 %v1468
    %1979 = vmatprep.subr.bf16.mxu0 %v1475
    %1980 = vmatpush1.bf16.msra.mxu0 %v1474
    %1981 = vmatprep.subr.bf16.mxu0 %v1481
    %1982 = vmatpush1.bf16.msra.mxu0 %v1480
    %1983 = vmatprep.subr.bf16.mxu0 %v1487
    %1984 = vmatpush1.bf16.msra.mxu0 %v1486
    %1985 = vmatprep.subr.bf16.mxu0 %v1493
    %1986 = vmatpush1.bf16.msra.mxu0 %v1492
    %1987 = vmatprep.subr.bf16.mxu0 %v1499
    %1988 = vmatpush1.bf16.msra.mxu0 %v1498
    %1989 = vmatprep.subr.bf16.mxu0 %v1505
    %1990 = vmatpush1.bf16.msra.mxu0 %v1504
    %1991 = vmatprep.subr.bf16.mxu0 %v1511
    %1992 = vmatpush1.bf16.msra.mxu0 %v1510
    %1993 = vmatprep.subr.bf16.mxu0 %v1517
    %1994 = vmatpush1.bf16.msra.mxu0 %v1516
    %1995 = vmatprep.subr.bf16.mxu0 %v1523
    %1996 = vmatpush1.bf16.msra.mxu0 %v1522
    %1997 = vmatprep.subr.bf16.mxu0 %v1529
    %1998 = vmatpush1.bf16.msra.mxu0 %v1528
    %1999 = vmatprep.subr.bf16.mxu0 %v1535
    %2000 = vmatpush1.bf16.msra.mxu0 %v1534
    %2001 = vmatprep.subr.bf16.mxu0 %v1541
    %2002 = vmatpush1.bf16.msra.mxu0 %v1540
    %2003 = vmatprep.mubr.bf16.mxu0 %v481
    %2004 = vmatmul.mubr.bf16.gmra.mrb[0].mxu0 %v480
    %v2005 = vpop.f32.mrb[0].mxu0
    %v2006 = vadd.f32 %v1965, %v2005
    %v2007 = vpop.f32.mrb[0].mxu0
    %v2008 = vadd.f32 %v1967, %v2007
    %v2009 = vpop.f32.mrb[0].mxu0
    %v2010 = vpop.f32.mrb[0].mxu0
    %2011 = vdwg.mxu0
    %2012 = vmatprep.subr.bf16.mxu0 %v1547
    %2013 = vmatpush1.bf16.msra.mxu0 %v1546
    %2014 = vmatprep.subr.bf16.mxu0 %v1553
    %2015 = vmatpush1.bf16.msra.mxu0 %v1552
    %2016 = vmatprep.subr.bf16.mxu0 %v1559
    %2017 = vmatpush1.bf16.msra.mxu0 %v1558
    %2018 = vmatprep.subr.bf16.mxu0 %v1565
    %2019 = vmatpush1.bf16.msra.mxu0 %v1564
    %2020 = vmatprep.subr.bf16.mxu0 %v1571
    %2021 = vmatpush1.bf16.msra.mxu0 %v1570
    %2022 = vmatprep.subr.bf16.mxu0 %v1577
    %2023 = vmatpush1.bf16.msra.mxu0 %v1576
    %2024 = vmatprep.subr.bf16.mxu0 %v1583
    %2025 = vmatpush1.bf16.msra.mxu0 %v1582
    %2026 = vmatprep.subr.bf16.mxu0 %v1589
    %2027 = vmatpush1.bf16.msra.mxu0 %v1588
    %2028 = vmatprep.subr.bf16.mxu0 %v1595
    %2029 = vmatpush1.bf16.msra.mxu0 %v1594
    %2030 = vmatprep.subr.bf16.mxu0 %v1601
    %2031 = vmatpush1.bf16.msra.mxu0 %v1600
    %2032 = vmatprep.subr.bf16.mxu0 %v1607
    %2033 = vmatpush1.bf16.msra.mxu0 %v1606
    %2034 = vmatprep.subr.bf16.mxu0 %v1613
    %2035 = vmatpush1.bf16.msra.mxu0 %v1612
    %2036 = vmatprep.subr.bf16.mxu0 %v1619
    %2037 = vmatpush1.bf16.msra.mxu0 %v1618
    %2038 = vmatprep.subr.bf16.mxu0 %v1625
    %2039 = vmatpush1.bf16.msra.mxu0 %v1624
    %2040 = vmatprep.subr.bf16.mxu0 %v1631
    %2041 = vmatpush1.bf16.msra.mxu0 %v1630
    %2042 = vmatprep.subr.bf16.mxu0 %v1637
    %2043 = vmatpush1.bf16.msra.mxu0 %v1636
    %2044 = vmatprep.mubr.bf16.mxu0 %v483
    %2045 = vmatmul.mubr.bf16.gmra.mrb[0].mxu0 %v482
    %v2046 = vpop.f32.mrb[0].mxu0
    %v2047 = vadd.f32 %v2006, %v2046
    %v2048 = vpop.f32.mrb[0].mxu0
    %v2049 = vadd.f32 %v2008, %v2048
    %v2050 = vpop.f32.mrb[0].mxu0
    %v2051 = vpop.f32.mrb[0].mxu0
    %2052 = vdwg.mxu0
    %2053 = vmatprep.subr.bf16.mxu0 %v1357
    %2054 = vmatpush1.bf16.msra.mxu0 %v1356
    %2055 = vmatprep.subr.bf16.mxu0 %v1363
    %2056 = vmatpush1.bf16.msra.mxu0 %v1362
    %2057 = vmatprep.subr.bf16.mxu0 %v1369
    %2058 = vmatpush1.bf16.msra.mxu0 %v1368
    %2059 = vmatprep.subr.bf16.mxu0 %v1375
    %2060 = vmatpush1.bf16.msra.mxu0 %v1374
    %2061 = vmatprep.subr.bf16.mxu0 %v1381
    %2062 = vmatpush1.bf16.msra.mxu0 %v1380
    %2063 = vmatprep.subr.bf16.mxu0 %v1387
    %2064 = vmatpush1.bf16.msra.mxu0 %v1386
    %2065 = vmatprep.subr.bf16.mxu0 %v1393
    %2066 = vmatpush1.bf16.msra.mxu0 %v1392
    %2067 = vmatprep.subr.bf16.mxu0 %v1399
    %2068 = vmatpush1.bf16.msra.mxu0 %v1398
    %2069 = vmatprep.subr.bf16.mxu0 %v1405
    %2070 = vmatpush1.bf16.msra.mxu0 %v1404
    %2071 = vmatprep.subr.bf16.mxu0 %v1411
    %2072 = vmatpush1.bf16.msra.mxu0 %v1410
    %2073 = vmatprep.subr.bf16.mxu0 %v1417
    %2074 = vmatpush1.bf16.msra.mxu0 %v1416
    %2075 = vmatprep.subr.bf16.mxu0 %v1423
    %2076 = vmatpush1.bf16.msra.mxu0 %v1422
    %2077 = vmatprep.subr.bf16.mxu0 %v1429
    %2078 = vmatpush1.bf16.msra.mxu0 %v1428
    %2079 = vmatprep.subr.bf16.mxu0 %v1435
    %2080 = vmatpush1.bf16.msra.mxu0 %v1434
    %2081 = vmatprep.subr.bf16.mxu0 %v1441
    %2082 = vmatpush1.bf16.msra.mxu0 %v1440
    %2083 = vmatprep.subr.bf16.mxu0 %v1447
    %2084 = vmatpush1.bf16.msra.mxu0 %v1446
    %2085 = vmatprep.mubr.bf16.mxu0 %v479
    %2086 = vmatmul.mubr.bf16.gmra.mrb[0].mxu0 %v478
    %v2087 = vpop.f32.mrb[0].mxu0
    %v2088 = vadd.f32 %v450, %v2087
    %v2089 = vpop.f32.mrb[0].mxu0
    %v2090 = vadd.f32 %v454, %v2089
    %v2091 = vpop.f32.mrb[0].mxu0
    %v2092 = vpop.f32.mrb[0].mxu0
    %2093 = vdwg.mxu0
    %2094 = vmatprep.subr.bf16.mxu0 %v1453
    %2095 = vmatpush1.bf16.msra.mxu0 %v1452
    %2096 = vmatprep.subr.bf16.mxu0 %v1459
    %2097 = vmatpush1.bf16.msra.mxu0 %v1458
    %2098 = vmatprep.subr.bf16.mxu0 %v1465
    %2099 = vmatpush1.bf16.msra.mxu0 %v1464
    %2100 = vmatprep.subr.bf16.mxu0 %v1471
    %2101 = vmatpush1.bf16.msra.mxu0 %v1470
    %2102 = vmatprep.subr.bf16.mxu0 %v1477
    %2103 = vmatpush1.bf16.msra.mxu0 %v1476
    %2104 = vmatprep.subr.bf16.mxu0 %v1483
    %2105 = vmatpush1.bf16.msra.mxu0 %v1482
    %2106 = vmatprep.subr.bf16.mxu0 %v1489
    %2107 = vmatpush1.bf16.msra.mxu0 %v1488
    %2108 = vmatprep.subr.bf16.mxu0 %v1495
    %2109 = vmatpush1.bf16.msra.mxu0 %v1494
    %2110 = vmatprep.subr.bf16.mxu0 %v1501
    %2111 = vmatpush1.bf16.msra.mxu0 %v1500
    %2112 = vmatprep.subr.bf16.mxu0 %v1507
    %2113 = vmatpush1.bf16.msra.mxu0 %v1506
    %2114 = vmatprep.subr.bf16.mxu0 %v1513
    %2115 = vmatpush1.bf16.msra.mxu0 %v1512
    %2116 = vmatprep.subr.bf16.mxu0 %v1519
    %2117 = vmatpush1.bf16.msra.mxu0 %v1518
    %2118 = vmatprep.subr.bf16.mxu0 %v1525
    %2119 = vmatpush1.bf16.msra.mxu0 %v1524
    %2120 = vmatprep.subr.bf16.mxu0 %v1531
    %2121 = vmatpush1.bf16.msra.mxu0 %v1530
    %2122 = vmatprep.subr.bf16.mxu0 %v1537
    %2123 = vmatpush1.bf16.msra.mxu0 %v1536
    %2124 = vmatprep.subr.bf16.mxu0 %v1543
    %2125 = vmatpush1.bf16.msra.mxu0 %v1542
    %2126 = vmatprep.mubr.bf16.mxu0 %v481
    %2127 = vmatmul.mubr.bf16.gmra.mrb[0].mxu0 %v480
    %v2128 = vpop.f32.mrb[0].mxu0
    %v2129 = vadd.f32 %v2088, %v2128
    %v2130 = vpop.f32.mrb[0].mxu0
    %v2131 = vadd.f32 %v2090, %v2130
    %v2132 = vpop.f32.mrb[0].mxu0
    %v2133 = vpop.f32.mrb[0].mxu0
    %2134 = vdwg.mxu0
    %2135 = vmatprep.subr.bf16.mxu0 %v1549
    %2136 = vmatpush1.bf16.msra.mxu0 %v1548
    %2137 = vmatprep.subr.bf16.mxu0 %v1555
    %2138 = vmatpush1.bf16.msra.mxu0 %v1554
    %2139 = vmatprep.subr.bf16.mxu0 %v1561
    %2140 = vmatpush1.bf16.msra.mxu0 %v1560
    %2141 = vmatprep.subr.bf16.mxu0 %v1567
    %2142 = vmatpush1.bf16.msra.mxu0 %v1566
    %2143 = vmatprep.subr.bf16.mxu0 %v1573
    %2144 = vmatpush1.bf16.msra.mxu0 %v1572
    %2145 = vmatprep.subr.bf16.mxu0 %v1579
    %2146 = vmatpush1.bf16.msra.mxu0 %v1578
    %2147 = vmatprep.subr.bf16.mxu0 %v1585
    %2148 = vmatpush1.bf16.msra.mxu0 %v1584
    %2149 = vmatprep.subr.bf16.mxu0 %v1591
    %2150 = vmatpush1.bf16.msra.mxu0 %v1590
    %2151 = vmatprep.subr.bf16.mxu0 %v1597
    %2152 = vmatpush1.bf16.msra.mxu0 %v1596
    %2153 = vmatprep.subr.bf16.mxu0 %v1603
    %2154 = vmatpush1.bf16.msra.mxu0 %v1602
    %2155 = vmatprep.subr.bf16.mxu0 %v1609
    %2156 = vmatpush1.bf16.msra.mxu0 %v1608
    %2157 = vmatprep.subr.bf16.mxu0 %v1615
    %2158 = vmatpush1.bf16.msra.mxu0 %v1614
    %2159 = vmatprep.subr.bf16.mxu0 %v1621
    %2160 = vmatpush1.bf16.msra.mxu0 %v1620
    %2161 = vmatprep.subr.bf16.mxu0 %v1627
    %2162 = vmatpush1.bf16.msra.mxu0 %v1626
    %2163 = vmatprep.subr.bf16.mxu0 %v1633
    %2164 = vmatpush1.bf16.msra.mxu0 %v1632
    %2165 = vmatprep.subr.bf16.mxu0 %v1639
    %2166 = vmatpush1.bf16.msra.mxu0 %v1638
    %2167 = vmatprep.mubr.bf16.mxu0 %v483
    %2168 = vmatmul.mubr.bf16.gmra.mrb[0].mxu0 %v482
    %v2169 = vpop.f32.mrb[0].mxu0
    %v2170 = vadd.f32 %v2129, %v2169
    %v2171 = vpop.f32.mrb[0].mxu0
    %v2172 = vadd.f32 %v2131, %v2171
    %v2173 = vpop.f32.mrb[0].mxu0
    %v2174 = vpop.f32.mrb[0].mxu0
    %2175 = vdwg.mxu0
    %2176 = vmatprep.subr.bf16.mxu0 %v1359
    %2177 = vmatpush1.bf16.msra.mxu0 %v1358
    %2178 = vmatprep.subr.bf16.mxu0 %v1365
    %2179 = vmatpush1.bf16.msra.mxu0 %v1364
    %2180 = vmatprep.subr.bf16.mxu0 %v1371
    %2181 = vmatpush1.bf16.msra.mxu0 %v1370
    %2182 = vmatprep.subr.bf16.mxu0 %v1377
    %2183 = vmatpush1.bf16.msra.mxu0 %v1376
    %2184 = vmatprep.subr.bf16.mxu0 %v1383
    %2185 = vmatpush1.bf16.msra.mxu0 %v1382
    %2186 = vmatprep.subr.bf16.mxu0 %v1389
    %2187 = vmatpush1.bf16.msra.mxu0 %v1388
    %2188 = vmatprep.subr.bf16.mxu0 %v1395
    %2189 = vmatpush1.bf16.msra.mxu0 %v1394
    %2190 = vmatprep.subr.bf16.mxu0 %v1401
    %2191 = vmatpush1.bf16.msra.mxu0 %v1400
    %2192 = vmatprep.subr.bf16.mxu0 %v1407
    %2193 = vmatpush1.bf16.msra.mxu0 %v1406
    %2194 = vmatprep.subr.bf16.mxu0 %v1413
    %2195 = vmatpush1.bf16.msra.mxu0 %v1412
    %2196 = vmatprep.subr.bf16.mxu0 %v1419
    %2197 = vmatpush1.bf16.msra.mxu0 %v1418
    %2198 = vmatprep.subr.bf16.mxu0 %v1425
    %2199 = vmatpush1.bf16.msra.mxu0 %v1424
    %2200 = vmatprep.subr.bf16.mxu0 %v1431
    %2201 = vmatpush1.bf16.msra.mxu0 %v1430
    %2202 = vmatprep.subr.bf16.mxu0 %v1437
    %2203 = vmatpush1.bf16.msra.mxu0 %v1436
    %2204 = vmatprep.subr.bf16.mxu0 %v1443
    %2205 = vmatpush1.bf16.msra.mxu0 %v1442
    %2206 = vmatprep.subr.bf16.mxu0 %v1449
    %2207 = vmatpush1.bf16.msra.mxu0 %v1448
    %2208 = vmatprep.mubr.bf16.mxu0 %v479
    %2209 = vmatmul.mubr.bf16.gmra.mrb[0].mxu0 %v478
    %v2210 = vpop.f32.mrb[0].mxu0
    %v2211 = vadd.f32 %v458, %v2210
    %v2212 = vpop.f32.mrb[0].mxu0
    %v2213 = vadd.f32 %v462, %v2212
    %v2214 = vpop.f32.mrb[0].mxu0
    %v2215 = vpop.f32.mrb[0].mxu0
    %2216 = vdwg.mxu0
    %2217 = vmatprep.subr.bf16.mxu0 %v1455
    %2218 = vmatpush1.bf16.msra.mxu0 %v1454
    %2219 = vmatprep.subr.bf16.mxu0 %v1461
    %2220 = vmatpush1.bf16.msra.mxu0 %v1460
    %2221 = vmatprep.subr.bf16.mxu0 %v1467
    %2222 = vmatpush1.bf16.msra.mxu0 %v1466
    %2223 = vmatprep.subr.bf16.mxu0 %v1473
    %2224 = vmatpush1.bf16.msra.mxu0 %v1472
    %2225 = vmatprep.subr.bf16.mxu0 %v1479
    %2226 = vmatpush1.bf16.msra.mxu0 %v1478
    %2227 = vmatprep.subr.bf16.mxu0 %v1485
    %2228 = vmatpush1.bf16.msra.mxu0 %v1484
    %2229 = vmatprep.subr.bf16.mxu0 %v1491
    %2230 = vmatpush1.bf16.msra.mxu0 %v1490
    %2231 = vmatprep.subr.bf16.mxu0 %v1497
    %2232 = vmatpush1.bf16.msra.mxu0 %v1496
    %2233 = vmatprep.subr.bf16.mxu0 %v1503
    %2234 = vmatpush1.bf16.msra.mxu0 %v1502
    %2235 = vmatprep.subr.bf16.mxu0 %v1509
    %2236 = vmatpush1.bf16.msra.mxu0 %v1508
    %2237 = vmatprep.subr.bf16.mxu0 %v1515
    %2238 = vmatpush1.bf16.msra.mxu0 %v1514
    %2239 = vmatprep.subr.bf16.mxu0 %v1521
    %2240 = vmatpush1.bf16.msra.mxu0 %v1520
    %2241 = vmatprep.subr.bf16.mxu0 %v1527
    %2242 = vmatpush1.bf16.msra.mxu0 %v1526
    %2243 = vmatprep.subr.bf16.mxu0 %v1533
    %2244 = vmatpush1.bf16.msra.mxu0 %v1532
    %2245 = vmatprep.subr.bf16.mxu0 %v1539
    %2246 = vmatpush1.bf16.msra.mxu0 %v1538
    %2247 = vmatprep.subr.bf16.mxu0 %v1545
    %2248 = vmatpush1.bf16.msra.mxu0 %v1544
    %2249 = vmatprep.mubr.bf16.mxu0 %v481
    %2250 = vmatmul.mubr.bf16.gmra.mrb[0].mxu0 %v480
    %v2251 = vpop.f32.mrb[0].mxu0
    %v2252 = vadd.f32 %v2211, %v2251
    %v2253 = vpop.f32.mrb[0].mxu0
    %v2254 = vadd.f32 %v2213, %v2253
    %v2255 = vpop.f32.mrb[0].mxu0
    %v2256 = vpop.f32.mrb[0].mxu0
    %2257 = vdwg.mxu0
    %2258 = vmatprep.subr.bf16.mxu0 %v1551
    %2259 = vmatpush1.bf16.msra.mxu0 %v1550
    %2260 = vmatprep.subr.bf16.mxu0 %v1557
    %2261 = vmatpush1.bf16.msra.mxu0 %v1556
    %2262 = vmatprep.subr.bf16.mxu0 %v1563
    %2263 = vmatpush1.bf16.msra.mxu0 %v1562
    %2264 = vmatprep.subr.bf16.mxu0 %v1569
    %2265 = vmatpush1.bf16.msra.mxu0 %v1568
    %2266 = vmatprep.subr.bf16.mxu0 %v1575
    %2267 = vmatpush1.bf16.msra.mxu0 %v1574
    %2268 = vmatprep.subr.bf16.mxu0 %v1581
    %2269 = vmatpush1.bf16.msra.mxu0 %v1580
    %2270 = vmatprep.subr.bf16.mxu0 %v1587
    %2271 = vmatpush1.bf16.msra.mxu0 %v1586
    %2272 = vmatprep.subr.bf16.mxu0 %v1593
    %2273 = vmatpush1.bf16.msra.mxu0 %v1592
    %2274 = vmatprep.subr.bf16.mxu0 %v1599
    %2275 = vmatpush1.bf16.msra.mxu0 %v1598
    %2276 = vmatprep.subr.bf16.mxu0 %v1605
    %2277 = vmatpush1.bf16.msra.mxu0 %v1604
    %2278 = vmatprep.subr.bf16.mxu0 %v1611
    %2279 = vmatpush1.bf16.msra.mxu0 %v1610
    %2280 = vmatprep.subr.bf16.mxu0 %v1617
    %2281 = vmatpush1.bf16.msra.mxu0 %v1616
    %2282 = vmatprep.subr.bf16.mxu0 %v1623
    %2283 = vmatpush1.bf16.msra.mxu0 %v1622
    %2284 = vmatprep.subr.bf16.mxu0 %v1629
    %2285 = vmatpush1.bf16.msra.mxu0 %v1628
    %2286 = vmatprep.subr.bf16.mxu0 %v1635
    %2287 = vmatpush1.bf16.msra.mxu0 %v1634
    %2288 = vmatprep.subr.bf16.mxu0 %v1641
    %2289 = vmatpush1.bf16.msra.mxu0 %v1640
    %2290 = vmatprep.mubr.bf16.mxu0 %v483
    %2291 = vmatmul.mubr.bf16.gmra.mrb[0].mxu0 %v482
    %v2292 = vpop.f32.mrb[0].mxu0
    %v2293 = vadd.f32 %v2252, %v2292
    %v2294 = vpop.f32.mrb[0].mxu0
    %v2295 = vadd.f32 %v2254, %v2294
    %v2296 = vpop.f32.mrb[0].mxu0
    %v2297 = vpop.f32.mrb[0].mxu0
    %2298 = vdwg.mxu0
    %v2299 = vmax.f32 %v2047, 0.0
    %v2300 = vmax.f32 %v2049, 0.0
    %v2301 = vmax.f32 %v2170, 0.0
    %v2302 = vmax.f32 %v2172, 0.0
    %v2303 = vmax.f32 %v2293, 0.0
    %v2304 = vmax.f32 %v2295, 0.0
    %v2305 = vpack.c.bf16 %v2299, %v2299
    %v2306 = vpack.c.bf16 %v2300, %v2300
    %v2307 = vpack.c.bf16 %v2301, %v2301
    %v2308 = vpack.c.bf16 %v2302, %v2302
    %v2309 = vpack.c.bf16 %v2303, %v2303
    %v2310 = vpack.c.bf16 %v2304, %v2304
    %v2311 = vld [vmem:[#allocation8] sm:$0xff]
    %v2312 = vld [vmem:[#allocation8 + $0x8] sm:$0xff]
    %v2313 = vld [vmem:[#allocation8 + $0x10] sm:$0xf]
    %v2314 = vld [vmem:[#allocation8 + $0x14] sm:$0xff]
    %v2315 = vld [vmem:[#allocation8 + $0x1c] sm:$0xff]
    %v2316 = vld [vmem:[#allocation8 + $0x24] sm:$0xf]
    %v2317 = vld [vmem:[#allocation8 + $0x28] sm:$0xff]
    %v2318 = vld [vmem:[#allocation8 + $0x30] sm:$0xff]
    %v2319 = vld [vmem:[#allocation8 + $0x38] sm:$0xf]
    %v2320 = vld [vmem:[#allocation8 + $0x3c] sm:$0xff]
    %v2321 = vld [vmem:[#allocation8 + $0x44] sm:$0xff]
    %v2322 = vld [vmem:[#allocation8 + $0x4c] sm:$0xf]
    %v2323 = vld [vmem:[#allocation8 + $0x50] sm:$0xff]
    %v2324 = vld [vmem:[#allocation8 + $0x58] sm:$0xff]
    %v2325 = vld [vmem:[#allocation8 + $0x60] sm:$0xf]
    %v2326 = vld [vmem:[#allocation8 + $0x64] sm:$0xff]
    %v2327 = vld [vmem:[#allocation8 + $0x6c] sm:$0xff]
    %v2328 = vld [vmem:[#allocation8 + $0x74] sm:$0xf]
    %v2329 = vld [vmem:[#allocation8 + $0x78] sm:$0xff]
    %v2330 = vld [vmem:[#allocation8 + $0x80] sm:$0xff]
    %v2331 = vld [vmem:[#allocation8 + $0x88] sm:$0xf]
    %v2332 = vld [vmem:[#allocation8 + $0x8c] sm:$0xff]
    %v2333 = vld [vmem:[#allocation8 + $0x94] sm:$0xff]
    %v2334 = vld [vmem:[#allocation8 + $0x9c] sm:$0xf]
    %v2335 = vld [vmem:[#allocation8 + $0xa0] sm:$0xff]
    %v2336 = vld [vmem:[#allocation8 + $0xa8] sm:$0xff]
    %v2337 = vld [vmem:[#allocation8 + $0xb0] sm:$0xf]
    %v2338 = vld [vmem:[#allocation8 + $0xb4] sm:$0xff]
    %v2339 = vld [vmem:[#allocation8 + $0xbc] sm:$0xff]
    %v2340 = vld [vmem:[#allocation8 + $0xc4] sm:$0xf]
    %v2341 = vld [vmem:[#allocation8 + $0xc8] sm:$0xff]
    %v2342 = vld [vmem:[#allocation8 + $0xd0] sm:$0xff]
    %v2343 = vld [vmem:[#allocation8 + $0xd8] sm:$0xf]
    %v2344 = vld [vmem:[#allocation8 + $0xdc] sm:$0xff]
    %v2345 = vld [vmem:[#allocation8 + $0xe4] sm:$0xff]
    %v2346 = vld [vmem:[#allocation8 + $0xec] sm:$0xf]
    %v2347 = vld [vmem:[#allocation8 + $0xf0] sm:$0xff]
    %v2348 = vld [vmem:[#allocation8 + $0xf8] sm:$0xff]
    %v2349 = vld [vmem:[#allocation8 + $0x100] sm:$0xf]
    %v2350 = vld [vmem:[#allocation8 + $0x104] sm:$0xff]
    %v2351 = vld [vmem:[#allocation8 + $0x10c] sm:$0xff]
    %v2352 = vld [vmem:[#allocation8 + $0x114] sm:$0xf]
    %v2353 = vld [vmem:[#allocation8 + $0x118] sm:$0xff]
    %v2354 = vld [vmem:[#allocation8 + $0x120] sm:$0xff]
    %v2355 = vld [vmem:[#allocation8 + $0x128] sm:$0xf]
    %v2356 = vld [vmem:[#allocation8 + $0x12c] sm:$0xff]
    %v2357 = vld [vmem:[#allocation8 + $0x134] sm:$0xff]
    %v2358 = vld [vmem:[#allocation8 + $0x13c] sm:$0xf]
    %v2359 = vld [vmem:[#allocation8 + $0x140] sm:$0xff]
    %v2360 = vld [vmem:[#allocation8 + $0x148] sm:$0xff]
    %v2361 = vld [vmem:[#allocation8 + $0x150] sm:$0xf]
    %v2362 = vld [vmem:[#allocation8 + $0x154] sm:$0xff]
    %v2363 = vld [vmem:[#allocation8 + $0x15c] sm:$0xff]
    %v2364 = vld [vmem:[#allocation8 + $0x164] sm:$0xf]
    %v2365 = vld [vmem:[#allocation8 + $0x168] sm:$0xff]
    %v2366 = vld [vmem:[#allocation8 + $0x170] sm:$0xff]
    %v2367 = vld [vmem:[#allocation8 + $0x178] sm:$0xf]
    %v2368 = vld [vmem:[#allocation8 + $0x17c] sm:$0xff]
    %v2369 = vld [vmem:[#allocation8 + $0x184] sm:$0xff]
    %v2370 = vld [vmem:[#allocation8 + $0x18c] sm:$0xf]
    %v2371 = vld [vmem:[#allocation8 + $0x190] sm:$0xff]
    %v2372 = vld [vmem:[#allocation8 + $0x198] sm:$0xff]
    %v2373 = vld [vmem:[#allocation8 + $0x1a0] sm:$0xf]
    %v2374 = vld [vmem:[#allocation8 + $0x1a4] sm:$0xff]
    %v2375 = vld [vmem:[#allocation8 + $0x1ac] sm:$0xff]
    %v2376 = vld [vmem:[#allocation8 + $0x1b4] sm:$0xf]
    %v2377 = vld [vmem:[#allocation8 + $0x1b8] sm:$0xff]
    %v2378 = vld [vmem:[#allocation8 + $0x1c0] sm:$0xff]
    %v2379 = vld [vmem:[#allocation8 + $0x1c8] sm:$0xf]
    %v2380 = vld [vmem:[#allocation8 + $0x1cc] sm:$0xff]
    %v2381 = vld [vmem:[#allocation8 + $0x1d4] sm:$0xff]
    %v2382 = vld [vmem:[#allocation8 + $0x1dc] sm:$0xf]
    %v2383 = vld [vmem:[#allocation8 + $0x1e0] sm:$0xff]
    %v2384 = vld [vmem:[#allocation8 + $0x1e8] sm:$0xff]
    %v2385 = vld [vmem:[#allocation8 + $0x1f0] sm:$0xf]
    %v2386 = vld [vmem:[#allocation8 + $0x1f4] sm:$0xff]
    %v2387 = vld [vmem:[#allocation8 + $0x1fc] sm:$0xff]
    %v2388 = vld [vmem:[#allocation8 + $0x204] sm:$0xf]
    %v2389 = vld [vmem:[#allocation8 + $0x208] sm:$0xff]
    %v2390 = vld [vmem:[#allocation8 + $0x210] sm:$0xff]
    %v2391 = vld [vmem:[#allocation8 + $0x218] sm:$0xf]
    %v2392 = vld [vmem:[#allocation8 + $0x21c] sm:$0xff]
    %v2393 = vld [vmem:[#allocation8 + $0x224] sm:$0xff]
    %v2394 = vld [vmem:[#allocation8 + $0x22c] sm:$0xf]
    %v2395 = vld [vmem:[#allocation8 + $0x230] sm:$0xff]
    %v2396 = vld [vmem:[#allocation8 + $0x238] sm:$0xff]
    %v2397 = vld [vmem:[#allocation8 + $0x240] sm:$0xf]
    %v2398 = vld [vmem:[#allocation8 + $0x244] sm:$0xff]
    %v2399 = vld [vmem:[#allocation8 + $0x24c] sm:$0xff]
    %v2400 = vld [vmem:[#allocation8 + $0x254] sm:$0xf]
    %v2401 = vld [vmem:[#allocation8 + $0x258] sm:$0xff]
    %v2402 = vld [vmem:[#allocation8 + $0x260] sm:$0xff]
    %v2403 = vld [vmem:[#allocation8 + $0x268] sm:$0xf]
    %v2404 = vld [vmem:[#allocation8 + $0x26c] sm:$0xff]
    %v2405 = vld [vmem:[#allocation8 + $0x274] sm:$0xff]
    %v2406 = vld [vmem:[#allocation8 + $0x27c] sm:$0xf]
    %v2407 = vld [vmem:[#allocation8 + $0x280] sm:$0xff]
    %v2408 = vld [vmem:[#allocation8 + $0x288] sm:$0xff]
    %v2409 = vld [vmem:[#allocation8 + $0x290] sm:$0xf]
    %v2410 = vld [vmem:[#allocation8 + $0x294] sm:$0xff]
    %v2411 = vld [vmem:[#allocation8 + $0x29c] sm:$0xff]
    %v2412 = vld [vmem:[#allocation8 + $0x2a4] sm:$0xf]
    %v2413 = vld [vmem:[#allocation8 + $0x2a8] sm:$0xff]
    %v2414 = vld [vmem:[#allocation8 + $0x2b0] sm:$0xff]
    %v2415 = vld [vmem:[#allocation8 + $0x2b8] sm:$0xf]
    %v2416 = vld [vmem:[#allocation8 + $0x2bc] sm:$0xff]
    %v2417 = vld [vmem:[#allocation8 + $0x2c4] sm:$0xff]
    %v2418 = vld [vmem:[#allocation8 + $0x2cc] sm:$0xf]
    %v2419 = vld [vmem:[#allocation8 + $0x2d0] sm:$0xff]
    %v2420 = vld [vmem:[#allocation8 + $0x2d8] sm:$0xff]
    %v2421 = vld [vmem:[#allocation8 + $0x2e0] sm:$0xf]
    %v2422 = vld [vmem:[#allocation8 + $0x2e4] sm:$0xff]
    %v2423 = vld [vmem:[#allocation8 + $0x2ec] sm:$0xff]
    %v2424 = vld [vmem:[#allocation8 + $0x2f4] sm:$0xf]
    %v2425 = vld [vmem:[#allocation8 + $0x2f8] sm:$0xff]
    %v2426 = vld [vmem:[#allocation8 + $0x300] sm:$0xff]
    %v2427 = vld [vmem:[#allocation8 + $0x308] sm:$0xf]
    %v2428 = vld [vmem:[#allocation8 + $0x30c] sm:$0xff]
    %v2429 = vld [vmem:[#allocation8 + $0x314] sm:$0xff]
    %v2430 = vld [vmem:[#allocation8 + $0x31c] sm:$0xf]
    %v2431 = vld [vmem:[#allocation8 + $0x320] sm:$0xff]
    %v2432 = vld [vmem:[#allocation8 + $0x328] sm:$0xff]
    %v2433 = vld [vmem:[#allocation8 + $0x330] sm:$0xf]
    %v2434 = vld [vmem:[#allocation8 + $0x334] sm:$0xff]
    %v2435 = vld [vmem:[#allocation8 + $0x33c] sm:$0xff]
    %v2436 = vld [vmem:[#allocation8 + $0x344] sm:$0xf]
    %v2437 = vld [vmem:[#allocation8 + $0x348] sm:$0xff]
    %v2438 = vld [vmem:[#allocation8 + $0x350] sm:$0xff]
    %v2439 = vld [vmem:[#allocation8 + $0x358] sm:$0xf]
    %v2440 = vld [vmem:[#allocation8 + $0x35c] sm:$0xff]
    %v2441 = vld [vmem:[#allocation8 + $0x364] sm:$0xff]
    %v2442 = vld [vmem:[#allocation8 + $0x36c] sm:$0xf]
    %v2443 = vld [vmem:[#allocation8 + $0x370] sm:$0xff]
    %v2444 = vld [vmem:[#allocation8 + $0x378] sm:$0xff]
    %v2445 = vld [vmem:[#allocation8 + $0x380] sm:$0xf]
    %v2446 = vld [vmem:[#allocation8 + $0x384] sm:$0xff]
    %v2447 = vld [vmem:[#allocation8 + $0x38c] sm:$0xff]
    %v2448 = vld [vmem:[#allocation8 + $0x394] sm:$0xf]
    %v2449 = vld [vmem:[#allocation8 + $0x398] sm:$0xff]
    %v2450 = vld [vmem:[#allocation8 + $0x3a0] sm:$0xff]
    %v2451 = vld [vmem:[#allocation8 + $0x3a8] sm:$0xf]
    %v2452 = vld [vmem:[#allocation8 + $0x3ac] sm:$0xff]
    %v2453 = vld [vmem:[#allocation8 + $0x3b4] sm:$0xff]
    %v2454 = vld [vmem:[#allocation8 + $0x3bc] sm:$0xf]
    %v2455 = vld [vmem:[#allocation8 + $0x3c0] sm:$0xff]
    %v2456 = vld [vmem:[#allocation8 + $0x3c8] sm:$0xff]
    %v2457 = vld [vmem:[#allocation8 + $0x3d0] sm:$0xf]
    %v2458 = vld [vmem:[#allocation8 + $0x3d4] sm:$0xff]
    %v2459 = vld [vmem:[#allocation8 + $0x3dc] sm:$0xff]
    %v2460 = vld [vmem:[#allocation8 + $0x3e4] sm:$0xf]
    %v2461 = vld [vmem:[#allocation8 + $0x3e8] sm:$0xff]
    %v2462 = vld [vmem:[#allocation8 + $0x3f0] sm:$0xff]
    %v2463 = vld [vmem:[#allocation8 + $0x3f8] sm:$0xf]
    %v2464 = vld [vmem:[#allocation8 + $0x3fc] sm:$0xff]
    %v2465 = vld [vmem:[#allocation8 + $0x404] sm:$0xff]
    %v2466 = vld [vmem:[#allocation8 + $0x40c] sm:$0xf]
    %v2467 = vld [vmem:[#allocation8 + $0x410] sm:$0xff]
    %v2468 = vld [vmem:[#allocation8 + $0x418] sm:$0xff]
    %v2469 = vld [vmem:[#allocation8 + $0x420] sm:$0xf]
    %v2470 = vld [vmem:[#allocation8 + $0x424] sm:$0xff]
    %v2471 = vld [vmem:[#allocation8 + $0x42c] sm:$0xff]
    %v2472 = vld [vmem:[#allocation8 + $0x434] sm:$0xf]
    %v2473 = vld [vmem:[#allocation8 + $0x438] sm:$0xff]
    %v2474 = vld [vmem:[#allocation8 + $0x440] sm:$0xff]
    %v2475 = vld [vmem:[#allocation8 + $0x448] sm:$0xf]
    %v2476 = vld [vmem:[#allocation8 + $0x44c] sm:$0xff]
    %v2477 = vld [vmem:[#allocation8 + $0x454] sm:$0xff]
    %v2478 = vld [vmem:[#allocation8 + $0x45c] sm:$0xf]
    %v2479 = vld [vmem:[#allocation8 + $0x460] sm:$0xff]
    %v2480 = vld [vmem:[#allocation8 + $0x468] sm:$0xff]
    %v2481 = vld [vmem:[#allocation8 + $0x470] sm:$0xf]
    %v2482 = vld [vmem:[#allocation8 + $0x474] sm:$0xff]
    %v2483 = vld [vmem:[#allocation8 + $0x47c] sm:$0xff]
    %v2484 = vld [vmem:[#allocation8 + $0x484] sm:$0xf]
    %v2485 = vld [vmem:[#allocation8 + $0x488] sm:$0xff]
    %v2486 = vld [vmem:[#allocation8 + $0x490] sm:$0xff]
    %v2487 = vld [vmem:[#allocation8 + $0x498] sm:$0xf]
    %v2488 = vld [vmem:[#allocation8 + $0x49c] sm:$0xff]
    %v2489 = vld [vmem:[#allocation8 + $0x4a4] sm:$0xff]
    %v2490 = vld [vmem:[#allocation8 + $0x4ac] sm:$0xf]
    %v2491 = vld [vmem:[#allocation8 + $0x4b0] sm:$0xff]
    %v2492 = vld [vmem:[#allocation8 + $0x4b8] sm:$0xff]
    %v2493 = vld [vmem:[#allocation8 + $0x4c0] sm:$0xf]
    %v2494 = vld [vmem:[#allocation8 + $0x4c4] sm:$0xff]
    %v2495 = vld [vmem:[#allocation8 + $0x4cc] sm:$0xff]
    %v2496 = vld [vmem:[#allocation8 + $0x4d4] sm:$0xf]
    %v2497 = vld [vmem:[#allocation8 + $0x4d8] sm:$0xff]
    %v2498 = vld [vmem:[#allocation8 + $0x4e0] sm:$0xff]
    %v2499 = vld [vmem:[#allocation8 + $0x4e8] sm:$0xf]
    %v2500 = vld [vmem:[#allocation8 + $0x4ec] sm:$0xff]
    %v2501 = vld [vmem:[#allocation8 + $0x4f4] sm:$0xff]
    %v2502 = vld [vmem:[#allocation8 + $0x4fc] sm:$0xf]
    %v2503 = vld [vmem:[#allocation8 + $0x500] sm:$0xff]
    %v2504 = vld [vmem:[#allocation8 + $0x508] sm:$0xff]
    %v2505 = vld [vmem:[#allocation8 + $0x510] sm:$0xf]
    %v2506 = vld [vmem:[#allocation8 + $0x514] sm:$0xff]
    %v2507 = vld [vmem:[#allocation8 + $0x51c] sm:$0xff]
    %v2508 = vld [vmem:[#allocation8 + $0x524] sm:$0xf]
    %v2509 = vld [vmem:[#allocation8 + $0x528] sm:$0xff]
    %v2510 = vld [vmem:[#allocation8 + $0x530] sm:$0xff]
    %v2511 = vld [vmem:[#allocation8 + $0x538] sm:$0xf]
    %v2512 = vld [vmem:[#allocation8 + $0x53c] sm:$0xff]
    %v2513 = vld [vmem:[#allocation8 + $0x544] sm:$0xff]
    %v2514 = vld [vmem:[#allocation8 + $0x54c] sm:$0xf]
    %v2515 = vld [vmem:[#allocation8 + $0x550] sm:$0xff]
    %v2516 = vld [vmem:[#allocation8 + $0x558] sm:$0xff]
    %v2517 = vld [vmem:[#allocation8 + $0x560] sm:$0xf]
    %v2518 = vld [vmem:[#allocation8 + $0x564] sm:$0xff]
    %v2519 = vld [vmem:[#allocation8 + $0x56c] sm:$0xff]
    %v2520 = vld [vmem:[#allocation8 + $0x574] sm:$0xf]
    %v2521 = vld [vmem:[#allocation8 + $0x578] sm:$0xff]
    %v2522 = vld [vmem:[#allocation8 + $0x580] sm:$0xff]
    %v2523 = vld [vmem:[#allocation8 + $0x588] sm:$0xf]
    %v2524 = vld [vmem:[#allocation8 + $0x58c] sm:$0xff]
    %v2525 = vld [vmem:[#allocation8 + $0x594] sm:$0xff]
    %v2526 = vld [vmem:[#allocation8 + $0x59c] sm:$0xf]
    %v2527 = vld [vmem:[#allocation8 + $0x5a0] sm:$0xff]
    %v2528 = vld [vmem:[#allocation8 + $0x5a8] sm:$0xff]
    %v2529 = vld [vmem:[#allocation8 + $0x5b0] sm:$0xf]
    %v2530 = vld [vmem:[#allocation8 + $0x5b4] sm:$0xff]
    %v2531 = vld [vmem:[#allocation8 + $0x5bc] sm:$0xff]
    %v2532 = vld [vmem:[#allocation8 + $0x5c4] sm:$0xf]
    %v2533 = vld [vmem:[#allocation8 + $0x5c8] sm:$0xff]
    %v2534 = vld [vmem:[#allocation8 + $0x5d0] sm:$0xff]
    %v2535 = vld [vmem:[#allocation8 + $0x5d8] sm:$0xf]
    %v2536 = vld [vmem:[#allocation8 + $0x5dc] sm:$0xff]
    %v2537 = vld [vmem:[#allocation8 + $0x5e4] sm:$0xff]
    %v2538 = vld [vmem:[#allocation8 + $0x5ec] sm:$0xf]
    %v2539 = vld [vmem:[#allocation8 + $0x5f0] sm:$0xff]
    %v2540 = vld [vmem:[#allocation8 + $0x5f8] sm:$0xff]
    %v2541 = vld [vmem:[#allocation8 + $0x600] sm:$0xf]
    %v2542 = vld [vmem:[#allocation8 + $0x604] sm:$0xff]
    %v2543 = vld [vmem:[#allocation8 + $0x60c] sm:$0xff]
    %v2544 = vld [vmem:[#allocation8 + $0x614] sm:$0xf]
    %v2545 = vld [vmem:[#allocation8 + $0x618] sm:$0xff]
    %v2546 = vld [vmem:[#allocation8 + $0x620] sm:$0xff]
    %v2547 = vld [vmem:[#allocation8 + $0x628] sm:$0xf]
    %v2548 = vld [vmem:[#allocation8 + $0x62c] sm:$0xff]
    %v2549 = vld [vmem:[#allocation8 + $0x634] sm:$0xff]
    %v2550 = vld [vmem:[#allocation8 + $0x63c] sm:$0xf]
    %v2551 = vld [vmem:[#allocation8 + $0x640] sm:$0xff]
    %v2552 = vld [vmem:[#allocation8 + $0x648] sm:$0xff]
    %v2553 = vld [vmem:[#allocation8 + $0x650] sm:$0xf]
    %v2554 = vld [vmem:[#allocation8 + $0x654] sm:$0xff]
    %v2555 = vld [vmem:[#allocation8 + $0x65c] sm:$0xff]
    %v2556 = vld [vmem:[#allocation8 + $0x664] sm:$0xf]
    %v2557 = vld [vmem:[#allocation8 + $0x668] sm:$0xff]
    %v2558 = vld [vmem:[#allocation8 + $0x670] sm:$0xff]
    %v2559 = vld [vmem:[#allocation8 + $0x678] sm:$0xf]
    %v2560 = vld [vmem:[#allocation8 + $0x67c] sm:$0xff]
    %v2561 = vld [vmem:[#allocation8 + $0x684] sm:$0xff]
    %v2562 = vld [vmem:[#allocation8 + $0x68c] sm:$0xf]
    %v2563 = vld [vmem:[#allocation8 + $0x690] sm:$0xff]
    %v2564 = vld [vmem:[#allocation8 + $0x698] sm:$0xff]
    %v2565 = vld [vmem:[#allocation8 + $0x6a0] sm:$0xf]
    %v2566 = vld [vmem:[#allocation8 + $0x6a4] sm:$0xff]
    %v2567 = vld [vmem:[#allocation8 + $0x6ac] sm:$0xff]
    %v2568 = vld [vmem:[#allocation8 + $0x6b4] sm:$0xf]
    %v2569 = vld [vmem:[#allocation8 + $0x6b8] sm:$0xff]
    %v2570 = vld [vmem:[#allocation8 + $0x6c0] sm:$0xff]
    %v2571 = vld [vmem:[#allocation8 + $0x6c8] sm:$0xf]
    %v2572 = vld [vmem:[#allocation8 + $0x6cc] sm:$0xff]
    %v2573 = vld [vmem:[#allocation8 + $0x6d4] sm:$0xff]
    %v2574 = vld [vmem:[#allocation8 + $0x6dc] sm:$0xf]
    %v2575 = vld [vmem:[#allocation8 + $0x6e0] sm:$0xff]
    %v2576 = vld [vmem:[#allocation8 + $0x6e8] sm:$0xff]
    %v2577 = vld [vmem:[#allocation8 + $0x6f0] sm:$0xf]
    %v2578 = vld [vmem:[#allocation8 + $0x6f4] sm:$0xff]
    %v2579 = vld [vmem:[#allocation8 + $0x6fc] sm:$0xff]
    %v2580 = vld [vmem:[#allocation8 + $0x704] sm:$0xf]
    %v2581 = vld [vmem:[#allocation8 + $0x708] sm:$0xff]
    %v2582 = vld [vmem:[#allocation8 + $0x710] sm:$0xff]
    %v2583 = vld [vmem:[#allocation8 + $0x718] sm:$0xf]
    %v2584 = vld [vmem:[#allocation8 + $0x71c] sm:$0xff]
    %v2585 = vld [vmem:[#allocation8 + $0x724] sm:$0xff]
    %v2586 = vld [vmem:[#allocation8 + $0x72c] sm:$0xf]
    %v2587 = vld [vmem:[#allocation8 + $0x730] sm:$0xff]
    %v2588 = vld [vmem:[#allocation8 + $0x738] sm:$0xff]
    %v2589 = vld [vmem:[#allocation8 + $0x740] sm:$0xf]
    %v2590 = vld [vmem:[#allocation8 + $0x744] sm:$0xff]
    %v2591 = vld [vmem:[#allocation8 + $0x74c] sm:$0xff]
    %v2592 = vld [vmem:[#allocation8 + $0x754] sm:$0xf]
    %v2593 = vld [vmem:[#allocation8 + $0x758] sm:$0xff]
    %v2594 = vld [vmem:[#allocation8 + $0x760] sm:$0xff]
    %v2595 = vld [vmem:[#allocation8 + $0x768] sm:$0xf]
    %v2596 = vld [vmem:[#allocation8 + $0x76c] sm:$0xff]
    %v2597 = vld [vmem:[#allocation8 + $0x774] sm:$0xff]
    %v2598 = vld [vmem:[#allocation8 + $0x77c] sm:$0xf]
    %v2599 = vld [vmem:[#allocation10] sm:$0x1f]
    %v2601 = vlaneseq
    %v2602 = vshrl.u32 %v2601, 7
    %v2603 = vsub.s32 0, %v2602
    %v2604 = vrot.slane %v2599, %v2603
    %v2605 = vlaneseq
    %v2606 = vshrl.u32 %v2605, 7
    %v2607 = vsub.s32 1, %v2606
    %v2608 = vrot.slane %v2599, %v2607
    %v2609 = vlaneseq
    %v2610 = vshrl.u32 %v2609, 7
    %v2611 = vsub.s32 2, %v2610
    %v2612 = vrot.slane %v2599, %v2611
    %v2613 = vlaneseq
    %v2614 = vshrl.u32 %v2613, 7
    %v2615 = vsub.s32 3, %v2614
    %v2616 = vrot.slane %v2599, %v2615
    %v2617 = vlaneseq
    %v2618 = vshrl.u32 %v2617, 7
    %v2619 = vsub.s32 4, %v2618
    %v2620 = vrot.slane %v2599, %v2619
    %v2914 = vunpack.c.l.b16 %v2311
    %v2915 = vunpack.c.h.b16 %v2311
    %v2916 = vunpack.c.l.b16 %v2312
    %v2917 = vunpack.c.h.b16 %v2312
    %v2918 = vunpack.c.l.b16 %v2313
    %v2919 = vunpack.c.l.b16 %v2314
    %v2920 = vunpack.c.h.b16 %v2314
    %v2921 = vunpack.c.l.b16 %v2315
    %v2922 = vunpack.c.h.b16 %v2315
    %v2923 = vunpack.c.l.b16 %v2316
    %v2924 = vunpack.c.l.b16 %v2317
    %v2925 = vunpack.c.h.b16 %v2317
    %v2926 = vunpack.c.l.b16 %v2318
    %v2927 = vunpack.c.h.b16 %v2318
    %v2928 = vunpack.c.l.b16 %v2319
    %v2929 = vunpack.c.l.b16 %v2320
    %v2930 = vunpack.c.h.b16 %v2320
    %v2931 = vunpack.c.l.b16 %v2321
    %v2932 = vunpack.c.h.b16 %v2321
    %v2933 = vunpack.c.l.b16 %v2322
    %v2934 = vunpack.c.l.b16 %v2323
    %v2935 = vunpack.c.h.b16 %v2323
    %v2936 = vunpack.c.l.b16 %v2324
    %v2937 = vunpack.c.h.b16 %v2324
    %v2938 = vunpack.c.l.b16 %v2325
    %v2939 = vunpack.c.l.b16 %v2326
    %v2940 = vunpack.c.h.b16 %v2326
    %v2941 = vunpack.c.l.b16 %v2327
    %v2942 = vunpack.c.h.b16 %v2327
    %v2943 = vunpack.c.l.b16 %v2328
    %v2944 = vunpack.c.l.b16 %v2329
    %v2945 = vunpack.c.h.b16 %v2329
    %v2946 = vunpack.c.l.b16 %v2330
    %v2947 = vunpack.c.h.b16 %v2330
    %v2948 = vunpack.c.l.b16 %v2331
    %v2949 = vunpack.c.l.b16 %v2332
    %v2950 = vunpack.c.h.b16 %v2332
    %v2951 = vunpack.c.l.b16 %v2333
    %v2952 = vunpack.c.h.b16 %v2333
    %v2953 = vunpack.c.l.b16 %v2334
    %v2954 = vunpack.c.l.b16 %v2335
    %v2955 = vunpack.c.h.b16 %v2335
    %v2956 = vunpack.c.l.b16 %v2336
    %v2957 = vunpack.c.h.b16 %v2336
    %v2958 = vunpack.c.l.b16 %v2337
    %v2959 = vunpack.c.l.b16 %v2338
    %v2960 = vunpack.c.h.b16 %v2338
    %v2961 = vunpack.c.l.b16 %v2339
    %v2962 = vunpack.c.h.b16 %v2339
    %v2963 = vunpack.c.l.b16 %v2340
    %v2964 = vunpack.c.l.b16 %v2341
    %v2965 = vunpack.c.h.b16 %v2341
    %v2966 = vunpack.c.l.b16 %v2342
    %v2967 = vunpack.c.h.b16 %v2342
    %v2968 = vunpack.c.l.b16 %v2343
    %v2969 = vunpack.c.l.b16 %v2344
    %v2970 = vunpack.c.h.b16 %v2344
    %v2971 = vunpack.c.l.b16 %v2345
    %v2972 = vunpack.c.h.b16 %v2345
    %v2973 = vunpack.c.l.b16 %v2346
    %v2974 = vunpack.c.l.b16 %v2347
    %v2975 = vunpack.c.h.b16 %v2347
    %v2976 = vunpack.c.l.b16 %v2348
    %v2977 = vunpack.c.h.b16 %v2348
    %v2978 = vunpack.c.l.b16 %v2349
    %v2979 = vunpack.c.l.b16 %v2350
    %v2980 = vunpack.c.h.b16 %v2350
    %v2981 = vunpack.c.l.b16 %v2351
    %v2982 = vunpack.c.h.b16 %v2351
    %v2983 = vunpack.c.l.b16 %v2352
    %v2984 = vunpack.c.l.b16 %v2353
    %v2985 = vunpack.c.h.b16 %v2353
    %v2986 = vunpack.c.l.b16 %v2354
    %v2987 = vunpack.c.h.b16 %v2354
    %v2988 = vunpack.c.l.b16 %v2355
    %v2989 = vunpack.c.l.b16 %v2356
    %v2990 = vunpack.c.h.b16 %v2356
    %v2991 = vunpack.c.l.b16 %v2357
    %v2992 = vunpack.c.h.b16 %v2357
    %v2993 = vunpack.c.l.b16 %v2358
    %v2994 = vunpack.c.l.b16 %v2359
    %v2995 = vunpack.c.h.b16 %v2359
    %v2996 = vunpack.c.l.b16 %v2360
    %v2997 = vunpack.c.h.b16 %v2360
    %v2998 = vunpack.c.l.b16 %v2361
    %v2999 = vunpack.c.l.b16 %v2362
    %v3000 = vunpack.c.h.b16 %v2362
    %v3001 = vunpack.c.l.b16 %v2363
    %v3002 = vunpack.c.h.b16 %v2363
    %v3003 = vunpack.c.l.b16 %v2364
    %v3004 = vunpack.c.l.b16 %v2365
    %v3005 = vunpack.c.h.b16 %v2365
    %v3006 = vunpack.c.l.b16 %v2366
    %v3007 = vunpack.c.h.b16 %v2366
    %v3008 = vunpack.c.l.b16 %v2367
    %v3009 = vunpack.c.l.b16 %v2368
    %v3010 = vunpack.c.h.b16 %v2368
    %v3011 = vunpack.c.l.b16 %v2369
    %v3012 = vunpack.c.h.b16 %v2369
    %v3013 = vunpack.c.l.b16 %v2370
    %v3014 = vunpack.c.l.b16 %v2371
    %v3015 = vunpack.c.h.b16 %v2371
    %v3016 = vunpack.c.l.b16 %v2372
    %v3017 = vunpack.c.h.b16 %v2372
    %v3018 = vunpack.c.l.b16 %v2373
    %v3019 = vunpack.c.l.b16 %v2374
    %v3020 = vunpack.c.h.b16 %v2374
    %v3021 = vunpack.c.l.b16 %v2375
    %v3022 = vunpack.c.h.b16 %v2375
    %v3023 = vunpack.c.l.b16 %v2376
    %v3024 = vunpack.c.l.b16 %v2377
    %v3025 = vunpack.c.h.b16 %v2377
    %v3026 = vunpack.c.l.b16 %v2378
    %v3027 = vunpack.c.h.b16 %v2378
    %v3028 = vunpack.c.l.b16 %v2379
    %v3029 = vunpack.c.l.b16 %v2380
    %v3030 = vunpack.c.h.b16 %v2380
    %v3031 = vunpack.c.l.b16 %v2381
    %v3032 = vunpack.c.h.b16 %v2381
    %v3033 = vunpack.c.l.b16 %v2382
    %v3034 = vunpack.c.l.b16 %v2383
    %v3035 = vunpack.c.h.b16 %v2383
    %v3036 = vunpack.c.l.b16 %v2384
    %v3037 = vunpack.c.h.b16 %v2384
    %v3038 = vunpack.c.l.b16 %v2385
    %v3039 = vunpack.c.l.b16 %v2386
    %v3040 = vunpack.c.h.b16 %v2386
    %v3041 = vunpack.c.l.b16 %v2387
    %v3042 = vunpack.c.h.b16 %v2387
    %v3043 = vunpack.c.l.b16 %v2388
    %v3044 = vunpack.c.l.b16 %v2389
    %v3045 = vunpack.c.h.b16 %v2389
    %v3046 = vunpack.c.l.b16 %v2390
    %v3047 = vunpack.c.h.b16 %v2390
    %v3048 = vunpack.c.l.b16 %v2391
    %v3049 = vunpack.c.l.b16 %v2392
    %v3050 = vunpack.c.h.b16 %v2392
    %v3051 = vunpack.c.l.b16 %v2393
    %v3052 = vunpack.c.h.b16 %v2393
    %v3053 = vunpack.c.l.b16 %v2394
    %v3054 = vunpack.c.l.b16 %v2395
    %v3055 = vunpack.c.h.b16 %v2395
    %v3056 = vunpack.c.l.b16 %v2396
    %v3057 = vunpack.c.h.b16 %v2396
    %v3058 = vunpack.c.l.b16 %v2397
    %v3059 = vunpack.c.l.b16 %v2398
    %v3060 = vunpack.c.h.b16 %v2398
    %v3061 = vunpack.c.l.b16 %v2399
    %v3062 = vunpack.c.h.b16 %v2399
    %v3063 = vunpack.c.l.b16 %v2400
    %v3064 = vunpack.c.l.b16 %v2401
    %v3065 = vunpack.c.h.b16 %v2401
    %v3066 = vunpack.c.l.b16 %v2402
    %v3067 = vunpack.c.h.b16 %v2402
    %v3068 = vunpack.c.l.b16 %v2403
    %v3069 = vunpack.c.l.b16 %v2404
    %v3070 = vunpack.c.h.b16 %v2404
    %v3071 = vunpack.c.l.b16 %v2405
    %v3072 = vunpack.c.h.b16 %v2405
    %v3073 = vunpack.c.l.b16 %v2406
    %v3074 = vunpack.c.l.b16 %v2407
    %v3075 = vunpack.c.h.b16 %v2407
    %v3076 = vunpack.c.l.b16 %v2408
    %v3077 = vunpack.c.h.b16 %v2408
    %v3078 = vunpack.c.l.b16 %v2409
    %v3079 = vunpack.c.l.b16 %v2410
    %v3080 = vunpack.c.h.b16 %v2410
    %v3081 = vunpack.c.l.b16 %v2411
    %v3082 = vunpack.c.h.b16 %v2411
    %v3083 = vunpack.c.l.b16 %v2412
    %v3084 = vunpack.c.l.b16 %v2413
    %v3085 = vunpack.c.h.b16 %v2413
    %v3086 = vunpack.c.l.b16 %v2414
    %v3087 = vunpack.c.h.b16 %v2414
    %v3088 = vunpack.c.l.b16 %v2415
    %v3089 = vunpack.c.l.b16 %v2416
    %v3090 = vunpack.c.h.b16 %v2416
    %v3091 = vunpack.c.l.b16 %v2417
    %v3092 = vunpack.c.h.b16 %v2417
    %v3093 = vunpack.c.l.b16 %v2418
    %v3094 = vunpack.c.l.b16 %v2419
    %v3095 = vunpack.c.h.b16 %v2419
    %v3096 = vunpack.c.l.b16 %v2420
    %v3097 = vunpack.c.h.b16 %v2420
    %v3098 = vunpack.c.l.b16 %v2421
    %v3099 = vunpack.c.l.b16 %v2422
    %v3100 = vunpack.c.h.b16 %v2422
    %v3101 = vunpack.c.l.b16 %v2423
    %v3102 = vunpack.c.h.b16 %v2423
    %v3103 = vunpack.c.l.b16 %v2424
    %v3104 = vunpack.c.l.b16 %v2425
    %v3105 = vunpack.c.h.b16 %v2425
    %v3106 = vunpack.c.l.b16 %v2426
    %v3107 = vunpack.c.h.b16 %v2426
    %v3108 = vunpack.c.l.b16 %v2427
    %v3109 = vunpack.c.l.b16 %v2428
    %v3110 = vunpack.c.h.b16 %v2428
    %v3111 = vunpack.c.l.b16 %v2429
    %v3112 = vunpack.c.h.b16 %v2429
    %v3113 = vunpack.c.l.b16 %v2430
    %v3114 = vunpack.c.l.b16 %v2431
    %v3115 = vunpack.c.h.b16 %v2431
    %v3116 = vunpack.c.l.b16 %v2432
    %v3117 = vunpack.c.h.b16 %v2432
    %v3118 = vunpack.c.l.b16 %v2433
    %v3119 = vunpack.c.l.b16 %v2434
    %v3120 = vunpack.c.h.b16 %v2434
    %v3121 = vunpack.c.l.b16 %v2435
    %v3122 = vunpack.c.h.b16 %v2435
    %v3123 = vunpack.c.l.b16 %v2436
    %v3124 = vunpack.c.l.b16 %v2437
    %v3125 = vunpack.c.h.b16 %v2437
    %v3126 = vunpack.c.l.b16 %v2438
    %v3127 = vunpack.c.h.b16 %v2438
    %v3128 = vunpack.c.l.b16 %v2439
    %v3129 = vunpack.c.l.b16 %v2440
    %v3130 = vunpack.c.h.b16 %v2440
    %v3131 = vunpack.c.l.b16 %v2441
    %v3132 = vunpack.c.h.b16 %v2441
    %v3133 = vunpack.c.l.b16 %v2442
    %v3134 = vunpack.c.l.b16 %v2443
    %v3135 = vunpack.c.h.b16 %v2443
    %v3136 = vunpack.c.l.b16 %v2444
    %v3137 = vunpack.c.h.b16 %v2444
    %v3138 = vunpack.c.l.b16 %v2445
    %v3139 = vunpack.c.l.b16 %v2446
    %v3140 = vunpack.c.h.b16 %v2446
    %v3141 = vunpack.c.l.b16 %v2447
    %v3142 = vunpack.c.h.b16 %v2447
    %v3143 = vunpack.c.l.b16 %v2448
    %v3144 = vunpack.c.l.b16 %v2449
    %v3145 = vunpack.c.h.b16 %v2449
    %v3146 = vunpack.c.l.b16 %v2450
    %v3147 = vunpack.c.h.b16 %v2450
    %v3148 = vunpack.c.l.b16 %v2451
    %v3149 = vunpack.c.l.b16 %v2452
    %v3150 = vunpack.c.h.b16 %v2452
    %v3151 = vunpack.c.l.b16 %v2453
    %v3152 = vunpack.c.h.b16 %v2453
    %v3153 = vunpack.c.l.b16 %v2454
    %v3154 = vunpack.c.l.b16 %v2455
    %v3155 = vunpack.c.h.b16 %v2455
    %v3156 = vunpack.c.l.b16 %v2456
    %v3157 = vunpack.c.h.b16 %v2456
    %v3158 = vunpack.c.l.b16 %v2457
    %v3159 = vunpack.c.l.b16 %v2458
    %v3160 = vunpack.c.h.b16 %v2458
    %v3161 = vunpack.c.l.b16 %v2459
    %v3162 = vunpack.c.h.b16 %v2459
    %v3163 = vunpack.c.l.b16 %v2460
    %v3164 = vunpack.c.l.b16 %v2461
    %v3165 = vunpack.c.h.b16 %v2461
    %v3166 = vunpack.c.l.b16 %v2462
    %v3167 = vunpack.c.h.b16 %v2462
    %v3168 = vunpack.c.l.b16 %v2463
    %v3169 = vunpack.c.l.b16 %v2464
    %v3170 = vunpack.c.h.b16 %v2464
    %v3171 = vunpack.c.l.b16 %v2465
    %v3172 = vunpack.c.h.b16 %v2465
    %v3173 = vunpack.c.l.b16 %v2466
    %v3174 = vunpack.c.l.b16 %v2467
    %v3175 = vunpack.c.h.b16 %v2467
    %v3176 = vunpack.c.l.b16 %v2468
    %v3177 = vunpack.c.h.b16 %v2468
    %v3178 = vunpack.c.l.b16 %v2469
    %v3179 = vunpack.c.l.b16 %v2470
    %v3180 = vunpack.c.h.b16 %v2470
    %v3181 = vunpack.c.l.b16 %v2471
    %v3182 = vunpack.c.h.b16 %v2471
    %v3183 = vunpack.c.l.b16 %v2472
    %v3184 = vunpack.c.l.b16 %v2473
    %v3185 = vunpack.c.h.b16 %v2473
    %v3186 = vunpack.c.l.b16 %v2474
    %v3187 = vunpack.c.h.b16 %v2474
    %v3188 = vunpack.c.l.b16 %v2475
    %v3189 = vunpack.c.l.b16 %v2476
    %v3190 = vunpack.c.h.b16 %v2476
    %v3191 = vunpack.c.l.b16 %v2477
    %v3192 = vunpack.c.h.b16 %v2477
    %v3193 = vunpack.c.l.b16 %v2478
    %v3194 = vunpack.c.l.b16 %v2479
    %v3195 = vunpack.c.h.b16 %v2479
    %v3196 = vunpack.c.l.b16 %v2480
    %v3197 = vunpack.c.h.b16 %v2480
    %v3198 = vunpack.c.l.b16 %v2481
    %v3199 = vunpack.c.l.b16 %v2482
    %v3200 = vunpack.c.h.b16 %v2482
    %v3201 = vunpack.c.l.b16 %v2483
    %v3202 = vunpack.c.h.b16 %v2483
    %v3203 = vunpack.c.l.b16 %v2484
    %v3204 = vunpack.c.l.b16 %v2485
    %v3205 = vunpack.c.h.b16 %v2485
    %v3206 = vunpack.c.l.b16 %v2486
    %v3207 = vunpack.c.h.b16 %v2486
    %v3208 = vunpack.c.l.b16 %v2487
    %v3209 = vunpack.c.l.b16 %v2488
    %v3210 = vunpack.c.h.b16 %v2488
    %v3211 = vunpack.c.l.b16 %v2489
    %v3212 = vunpack.c.h.b16 %v2489
    %v3213 = vunpack.c.l.b16 %v2490
    %v3214 = vunpack.c.l.b16 %v2491
    %v3215 = vunpack.c.h.b16 %v2491
    %v3216 = vunpack.c.l.b16 %v2492
    %v3217 = vunpack.c.h.b16 %v2492
    %v3218 = vunpack.c.l.b16 %v2493
    %v3219 = vunpack.c.l.b16 %v2494
    %v3220 = vunpack.c.h.b16 %v2494
    %v3221 = vunpack.c.l.b16 %v2495
    %v3222 = vunpack.c.h.b16 %v2495
    %v3223 = vunpack.c.l.b16 %v2496
    %v3224 = vunpack.c.l.b16 %v2497
    %v3225 = vunpack.c.h.b16 %v2497
    %v3226 = vunpack.c.l.b16 %v2498
    %v3227 = vunpack.c.h.b16 %v2498
    %v3228 = vunpack.c.l.b16 %v2499
    %v3229 = vunpack.c.l.b16 %v2500
    %v3230 = vunpack.c.h.b16 %v2500
    %v3231 = vunpack.c.l.b16 %v2501
    %v3232 = vunpack.c.h.b16 %v2501
    %v3233 = vunpack.c.l.b16 %v2502
    %v3234 = vunpack.c.l.b16 %v2503
    %v3235 = vunpack.c.h.b16 %v2503
    %v3236 = vunpack.c.l.b16 %v2504
    %v3237 = vunpack.c.h.b16 %v2504
    %v3238 = vunpack.c.l.b16 %v2505
    %v3239 = vunpack.c.l.b16 %v2506
    %v3240 = vunpack.c.h.b16 %v2506
    %v3241 = vunpack.c.l.b16 %v2507
    %v3242 = vunpack.c.h.b16 %v2507
    %v3243 = vunpack.c.l.b16 %v2508
    %v3244 = vunpack.c.l.b16 %v2509
    %v3245 = vunpack.c.h.b16 %v2509
    %v3246 = vunpack.c.l.b16 %v2510
    %v3247 = vunpack.c.h.b16 %v2510
    %v3248 = vunpack.c.l.b16 %v2511
    %v3249 = vunpack.c.l.b16 %v2512
    %v3250 = vunpack.c.h.b16 %v2512
    %v3251 = vunpack.c.l.b16 %v2513
    %v3252 = vunpack.c.h.b16 %v2513
    %v3253 = vunpack.c.l.b16 %v2514
    %v3254 = vunpack.c.l.b16 %v2515
    %v3255 = vunpack.c.h.b16 %v2515
    %v3256 = vunpack.c.l.b16 %v2516
    %v3257 = vunpack.c.h.b16 %v2516
    %v3258 = vunpack.c.l.b16 %v2517
    %v3259 = vunpack.c.l.b16 %v2518
    %v3260 = vunpack.c.h.b16 %v2518
    %v3261 = vunpack.c.l.b16 %v2519
    %v3262 = vunpack.c.h.b16 %v2519
    %v3263 = vunpack.c.l.b16 %v2520
    %v3264 = vunpack.c.l.b16 %v2521
    %v3265 = vunpack.c.h.b16 %v2521
    %v3266 = vunpack.c.l.b16 %v2522
    %v3267 = vunpack.c.h.b16 %v2522
    %v3268 = vunpack.c.l.b16 %v2523
    %v3269 = vunpack.c.l.b16 %v2524
    %v3270 = vunpack.c.h.b16 %v2524
    %v3271 = vunpack.c.l.b16 %v2525
    %v3272 = vunpack.c.h.b16 %v2525
    %v3273 = vunpack.c.l.b16 %v2526
    %v3274 = vunpack.c.l.b16 %v2527
    %v3275 = vunpack.c.h.b16 %v2527
    %v3276 = vunpack.c.l.b16 %v2528
    %v3277 = vunpack.c.h.b16 %v2528
    %v3278 = vunpack.c.l.b16 %v2529
    %v3279 = vunpack.c.l.b16 %v2530
    %v3280 = vunpack.c.h.b16 %v2530
    %v3281 = vunpack.c.l.b16 %v2531
    %v3282 = vunpack.c.h.b16 %v2531
    %v3283 = vunpack.c.l.b16 %v2532
    %v3284 = vunpack.c.l.b16 %v2533
    %v3285 = vunpack.c.h.b16 %v2533
    %v3286 = vunpack.c.l.b16 %v2534
    %v3287 = vunpack.c.h.b16 %v2534
    %v3288 = vunpack.c.l.b16 %v2535
    %v3289 = vunpack.c.l.b16 %v2536
    %v3290 = vunpack.c.h.b16 %v2536
    %v3291 = vunpack.c.l.b16 %v2537
    %v3292 = vunpack.c.h.b16 %v2537
    %v3293 = vunpack.c.l.b16 %v2538
    %v3294 = vunpack.c.l.b16 %v2539
    %v3295 = vunpack.c.h.b16 %v2539
    %v3296 = vunpack.c.l.b16 %v2540
    %v3297 = vunpack.c.h.b16 %v2540
    %v3298 = vunpack.c.l.b16 %v2541
    %v3299 = vunpack.c.l.b16 %v2542
    %v3300 = vunpack.c.h.b16 %v2542
    %v3301 = vunpack.c.l.b16 %v2543
    %v3302 = vunpack.c.h.b16 %v2543
    %v3303 = vunpack.c.l.b16 %v2544
    %v3304 = vunpack.c.l.b16 %v2545
    %v3305 = vunpack.c.h.b16 %v2545
    %v3306 = vunpack.c.l.b16 %v2546
    %v3307 = vunpack.c.h.b16 %v2546
    %v3308 = vunpack.c.l.b16 %v2547
    %v3309 = vunpack.c.l.b16 %v2548
    %v3310 = vunpack.c.h.b16 %v2548
    %v3311 = vunpack.c.l.b16 %v2549
    %v3312 = vunpack.c.h.b16 %v2549
    %v3313 = vunpack.c.l.b16 %v2550
    %v3314 = vunpack.c.l.b16 %v2551
    %v3315 = vunpack.c.h.b16 %v2551
    %v3316 = vunpack.c.l.b16 %v2552
    %v3317 = vunpack.c.h.b16 %v2552
    %v3318 = vunpack.c.l.b16 %v2553
    %v3319 = vunpack.c.l.b16 %v2554
    %v3320 = vunpack.c.h.b16 %v2554
    %v3321 = vunpack.c.l.b16 %v2555
    %v3322 = vunpack.c.h.b16 %v2555
    %v3323 = vunpack.c.l.b16 %v2556
    %v3324 = vunpack.c.l.b16 %v2557
    %v3325 = vunpack.c.h.b16 %v2557
    %v3326 = vunpack.c.l.b16 %v2558
    %v3327 = vunpack.c.h.b16 %v2558
    %v3328 = vunpack.c.l.b16 %v2559
    %v3329 = vunpack.c.l.b16 %v2560
    %v3330 = vunpack.c.h.b16 %v2560
    %v3331 = vunpack.c.l.b16 %v2561
    %v3332 = vunpack.c.h.b16 %v2561
    %v3333 = vunpack.c.l.b16 %v2562
    %v3334 = vunpack.c.l.b16 %v2563
    %v3335 = vunpack.c.h.b16 %v2563
    %v3336 = vunpack.c.l.b16 %v2564
    %v3337 = vunpack.c.h.b16 %v2564
    %v3338 = vunpack.c.l.b16 %v2565
    %v3339 = vunpack.c.l.b16 %v2566
    %v3340 = vunpack.c.h.b16 %v2566
    %v3341 = vunpack.c.l.b16 %v2567
    %v3342 = vunpack.c.h.b16 %v2567
    %v3343 = vunpack.c.l.b16 %v2568
    %v3344 = vunpack.c.l.b16 %v2569
    %v3345 = vunpack.c.h.b16 %v2569
    %v3346 = vunpack.c.l.b16 %v2570
    %v3347 = vunpack.c.h.b16 %v2570
    %v3348 = vunpack.c.l.b16 %v2571
    %v3349 = vunpack.c.l.b16 %v2572
    %v3350 = vunpack.c.h.b16 %v2572
    %v3351 = vunpack.c.l.b16 %v2573
    %v3352 = vunpack.c.h.b16 %v2573
    %v3353 = vunpack.c.l.b16 %v2574
    %v3354 = vunpack.c.l.b16 %v2575
    %v3355 = vunpack.c.h.b16 %v2575
    %v3356 = vunpack.c.l.b16 %v2576
    %v3357 = vunpack.c.h.b16 %v2576
    %v3358 = vunpack.c.l.b16 %v2577
    %v3359 = vunpack.c.l.b16 %v2578
    %v3360 = vunpack.c.h.b16 %v2578
    %v3361 = vunpack.c.l.b16 %v2579
    %v3362 = vunpack.c.h.b16 %v2579
    %v3363 = vunpack.c.l.b16 %v2580
    %v3364 = vunpack.c.l.b16 %v2581
    %v3365 = vunpack.c.h.b16 %v2581
    %v3366 = vunpack.c.l.b16 %v2582
    %v3367 = vunpack.c.h.b16 %v2582
    %v3368 = vunpack.c.l.b16 %v2583
    %v3369 = vunpack.c.l.b16 %v2584
    %v3370 = vunpack.c.h.b16 %v2584
    %v3371 = vunpack.c.l.b16 %v2585
    %v3372 = vunpack.c.h.b16 %v2585
    %v3373 = vunpack.c.l.b16 %v2586
    %v3374 = vunpack.c.l.b16 %v2587
    %v3375 = vunpack.c.h.b16 %v2587
    %v3376 = vunpack.c.l.b16 %v2588
    %v3377 = vunpack.c.h.b16 %v2588
    %v3378 = vunpack.c.l.b16 %v2589
    %v3379 = vunpack.c.l.b16 %v2590
    %v3380 = vunpack.c.h.b16 %v2590
    %v3381 = vunpack.c.l.b16 %v2591
    %v3382 = vunpack.c.h.b16 %v2591
    %v3383 = vunpack.c.l.b16 %v2592
    %v3384 = vunpack.c.l.b16 %v2593
    %v3385 = vunpack.c.h.b16 %v2593
    %v3386 = vunpack.c.l.b16 %v2594
    %v3387 = vunpack.c.h.b16 %v2594
    %v3388 = vunpack.c.l.b16 %v2595
    %v3389 = vunpack.c.l.b16 %v2596
    %v3390 = vunpack.c.h.b16 %v2596
    %v3391 = vunpack.c.l.b16 %v2597
    %v3392 = vunpack.c.h.b16 %v2597
    %v3393 = vunpack.c.l.b16 %v2598
    %v3394 = vpack.c.b16 %v2919, %v2914
    %v3395 = vpack.c.b16 %v2920, %v2915
    %v3396 = vpack.c.b16 %v2921, %v2916
    %v3397 = vpack.c.b16 %v2922, %v2917
    %v3398 = vpack.c.b16 %v2923, %v2918
    %v3399 = vpack.c.b16 %v2929, %v2924
    %v3400 = vpack.c.b16 %v2930, %v2925
    %v3401 = vpack.c.b16 %v2931, %v2926
    %v3402 = vpack.c.b16 %v2932, %v2927
    %v3403 = vpack.c.b16 %v2933, %v2928
    %v3404 = vpack.c.b16 %v2939, %v2934
    %v3405 = vpack.c.b16 %v2940, %v2935
    %v3406 = vpack.c.b16 %v2941, %v2936
    %v3407 = vpack.c.b16 %v2942, %v2937
    %v3408 = vpack.c.b16 %v2943, %v2938
    %v3409 = vpack.c.b16 %v2949, %v2944
    %v3410 = vpack.c.b16 %v2950, %v2945
    %v3411 = vpack.c.b16 %v2951, %v2946
    %v3412 = vpack.c.b16 %v2952, %v2947
    %v3413 = vpack.c.b16 %v2953, %v2948
    %v3414 = vpack.c.b16 %v2959, %v2954
    %v3415 = vpack.c.b16 %v2960, %v2955
    %v3416 = vpack.c.b16 %v2961, %v2956
    %v3417 = vpack.c.b16 %v2962, %v2957
    %v3418 = vpack.c.b16 %v2963, %v2958
    %v3419 = vpack.c.b16 %v2969, %v2964
    %v3420 = vpack.c.b16 %v2970, %v2965
    %v3421 = vpack.c.b16 %v2971, %v2966
    %v3422 = vpack.c.b16 %v2972, %v2967
    %v3423 = vpack.c.b16 %v2973, %v2968
    %v3424 = vpack.c.b16 %v2979, %v2974
    %v3425 = vpack.c.b16 %v2980, %v2975
    %v3426 = vpack.c.b16 %v2981, %v2976
    %v3427 = vpack.c.b16 %v2982, %v2977
    %v3428 = vpack.c.b16 %v2983, %v2978
    %v3429 = vpack.c.b16 %v2989, %v2984
    %v3430 = vpack.c.b16 %v2990, %v2985
    %v3431 = vpack.c.b16 %v2991, %v2986
    %v3432 = vpack.c.b16 %v2992, %v2987
    %v3433 = vpack.c.b16 %v2993, %v2988
    %v3434 = vpack.c.b16 %v2999, %v2994
    %v3435 = vpack.c.b16 %v3000, %v2995
    %v3436 = vpack.c.b16 %v3001, %v2996
    %v3437 = vpack.c.b16 %v3002, %v2997
    %v3438 = vpack.c.b16 %v3003, %v2998
    %v3439 = vpack.c.b16 %v3009, %v3004
    %v3440 = vpack.c.b16 %v3010, %v3005
    %v3441 = vpack.c.b16 %v3011, %v3006
    %v3442 = vpack.c.b16 %v3012, %v3007
    %v3443 = vpack.c.b16 %v3013, %v3008
    %v3444 = vpack.c.b16 %v3019, %v3014
    %v3445 = vpack.c.b16 %v3020, %v3015
    %v3446 = vpack.c.b16 %v3021, %v3016
    %v3447 = vpack.c.b16 %v3022, %v3017
    %v3448 = vpack.c.b16 %v3023, %v3018
    %v3449 = vpack.c.b16 %v3029, %v3024
    %v3450 = vpack.c.b16 %v3030, %v3025
    %v3451 = vpack.c.b16 %v3031, %v3026
    %v3452 = vpack.c.b16 %v3032, %v3027
    %v3453 = vpack.c.b16 %v3033, %v3028
    %v3454 = vpack.c.b16 %v3039, %v3034
    %v3455 = vpack.c.b16 %v3040, %v3035
    %v3456 = vpack.c.b16 %v3041, %v3036
    %v3457 = vpack.c.b16 %v3042, %v3037
    %v3458 = vpack.c.b16 %v3043, %v3038
    %v3459 = vpack.c.b16 %v3049, %v3044
    %v3460 = vpack.c.b16 %v3050, %v3045
    %v3461 = vpack.c.b16 %v3051, %v3046
    %v3462 = vpack.c.b16 %v3052, %v3047
    %v3463 = vpack.c.b16 %v3053, %v3048
    %v3464 = vpack.c.b16 %v3059, %v3054
    %v3465 = vpack.c.b16 %v3060, %v3055
    %v3466 = vpack.c.b16 %v3061, %v3056
    %v3467 = vpack.c.b16 %v3062, %v3057
    %v3468 = vpack.c.b16 %v3063, %v3058
    %v3469 = vpack.c.b16 %v3069, %v3064
    %v3470 = vpack.c.b16 %v3070, %v3065
    %v3471 = vpack.c.b16 %v3071, %v3066
    %v3472 = vpack.c.b16 %v3072, %v3067
    %v3473 = vpack.c.b16 %v3073, %v3068
    %v3474 = vpack.c.b16 %v3079, %v3074
    %v3475 = vpack.c.b16 %v3080, %v3075
    %v3476 = vpack.c.b16 %v3081, %v3076
    %v3477 = vpack.c.b16 %v3082, %v3077
    %v3478 = vpack.c.b16 %v3083, %v3078
    %v3479 = vpack.c.b16 %v3089, %v3084
    %v3480 = vpack.c.b16 %v3090, %v3085
    %v3481 = vpack.c.b16 %v3091, %v3086
    %v3482 = vpack.c.b16 %v3092, %v3087
    %v3483 = vpack.c.b16 %v3093, %v3088
    %v3484 = vpack.c.b16 %v3099, %v3094
    %v3485 = vpack.c.b16 %v3100, %v3095
    %v3486 = vpack.c.b16 %v3101, %v3096
    %v3487 = vpack.c.b16 %v3102, %v3097
    %v3488 = vpack.c.b16 %v3103, %v3098
    %v3489 = vpack.c.b16 %v3109, %v3104
    %v3490 = vpack.c.b16 %v3110, %v3105
    %v3491 = vpack.c.b16 %v3111, %v3106
    %v3492 = vpack.c.b16 %v3112, %v3107
    %v3493 = vpack.c.b16 %v3113, %v3108
    %v3494 = vpack.c.b16 %v3119, %v3114
    %v3495 = vpack.c.b16 %v3120, %v3115
    %v3496 = vpack.c.b16 %v3121, %v3116
    %v3497 = vpack.c.b16 %v3122, %v3117
    %v3498 = vpack.c.b16 %v3123, %v3118
    %v3499 = vpack.c.b16 %v3129, %v3124
    %v3500 = vpack.c.b16 %v3130, %v3125
    %v3501 = vpack.c.b16 %v3131, %v3126
    %v3502 = vpack.c.b16 %v3132, %v3127
    %v3503 = vpack.c.b16 %v3133, %v3128
    %v3504 = vpack.c.b16 %v3139, %v3134
    %v3505 = vpack.c.b16 %v3140, %v3135
    %v3506 = vpack.c.b16 %v3141, %v3136
    %v3507 = vpack.c.b16 %v3142, %v3137
    %v3508 = vpack.c.b16 %v3143, %v3138
    %v3509 = vpack.c.b16 %v3149, %v3144
    %v3510 = vpack.c.b16 %v3150, %v3145
    %v3511 = vpack.c.b16 %v3151, %v3146
    %v3512 = vpack.c.b16 %v3152, %v3147
    %v3513 = vpack.c.b16 %v3153, %v3148
    %v3514 = vpack.c.b16 %v3159, %v3154
    %v3515 = vpack.c.b16 %v3160, %v3155
    %v3516 = vpack.c.b16 %v3161, %v3156
    %v3517 = vpack.c.b16 %v3162, %v3157
    %v3518 = vpack.c.b16 %v3163, %v3158
    %v3519 = vpack.c.b16 %v3169, %v3164
    %v3520 = vpack.c.b16 %v3170, %v3165
    %v3521 = vpack.c.b16 %v3171, %v3166
    %v3522 = vpack.c.b16 %v3172, %v3167
    %v3523 = vpack.c.b16 %v3173, %v3168
    %v3524 = vpack.c.b16 %v3179, %v3174
    %v3525 = vpack.c.b16 %v3180, %v3175
    %v3526 = vpack.c.b16 %v3181, %v3176
    %v3527 = vpack.c.b16 %v3182, %v3177
    %v3528 = vpack.c.b16 %v3183, %v3178
    %v3529 = vpack.c.b16 %v3189, %v3184
    %v3530 = vpack.c.b16 %v3190, %v3185
    %v3531 = vpack.c.b16 %v3191, %v3186
    %v3532 = vpack.c.b16 %v3192, %v3187
    %v3533 = vpack.c.b16 %v3193, %v3188
    %v3534 = vpack.c.b16 %v3199, %v3194
    %v3535 = vpack.c.b16 %v3200, %v3195
    %v3536 = vpack.c.b16 %v3201, %v3196
    %v3537 = vpack.c.b16 %v3202, %v3197
    %v3538 = vpack.c.b16 %v3203, %v3198
    %v3539 = vpack.c.b16 %v3209, %v3204
    %v3540 = vpack.c.b16 %v3210, %v3205
    %v3541 = vpack.c.b16 %v3211, %v3206
    %v3542 = vpack.c.b16 %v3212, %v3207
    %v3543 = vpack.c.b16 %v3213, %v3208
    %v3544 = vpack.c.b16 %v3219, %v3214
    %v3545 = vpack.c.b16 %v3220, %v3215
    %v3546 = vpack.c.b16 %v3221, %v3216
    %v3547 = vpack.c.b16 %v3222, %v3217
    %v3548 = vpack.c.b16 %v3223, %v3218
    %v3549 = vpack.c.b16 %v3229, %v3224
    %v3550 = vpack.c.b16 %v3230, %v3225
    %v3551 = vpack.c.b16 %v3231, %v3226
    %v3552 = vpack.c.b16 %v3232, %v3227
    %v3553 = vpack.c.b16 %v3233, %v3228
    %v3554 = vpack.c.b16 %v3239, %v3234
    %v3555 = vpack.c.b16 %v3240, %v3235
    %v3556 = vpack.c.b16 %v3241, %v3236
    %v3557 = vpack.c.b16 %v3242, %v3237
    %v3558 = vpack.c.b16 %v3243, %v3238
    %v3559 = vpack.c.b16 %v3249, %v3244
    %v3560 = vpack.c.b16 %v3250, %v3245
    %v3561 = vpack.c.b16 %v3251, %v3246
    %v3562 = vpack.c.b16 %v3252, %v3247
    %v3563 = vpack.c.b16 %v3253, %v3248
    %v3564 = vpack.c.b16 %v3259, %v3254
    %v3565 = vpack.c.b16 %v3260, %v3255
    %v3566 = vpack.c.b16 %v3261, %v3256
    %v3567 = vpack.c.b16 %v3262, %v3257
    %v3568 = vpack.c.b16 %v3263, %v3258
    %v3569 = vpack.c.b16 %v3269, %v3264
    %v3570 = vpack.c.b16 %v3270, %v3265
    %v3571 = vpack.c.b16 %v3271, %v3266
    %v3572 = vpack.c.b16 %v3272, %v3267
    %v3573 = vpack.c.b16 %v3273, %v3268
    %v3574 = vpack.c.b16 %v3279, %v3274
    %v3575 = vpack.c.b16 %v3280, %v3275
    %v3576 = vpack.c.b16 %v3281, %v3276
    %v3577 = vpack.c.b16 %v3282, %v3277
    %v3578 = vpack.c.b16 %v3283, %v3278
    %v3579 = vpack.c.b16 %v3289, %v3284
    %v3580 = vpack.c.b16 %v3290, %v3285
    %v3581 = vpack.c.b16 %v3291, %v3286
    %v3582 = vpack.c.b16 %v3292, %v3287
    %v3583 = vpack.c.b16 %v3293, %v3288
    %v3584 = vpack.c.b16 %v3299, %v3294
    %v3585 = vpack.c.b16 %v3300, %v3295
    %v3586 = vpack.c.b16 %v3301, %v3296
    %v3587 = vpack.c.b16 %v3302, %v3297
    %v3588 = vpack.c.b16 %v3303, %v3298
    %v3589 = vpack.c.b16 %v3309, %v3304
    %v3590 = vpack.c.b16 %v3310, %v3305
    %v3591 = vpack.c.b16 %v3311, %v3306
    %v3592 = vpack.c.b16 %v3312, %v3307
    %v3593 = vpack.c.b16 %v3313, %v3308
    %v3594 = vpack.c.b16 %v3319, %v3314
    %v3595 = vpack.c.b16 %v3320, %v3315
    %v3596 = vpack.c.b16 %v3321, %v3316
    %v3597 = vpack.c.b16 %v3322, %v3317
    %v3598 = vpack.c.b16 %v3323, %v3318
    %v3599 = vpack.c.b16 %v3329, %v3324
    %v3600 = vpack.c.b16 %v3330, %v3325
    %v3601 = vpack.c.b16 %v3331, %v3326
    %v3602 = vpack.c.b16 %v3332, %v3327
    %v3603 = vpack.c.b16 %v3333, %v3328
    %v3604 = vpack.c.b16 %v3339, %v3334
    %v3605 = vpack.c.b16 %v3340, %v3335
    %v3606 = vpack.c.b16 %v3341, %v3336
    %v3607 = vpack.c.b16 %v3342, %v3337
    %v3608 = vpack.c.b16 %v3343, %v3338
    %v3609 = vpack.c.b16 %v3349, %v3344
    %v3610 = vpack.c.b16 %v3350, %v3345
    %v3611 = vpack.c.b16 %v3351, %v3346
    %v3612 = vpack.c.b16 %v3352, %v3347
    %v3613 = vpack.c.b16 %v3353, %v3348
    %v3614 = vpack.c.b16 %v3359, %v3354
    %v3615 = vpack.c.b16 %v3360, %v3355
    %v3616 = vpack.c.b16 %v3361, %v3356
    %v3617 = vpack.c.b16 %v3362, %v3357
    %v3618 = vpack.c.b16 %v3363, %v3358
    %v3619 = vpack.c.b16 %v3369, %v3364
    %v3620 = vpack.c.b16 %v3370, %v3365
    %v3621 = vpack.c.b16 %v3371, %v3366
    %v3622 = vpack.c.b16 %v3372, %v3367
    %v3623 = vpack.c.b16 %v3373, %v3368
    %v3624 = vpack.c.b16 %v3379, %v3374
    %v3625 = vpack.c.b16 %v3380, %v3375
    %v3626 = vpack.c.b16 %v3381, %v3376
    %v3627 = vpack.c.b16 %v3382, %v3377
    %v3628 = vpack.c.b16 %v3383, %v3378
    %v3629 = vpack.c.b16 %v3389, %v3384
    %v3630 = vpack.c.b16 %v3390, %v3385
    %v3631 = vpack.c.b16 %v3391, %v3386
    %v3632 = vpack.c.b16 %v3392, %v3387
    %v3633 = vpack.c.b16 %v3393, %v3388
    %3874 = vmatprep.subr.bf16.mxu0 %v3395
    %3875 = vmatpush1.bf16.msra.mxu0 %v3394
    %3876 = vmatprep.subr.bf16.mxu0 %v3400
    %3877 = vmatpush1.bf16.msra.mxu0 %v3399
    %3878 = vmatprep.subr.bf16.mxu0 %v3405
    %3879 = vmatpush1.bf16.msra.mxu0 %v3404
    %3880 = vmatprep.subr.bf16.mxu0 %v3410
    %3881 = vmatpush1.bf16.msra.mxu0 %v3409
    %3882 = vmatprep.subr.bf16.mxu0 %v3415
    %3883 = vmatpush1.bf16.msra.mxu0 %v3414
    %3884 = vmatprep.subr.bf16.mxu0 %v3420
    %3885 = vmatpush1.bf16.msra.mxu0 %v3419
    %3886 = vmatprep.subr.bf16.mxu0 %v3425
    %3887 = vmatpush1.bf16.msra.mxu0 %v3424
    %3888 = vmatprep.subr.bf16.mxu0 %v3430
    %3889 = vmatpush1.bf16.msra.mxu0 %v3429
    %3890 = vmatprep.subr.bf16.mxu0 %v3435
    %3891 = vmatpush1.bf16.msra.mxu0 %v3434
    %3892 = vmatprep.subr.bf16.mxu0 %v3440
    %3893 = vmatpush1.bf16.msra.mxu0 %v3439
    %3894 = vmatprep.subr.bf16.mxu0 %v3445
    %3895 = vmatpush1.bf16.msra.mxu0 %v3444
    %3896 = vmatprep.subr.bf16.mxu0 %v3450
    %3897 = vmatpush1.bf16.msra.mxu0 %v3449
    %3898 = vmatprep.subr.bf16.mxu0 %v3455
    %3899 = vmatpush1.bf16.msra.mxu0 %v3454
    %3900 = vmatprep.subr.bf16.mxu0 %v3460
    %3901 = vmatpush1.bf16.msra.mxu0 %v3459
    %3902 = vmatprep.subr.bf16.mxu0 %v3465
    %3903 = vmatpush1.bf16.msra.mxu0 %v3464
    %3904 = vmatprep.subr.bf16.mxu0 %v3470
    %3905 = vmatpush1.bf16.msra.mxu0 %v3469
    %3906 = vmatprep.mubr.bf16.mxu0 %v2306
    %3907 = vmatmul.mubr.bf16.gmra.mrb[0].mxu0 %v2305
    %v3908 = vpop.f32.mrb[0].mxu0
    %v3909 = vadd.f32 %v2604, %v3908
    %v3910 = vpop.f32.mrb[0].mxu0
    %v3911 = vadd.f32 %v2608, %v3910
    %v3912 = vpop.f32.mrb[0].mxu0
    %v3913 = vpop.f32.mrb[0].mxu0
    %3914 = vdwg.mxu0
    %3915 = vmatprep.subr.bf16.mxu0 %v3475
    %3916 = vmatpush1.bf16.msra.mxu0 %v3474
    %3917 = vmatprep.subr.bf16.mxu0 %v3480
    %3918 = vmatpush1.bf16.msra.mxu0 %v3479
    %3919 = vmatprep.subr.bf16.mxu0 %v3485
    %3920 = vmatpush1.bf16.msra.mxu0 %v3484
    %3921 = vmatprep.subr.bf16.mxu0 %v3490
    %3922 = vmatpush1.bf16.msra.mxu0 %v3489
    %3923 = vmatprep.subr.bf16.mxu0 %v3495
    %3924 = vmatpush1.bf16.msra.mxu0 %v3494
    %3925 = vmatprep.subr.bf16.mxu0 %v3500
    %3926 = vmatpush1.bf16.msra.mxu0 %v3499
    %3927 = vmatprep.subr.bf16.mxu0 %v3505
    %3928 = vmatpush1.bf16.msra.mxu0 %v3504
    %3929 = vmatprep.subr.bf16.mxu0 %v3510
    %3930 = vmatpush1.bf16.msra.mxu0 %v3509
    %3931 = vmatprep.subr.bf16.mxu0 %v3515
    %3932 = vmatpush1.bf16.msra.mxu0 %v3514
    %3933 = vmatprep.subr.bf16.mxu0 %v3520
    %3934 = vmatpush1.bf16.msra.mxu0 %v3519
    %3935 = vmatprep.subr.bf16.mxu0 %v3525
    %3936 = vmatpush1.bf16.msra.mxu0 %v3524
    %3937 = vmatprep.subr.bf16.mxu0 %v3530
    %3938 = vmatpush1.bf16.msra.mxu0 %v3529
    %3939 = vmatprep.subr.bf16.mxu0 %v3535
    %3940 = vmatpush1.bf16.msra.mxu0 %v3534
    %3941 = vmatprep.subr.bf16.mxu0 %v3540
    %3942 = vmatpush1.bf16.msra.mxu0 %v3539
    %3943 = vmatprep.subr.bf16.mxu0 %v3545
    %3944 = vmatpush1.bf16.msra.mxu0 %v3544
    %3945 = vmatprep.subr.bf16.mxu0 %v3550
    %3946 = vmatpush1.bf16.msra.mxu0 %v3549
    %3947 = vmatprep.mubr.bf16.mxu0 %v2308
    %3948 = vmatmul.mubr.bf16.gmra.mrb[0].mxu0 %v2307
    %v3949 = vpop.f32.mrb[0].mxu0
    %v3950 = vadd.f32 %v3909, %v3949
    %v3951 = vpop.f32.mrb[0].mxu0
    %v3952 = vadd.f32 %v3911, %v3951
    %v3953 = vpop.f32.mrb[0].mxu0
    %v3954 = vpop.f32.mrb[0].mxu0
    %3955 = vdwg.mxu0
    %3956 = vmatprep.subr.bf16.mxu0 %v3555
    %3957 = vmatpush1.bf16.msra.mxu0 %v3554
    %3958 = vmatprep.subr.bf16.mxu0 %v3560
    %3959 = vmatpush1.bf16.msra.mxu0 %v3559
    %3960 = vmatprep.subr.bf16.mxu0 %v3565
    %3961 = vmatpush1.bf16.msra.mxu0 %v3564
    %3962 = vmatprep.subr.bf16.mxu0 %v3570
    %3963 = vmatpush1.bf16.msra.mxu0 %v3569
    %3964 = vmatprep.subr.bf16.mxu0 %v3575
    %3965 = vmatpush1.bf16.msra.mxu0 %v3574
    %3966 = vmatprep.subr.bf16.mxu0 %v3580
    %3967 = vmatpush1.bf16.msra.mxu0 %v3579
    %3968 = vmatprep.subr.bf16.mxu0 %v3585
    %3969 = vmatpush1.bf16.msra.mxu0 %v3584
    %3970 = vmatprep.subr.bf16.mxu0 %v3590
    %3971 = vmatpush1.bf16.msra.mxu0 %v3589
    %3972 = vmatprep.subr.bf16.mxu0 %v3595
    %3973 = vmatpush1.bf16.msra.mxu0 %v3594
    %3974 = vmatprep.subr.bf16.mxu0 %v3600
    %3975 = vmatpush1.bf16.msra.mxu0 %v3599
    %3976 = vmatprep.subr.bf16.mxu0 %v3605
    %3977 = vmatpush1.bf16.msra.mxu0 %v3604
    %3978 = vmatprep.subr.bf16.mxu0 %v3610
    %3979 = vmatpush1.bf16.msra.mxu0 %v3609
    %3980 = vmatprep.subr.bf16.mxu0 %v3615
    %3981 = vmatpush1.bf16.msra.mxu0 %v3614
    %3982 = vmatprep.subr.bf16.mxu0 %v3620
    %3983 = vmatpush1.bf16.msra.mxu0 %v3619
    %3984 = vmatprep.subr.bf16.mxu0 %v3625
    %3985 = vmatpush1.bf16.msra.mxu0 %v3624
    %3986 = vmatprep.subr.bf16.mxu0 %v3630
    %3987 = vmatpush1.bf16.msra.mxu0 %v3629
    %3988 = vmatprep.mubr.bf16.mxu0 %v2310
    %3989 = vmatmul.mubr.bf16.gmra.mrb[0].mxu0 %v2309
    %v3990 = vpop.f32.mrb[0].mxu0
    %v3991 = vadd.f32 %v3950, %v3990
    %v3992 = vpop.f32.mrb[0].mxu0
    %v3993 = vadd.f32 %v3952, %v3992
    %v3994 = vpop.f32.mrb[0].mxu0
    %v3995 = vpop.f32.mrb[0].mxu0
    %3996 = vdwg.mxu0
    %3997 = vmatprep.subr.bf16.mxu0 %v3397
    %3998 = vmatpush1.bf16.msra.mxu0 %v3396
    %3999 = vmatprep.subr.bf16.mxu0 %v3402
    %4000 = vmatpush1.bf16.msra.mxu0 %v3401
    %4001 = vmatprep.subr.bf16.mxu0 %v3407
    %4002 = vmatpush1.bf16.msra.mxu0 %v3406
    %4003 = vmatprep.subr.bf16.mxu0 %v3412
    %4004 = vmatpush1.bf16.msra.mxu0 %v3411
    %4005 = vmatprep.subr.bf16.mxu0 %v3417
    %4006 = vmatpush1.bf16.msra.mxu0 %v3416
    %4007 = vmatprep.subr.bf16.mxu0 %v3422
    %4008 = vmatpush1.bf16.msra.mxu0 %v3421
    %4009 = vmatprep.subr.bf16.mxu0 %v3427
    %4010 = vmatpush1.bf16.msra.mxu0 %v3426
    %4011 = vmatprep.subr.bf16.mxu0 %v3432
    %4012 = vmatpush1.bf16.msra.mxu0 %v3431
    %4013 = vmatprep.subr.bf16.mxu0 %v3437
    %4014 = vmatpush1.bf16.msra.mxu0 %v3436
    %4015 = vmatprep.subr.bf16.mxu0 %v3442
    %4016 = vmatpush1.bf16.msra.mxu0 %v3441
    %4017 = vmatprep.subr.bf16.mxu0 %v3447
    %4018 = vmatpush1.bf16.msra.mxu0 %v3446
    %4019 = vmatprep.subr.bf16.mxu0 %v3452
    %4020 = vmatpush1.bf16.msra.mxu0 %v3451
    %4021 = vmatprep.subr.bf16.mxu0 %v3457
    %4022 = vmatpush1.bf16.msra.mxu0 %v3456
    %4023 = vmatprep.subr.bf16.mxu0 %v3462
    %4024 = vmatpush1.bf16.msra.mxu0 %v3461
    %4025 = vmatprep.subr.bf16.mxu0 %v3467
    %4026 = vmatpush1.bf16.msra.mxu0 %v3466
    %4027 = vmatprep.subr.bf16.mxu0 %v3472
    %4028 = vmatpush1.bf16.msra.mxu0 %v3471
    %4029 = vmatprep.mubr.bf16.mxu0 %v2306
    %4030 = vmatmul.mubr.bf16.gmra.mrb[0].mxu0 %v2305
    %v4031 = vpop.f32.mrb[0].mxu0
    %v4032 = vadd.f32 %v2612, %v4031
    %v4033 = vpop.f32.mrb[0].mxu0
    %v4034 = vadd.f32 %v2616, %v4033
    %v4035 = vpop.f32.mrb[0].mxu0
    %v4036 = vpop.f32.mrb[0].mxu0
    %4037 = vdwg.mxu0
    %4038 = vmatprep.subr.bf16.mxu0 %v3477
    %4039 = vmatpush1.bf16.msra.mxu0 %v3476
    %4040 = vmatprep.subr.bf16.mxu0 %v3482
    %4041 = vmatpush1.bf16.msra.mxu0 %v3481
    %4042 = vmatprep.subr.bf16.mxu0 %v3487
    %4043 = vmatpush1.bf16.msra.mxu0 %v3486
    %4044 = vmatprep.subr.bf16.mxu0 %v3492
    %4045 = vmatpush1.bf16.msra.mxu0 %v3491
    %4046 = vmatprep.subr.bf16.mxu0 %v3497
    %4047 = vmatpush1.bf16.msra.mxu0 %v3496
    %4048 = vmatprep.subr.bf16.mxu0 %v3502
    %4049 = vmatpush1.bf16.msra.mxu0 %v3501
    %4050 = vmatprep.subr.bf16.mxu0 %v3507
    %4051 = vmatpush1.bf16.msra.mxu0 %v3506
    %4052 = vmatprep.subr.bf16.mxu0 %v3512
    %4053 = vmatpush1.bf16.msra.mxu0 %v3511
    %4054 = vmatprep.subr.bf16.mxu0 %v3517
    %4055 = vmatpush1.bf16.msra.mxu0 %v3516
    %4056 = vmatprep.subr.bf16.mxu0 %v3522
    %4057 = vmatpush1.bf16.msra.mxu0 %v3521
    %4058 = vmatprep.subr.bf16.mxu0 %v3527
    %4059 = vmatpush1.bf16.msra.mxu0 %v3526
    %4060 = vmatprep.subr.bf16.mxu0 %v3532
    %4061 = vmatpush1.bf16.msra.mxu0 %v3531
    %4062 = vmatprep.subr.bf16.mxu0 %v3537
    %4063 = vmatpush1.bf16.msra.mxu0 %v3536
    %4064 = vmatprep.subr.bf16.mxu0 %v3542
    %4065 = vmatpush1.bf16.msra.mxu0 %v3541
    %4066 = vmatprep.subr.bf16.mxu0 %v3547
    %4067 = vmatpush1.bf16.msra.mxu0 %v3546
    %4068 = vmatprep.subr.bf16.mxu0 %v3552
    %4069 = vmatpush1.bf16.msra.mxu0 %v3551
    %4070 = vmatprep.mubr.bf16.mxu0 %v2308
    %4071 = vmatmul.mubr.bf16.gmra.mrb[0].mxu0 %v2307
    %v4072 = vpop.f32.mrb[0].mxu0
    %v4073 = vadd.f32 %v4032, %v4072
    %v4074 = vpop.f32.mrb[0].mxu0
    %v4075 = vadd.f32 %v4034, %v4074
    %v4076 = vpop.f32.mrb[0].mxu0
    %v4077 = vpop.f32.mrb[0].mxu0
    %4078 = vdwg.mxu0
    %4079 = vmatprep.subr.bf16.mxu0 %v3557
    %4080 = vmatpush1.bf16.msra.mxu0 %v3556
    %4081 = vmatprep.subr.bf16.mxu0 %v3562
    %4082 = vmatpush1.bf16.msra.mxu0 %v3561
    %4083 = vmatprep.subr.bf16.mxu0 %v3567
    %4084 = vmatpush1.bf16.msra.mxu0 %v3566
    %4085 = vmatprep.subr.bf16.mxu0 %v3572
    %4086 = vmatpush1.bf16.msra.mxu0 %v3571
    %4087 = vmatprep.subr.bf16.mxu0 %v3577
    %4088 = vmatpush1.bf16.msra.mxu0 %v3576
    %4089 = vmatprep.subr.bf16.mxu0 %v3582
    %4090 = vmatpush1.bf16.msra.mxu0 %v3581
    %4091 = vmatprep.subr.bf16.mxu0 %v3587
    %4092 = vmatpush1.bf16.msra.mxu0 %v3586
    %4093 = vmatprep.subr.bf16.mxu0 %v3592
    %4094 = vmatpush1.bf16.msra.mxu0 %v3591
    %4095 = vmatprep.subr.bf16.mxu0 %v3597
    %4096 = vmatpush1.bf16.msra.mxu0 %v3596
    %4097 = vmatprep.subr.bf16.mxu0 %v3602
    %4098 = vmatpush1.bf16.msra.mxu0 %v3601
    %4099 = vmatprep.subr.bf16.mxu0 %v3607
    %4100 = vmatpush1.bf16.msra.mxu0 %v3606
    %4101 = vmatprep.subr.bf16.mxu0 %v3612
    %4102 = vmatpush1.bf16.msra.mxu0 %v3611
    %4103 = vmatprep.subr.bf16.mxu0 %v3617
    %4104 = vmatpush1.bf16.msra.mxu0 %v3616
    %4105 = vmatprep.subr.bf16.mxu0 %v3622
    %4106 = vmatpush1.bf16.msra.mxu0 %v3621
    %4107 = vmatprep.subr.bf16.mxu0 %v3627
    %4108 = vmatpush1.bf16.msra.mxu0 %v3626
    %4109 = vmatprep.subr.bf16.mxu0 %v3632
    %4110 = vmatpush1.bf16.msra.mxu0 %v3631
    %4111 = vmatprep.mubr.bf16.mxu0 %v2310
    %4112 = vmatmul.mubr.bf16.gmra.mrb[0].mxu0 %v2309
    %v4113 = vpop.f32.mrb[0].mxu0
    %v4114 = vadd.f32 %v4073, %v4113
    %v4115 = vpop.f32.mrb[0].mxu0
    %v4116 = vadd.f32 %v4075, %v4115
    %v4117 = vpop.f32.mrb[0].mxu0
    %v4118 = vpop.f32.mrb[0].mxu0
    %4119 = vdwg.mxu0
    %4120 = vmatprep.subr.bf16.mxu0 0
    %4121 = vmatpush1.bf16.msra.mxu0 %v3398
    %4122 = vmatprep.subr.bf16.mxu0 0
    %4123 = vmatpush1.bf16.msra.mxu0 %v3403
    %4124 = vmatprep.subr.bf16.mxu0 0
    %4125 = vmatpush1.bf16.msra.mxu0 %v3408
    %4126 = vmatprep.subr.bf16.mxu0 0
    %4127 = vmatpush1.bf16.msra.mxu0 %v3413
    %4128 = vmatprep.subr.bf16.mxu0 0
    %4129 = vmatpush1.bf16.msra.mxu0 %v3418
    %4130 = vmatprep.subr.bf16.mxu0 0
    %4131 = vmatpush1.bf16.msra.mxu0 %v3423
    %4132 = vmatprep.subr.bf16.mxu0 0
    %4133 = vmatpush1.bf16.msra.mxu0 %v3428
    %4134 = vmatprep.subr.bf16.mxu0 0
    %4135 = vmatpush1.bf16.msra.mxu0 %v3433
    %4136 = vmatprep.subr.bf16.mxu0 0
    %4137 = vmatpush1.bf16.msra.mxu0 %v3438
    %4138 = vmatprep.subr.bf16.mxu0 0
    %4139 = vmatpush1.bf16.msra.mxu0 %v3443
    %4140 = vmatprep.subr.bf16.mxu0 0
    %4141 = vmatpush1.bf16.msra.mxu0 %v3448
    %4142 = vmatprep.subr.bf16.mxu0 0
    %4143 = vmatpush1.bf16.msra.mxu0 %v3453
    %4144 = vmatprep.subr.bf16.mxu0 0
    %4145 = vmatpush1.bf16.msra.mxu0 %v3458
    %4146 = vmatprep.subr.bf16.mxu0 0
    %4147 = vmatpush1.bf16.msra.mxu0 %v3463
    %4148 = vmatprep.subr.bf16.mxu0 0
    %4149 = vmatpush1.bf16.msra.mxu0 %v3468
    %4150 = vmatprep.subr.bf16.mxu0 0
    %4151 = vmatpush1.bf16.msra.mxu0 %v3473
    %4152 = vmatprep.mubr.bf16.mxu0 %v2306
    %4153 = vmatmul.mubr.bf16.gmra.mrb[0].mxu0 %v2305
    %v4154 = vpop.f32.mrb[0].mxu0
    %v4155 = vadd.f32 %v2620, %v4154
    %v4156 = vpop.f32.mrb[0].mxu0
    %v4157 = vpop.f32.mrb[0].mxu0
    %v4158 = vpop.f32.mrb[0].mxu0
    %4159 = vdwg.mxu0
    %4160 = vmatprep.subr.bf16.mxu0 0
    %4161 = vmatpush1.bf16.msra.mxu0 %v3478
    %4162 = vmatprep.subr.bf16.mxu0 0
    %4163 = vmatpush1.bf16.msra.mxu0 %v3483
    %4164 = vmatprep.subr.bf16.mxu0 0
    %4165 = vmatpush1.bf16.msra.mxu0 %v3488
    %4166 = vmatprep.subr.bf16.mxu0 0
    %4167 = vmatpush1.bf16.msra.mxu0 %v3493
    %4168 = vmatprep.subr.bf16.mxu0 0
    %4169 = vmatpush1.bf16.msra.mxu0 %v3498
    %4170 = vmatprep.subr.bf16.mxu0 0
    %4171 = vmatpush1.bf16.msra.mxu0 %v3503
    %4172 = vmatprep.subr.bf16.mxu0 0
    %4173 = vmatpush1.bf16.msra.mxu0 %v3508
    %4174 = vmatprep.subr.bf16.mxu0 0
    %4175 = vmatpush1.bf16.msra.mxu0 %v3513
    %4176 = vmatprep.subr.bf16.mxu0 0
    %4177 = vmatpush1.bf16.msra.mxu0 %v3518
    %4178 = vmatprep.subr.bf16.mxu0 0
    %4179 = vmatpush1.bf16.msra.mxu0 %v3523
    %4180 = vmatprep.subr.bf16.mxu0 0
    %4181 = vmatpush1.bf16.msra.mxu0 %v3528
    %4182 = vmatprep.subr.bf16.mxu0 0
    %4183 = vmatpush1.bf16.msra.mxu0 %v3533
    %4184 = vmatprep.subr.bf16.mxu0 0
    %4185 = vmatpush1.bf16.msra.mxu0 %v3538
    %4186 = vmatprep.subr.bf16.mxu0 0
    %4187 = vmatpush1.bf16.msra.mxu0 %v3543
    %4188 = vmatprep.subr.bf16.mxu0 0
    %4189 = vmatpush1.bf16.msra.mxu0 %v3548
    %4190 = vmatprep.subr.bf16.mxu0 0
    %4191 = vmatpush1.bf16.msra.mxu0 %v3553
    %4192 = vmatprep.mubr.bf16.mxu0 %v2308
    %4193 = vmatmul.mubr.bf16.gmra.mrb[0].mxu0 %v2307
    %v4194 = vpop.f32.mrb[0].mxu0
    %v4195 = vadd.f32 %v4155, %v4194
    %v4196 = vpop.f32.mrb[0].mxu0
    %v4197 = vpop.f32.mrb[0].mxu0
    %v4198 = vpop.f32.mrb[0].mxu0
    %4199 = vdwg.mxu0
    %4200 = vmatprep.subr.bf16.mxu0 0
    %4201 = vmatpush1.bf16.msra.mxu0 %v3558
    %4202 = vmatprep.subr.bf16.mxu0 0
    %4203 = vmatpush1.bf16.msra.mxu0 %v3563
    %4204 = vmatprep.subr.bf16.mxu0 0
    %4205 = vmatpush1.bf16.msra.mxu0 %v3568
    %4206 = vmatprep.subr.bf16.mxu0 0
    %4207 = vmatpush1.bf16.msra.mxu0 %v3573
    %4208 = vmatprep.subr.bf16.mxu0 0
    %4209 = vmatpush1.bf16.msra.mxu0 %v3578
    %4210 = vmatprep.subr.bf16.mxu0 0
    %4211 = vmatpush1.bf16.msra.mxu0 %v3583
    %4212 = vmatprep.subr.bf16.mxu0 0
    %4213 = vmatpush1.bf16.msra.mxu0 %v3588
    %4214 = vmatprep.subr.bf16.mxu0 0
    %4215 = vmatpush1.bf16.msra.mxu0 %v3593
    %4216 = vmatprep.subr.bf16.mxu0 0
    %4217 = vmatpush1.bf16.msra.mxu0 %v3598
    %4218 = vmatprep.subr.bf16.mxu0 0
    %4219 = vmatpush1.bf16.msra.mxu0 %v3603
    %4220 = vmatprep.subr.bf16.mxu0 0
    %4221 = vmatpush1.bf16.msra.mxu0 %v3608
    %4222 = vmatprep.subr.bf16.mxu0 0
    %4223 = vmatpush1.bf16.msra.mxu0 %v3613
    %4224 = vmatprep.subr.bf16.mxu0 0
    %4225 = vmatpush1.bf16.msra.mxu0 %v3618
    %4226 = vmatprep.subr.bf16.mxu0 0
    %4227 = vmatpush1.bf16.msra.mxu0 %v3623
    %4228 = vmatprep.subr.bf16.mxu0 0
    %4229 = vmatpush1.bf16.msra.mxu0 %v3628
    %4230 = vmatprep.subr.bf16.mxu0 0
    %4231 = vmatpush1.bf16.msra.mxu0 %v3633
    %4232 = vmatprep.mubr.bf16.mxu0 %v2310
    %4233 = vmatmul.mubr.bf16.gmra.mrb[0].mxu0 %v2309
    %v4234 = vpop.f32.mrb[0].mxu0
    %v4235 = vadd.f32 %v4195, %v4234
    %v4236 = vpop.f32.mrb[0].mxu0
    %v4237 = vpop.f32.mrb[0].mxu0
    %v4238 = vpop.f32.mrb[0].mxu0
    %4239 = vdwg.mxu0
    %v4240 = vmax.f32 %v3991, 0.0
    %v4241 = vmax.f32 %v3993, 0.0
    %v4242 = vmax.f32 %v4114, 0.0
    %v4243 = vmax.f32 %v4116, 0.0
    %v4244 = vmax.f32 %v4235, 0.0
    %v4245 = vpack.c.bf16 %v4240, %v4240
    %v4246 = vpack.c.bf16 %v4241, %v4241
    %v4247 = vpack.c.bf16 %v4242, %v4242
    %v4248 = vpack.c.bf16 %v4243, %v4243
    %v4249 = vpack.c.bf16 %v4244, %v4244
    %v4250 = vld [vmem:[#allocation11] sm:$0xff]
    %v4251 = vld [vmem:[#allocation11 + $0x8] sm:$0xff]
    %v4252 = vld [vmem:[#allocation11 + $0x10] sm:$0xff]
    %v4253 = vld [vmem:[#allocation11 + $0x18] sm:$0xff]
    %v4254 = vld [vmem:[#allocation11 + $0x20] sm:$0xff]
    %v4255 = vld [vmem:[#allocation11 + $0x28] sm:$0xff]
    %v4256 = vld [vmem:[#allocation11 + $0x30] sm:$0xff]
    %v4257 = vld [vmem:[#allocation11 + $0x38] sm:$0xff]
    %v4258 = vld [vmem:[#allocation11 + $0x40] sm:$0xff]
    %v4259 = vld [vmem:[#allocation11 + $0x48] sm:$0xff]
    %v4260 = vld [vmem:[#allocation11 + $0x50] sm:$0xff]
    %v4261 = vld [vmem:[#allocation11 + $0x58] sm:$0xff]
    %v4262 = vld [vmem:[#allocation11 + $0x60] sm:$0xff]
    %v4263 = vld [vmem:[#allocation11 + $0x68] sm:$0xff]
    %v4264 = vld [vmem:[#allocation11 + $0x70] sm:$0xff]
    %v4265 = vld [vmem:[#allocation11 + $0x78] sm:$0xff]
    %v4266 = vld [vmem:[#allocation11 + $0x80] sm:$0xff]
    %v4267 = vld [vmem:[#allocation11 + $0x88] sm:$0xff]
    %v4268 = vld [vmem:[#allocation11 + $0x90] sm:$0xff]
    %v4269 = vld [vmem:[#allocation11 + $0x98] sm:$0xff]
    %v4270 = vld [vmem:[#allocation11 + $0xa0] sm:$0xff]
    %v4271 = vld [vmem:[#allocation11 + $0xa8] sm:$0xff]
    %v4272 = vld [vmem:[#allocation11 + $0xb0] sm:$0xff]
    %v4273 = vld [vmem:[#allocation11 + $0xb8] sm:$0xff]
    %v4274 = vld [vmem:[#allocation11 + $0xc0] sm:$0xff]
    %v4275 = vld [vmem:[#allocation11 + $0xc8] sm:$0xff]
    %v4276 = vld [vmem:[#allocation11 + $0xd0] sm:$0xff]
    %v4277 = vld [vmem:[#allocation11 + $0xd8] sm:$0xff]
    %v4278 = vld [vmem:[#allocation11 + $0xe0] sm:$0xff]
    %v4279 = vld [vmem:[#allocation11 + $0xe8] sm:$0xff]
    %v4280 = vld [vmem:[#allocation11 + $0xf0] sm:$0xff]
    %v4281 = vld [vmem:[#allocation11 + $0xf8] sm:$0xff]
    %v4282 = vld [vmem:[#allocation11 + $0x100] sm:$0xff]
    %v4283 = vld [vmem:[#allocation11 + $0x108] sm:$0xff]
    %v4284 = vld [vmem:[#allocation11 + $0x110] sm:$0xff]
    %v4285 = vld [vmem:[#allocation11 + $0x118] sm:$0xff]
    %v4286 = vld [vmem:[#allocation11 + $0x120] sm:$0xff]
    %v4287 = vld [vmem:[#allocation11 + $0x128] sm:$0xff]
    %v4288 = vld [vmem:[#allocation11 + $0x130] sm:$0xff]
    %v4289 = vld [vmem:[#allocation11 + $0x138] sm:$0xff]
    %v4290 = vld [vmem:[#allocation11 + $0x140] sm:$0xff]
    %v4291 = vld [vmem:[#allocation11 + $0x148] sm:$0xff]
    %v4292 = vld [vmem:[#allocation11 + $0x150] sm:$0xff]
    %v4293 = vld [vmem:[#allocation11 + $0x158] sm:$0xff]
    %v4294 = vld [vmem:[#allocation11 + $0x160] sm:$0xff]
    %v4295 = vld [vmem:[#allocation11 + $0x168] sm:$0xff]
    %v4296 = vld [vmem:[#allocation11 + $0x170] sm:$0xff]
    %v4297 = vld [vmem:[#allocation11 + $0x178] sm:$0xff]
    %v4298 = vld [vmem:[#allocation11 + $0x180] sm:$0xff]
    %v4299 = vld [vmem:[#allocation11 + $0x188] sm:$0xff]
    %v4300 = vld [vmem:[#allocation11 + $0x190] sm:$0xff]
    %v4301 = vld [vmem:[#allocation11 + $0x198] sm:$0xff]
    %v4302 = vld [vmem:[#allocation11 + $0x1a0] sm:$0xff]
    %v4303 = vld [vmem:[#allocation11 + $0x1a8] sm:$0xff]
    %v4304 = vld [vmem:[#allocation11 + $0x1b0] sm:$0xff]
    %v4305 = vld [vmem:[#allocation11 + $0x1b8] sm:$0xff]
    %v4306 = vld [vmem:[#allocation11 + $0x1c0] sm:$0xff]
    %v4307 = vld [vmem:[#allocation11 + $0x1c8] sm:$0xff]
    %v4308 = vld [vmem:[#allocation11 + $0x1d0] sm:$0xff]
    %v4309 = vld [vmem:[#allocation11 + $0x1d8] sm:$0xff]
    %v4310 = vld [vmem:[#allocation11 + $0x1e0] sm:$0xff]
    %v4311 = vld [vmem:[#allocation11 + $0x1e8] sm:$0xff]
    %v4312 = vld [vmem:[#allocation11 + $0x1f0] sm:$0xff]
    %v4313 = vld [vmem:[#allocation11 + $0x1f8] sm:$0xff]
    %v4314 = vld [vmem:[#allocation11 + $0x200] sm:$0xff]
    %v4315 = vld [vmem:[#allocation11 + $0x208] sm:$0xff]
    %v4316 = vld [vmem:[#allocation11 + $0x210] sm:$0xff]
    %v4317 = vld [vmem:[#allocation11 + $0x218] sm:$0xff]
    %v4318 = vld [vmem:[#allocation11 + $0x220] sm:$0xff]
    %v4319 = vld [vmem:[#allocation11 + $0x228] sm:$0xff]
    %v4320 = vld [vmem:[#allocation11 + $0x230] sm:$0xff]
    %v4321 = vld [vmem:[#allocation11 + $0x238] sm:$0xff]
    %v4322 = vld [vmem:[#allocation11 + $0x240] sm:$0xff]
    %v4323 = vld [vmem:[#allocation11 + $0x248] sm:$0xff]
    %v4324 = vld [vmem:[#allocation11 + $0x250] sm:$0xff]
    %v4325 = vld [vmem:[#allocation11 + $0x258] sm:$0xff]
    %v4326 = vld [vmem:[#allocation11 + $0x260] sm:$0xff]
    %v4327 = vld [vmem:[#allocation11 + $0x268] sm:$0xff]
    %v4328 = vld [vmem:[#allocation11 + $0x270] sm:$0xff]
    %v4329 = vld [vmem:[#allocation11 + $0x278] sm:$0xff]
    %v4330 = vld [vmem:[#allocation11 + $0x280] sm:$0xff]
    %v4331 = vld [vmem:[#allocation11 + $0x288] sm:$0xff]
    %v4332 = vld [vmem:[#allocation11 + $0x290] sm:$0xff]
    %v4333 = vld [vmem:[#allocation11 + $0x298] sm:$0xff]
    %v4334 = vld [vmem:[#allocation11 + $0x2a0] sm:$0xff]
    %v4335 = vld [vmem:[#allocation11 + $0x2a8] sm:$0xff]
    %v4336 = vld [vmem:[#allocation11 + $0x2b0] sm:$0xff]
    %v4337 = vld [vmem:[#allocation11 + $0x2b8] sm:$0xff]
    %v4338 = vld [vmem:[#allocation11 + $0x2c0] sm:$0xff]
    %v4339 = vld [vmem:[#allocation11 + $0x2c8] sm:$0xff]
    %v4340 = vld [vmem:[#allocation11 + $0x2d0] sm:$0xff]
    %v4341 = vld [vmem:[#allocation11 + $0x2d8] sm:$0xff]
    %v4342 = vld [vmem:[#allocation11 + $0x2e0] sm:$0xff]
    %v4343 = vld [vmem:[#allocation11 + $0x2e8] sm:$0xff]
    %v4344 = vld [vmem:[#allocation11 + $0x2f0] sm:$0xff]
    %v4345 = vld [vmem:[#allocation11 + $0x2f8] sm:$0xff]
    %v4346 = vld [vmem:[#allocation11 + $0x300] sm:$0xff]
    %v4347 = vld [vmem:[#allocation11 + $0x308] sm:$0xff]
    %v4348 = vld [vmem:[#allocation11 + $0x310] sm:$0xff]
    %v4349 = vld [vmem:[#allocation11 + $0x318] sm:$0xff]
    %v4350 = vld [vmem:[#allocation11 + $0x320] sm:$0xff]
    %v4351 = vld [vmem:[#allocation11 + $0x328] sm:$0xff]
    %v4352 = vld [vmem:[#allocation11 + $0x330] sm:$0xff]
    %v4353 = vld [vmem:[#allocation11 + $0x338] sm:$0xff]
    %v4354 = vld [vmem:[#allocation11 + $0x340] sm:$0xff]
    %v4355 = vld [vmem:[#allocation11 + $0x348] sm:$0xff]
    %v4356 = vld [vmem:[#allocation11 + $0x350] sm:$0xff]
    %v4357 = vld [vmem:[#allocation11 + $0x358] sm:$0xff]
    %v4358 = vld [vmem:[#allocation11 + $0x360] sm:$0xff]
    %v4359 = vld [vmem:[#allocation11 + $0x368] sm:$0xff]
    %v4360 = vld [vmem:[#allocation11 + $0x370] sm:$0xff]
    %v4361 = vld [vmem:[#allocation11 + $0x378] sm:$0xff]
    %v4362 = vld [vmem:[#allocation11 + $0x380] sm:$0xff]
    %v4363 = vld [vmem:[#allocation11 + $0x388] sm:$0xff]
    %v4364 = vld [vmem:[#allocation11 + $0x390] sm:$0xff]
    %v4365 = vld [vmem:[#allocation11 + $0x398] sm:$0xff]
    %v4366 = vld [vmem:[#allocation11 + $0x3a0] sm:$0xff]
    %v4367 = vld [vmem:[#allocation11 + $0x3a8] sm:$0xff]
    %v4368 = vld [vmem:[#allocation11 + $0x3b0] sm:$0xff]
    %v4369 = vld [vmem:[#allocation11 + $0x3b8] sm:$0xff]
    %v4370 = vld [vmem:[#allocation11 + $0x3c0] sm:$0xff]
    %v4371 = vld [vmem:[#allocation11 + $0x3c8] sm:$0xff]
    %v4372 = vld [vmem:[#allocation11 + $0x3d0] sm:$0xff]
    %v4373 = vld [vmem:[#allocation11 + $0x3d8] sm:$0xff]
    %v4374 = vld [vmem:[#allocation11 + $0x3e0] sm:$0xff]
    %v4375 = vld [vmem:[#allocation11 + $0x3e8] sm:$0xff]
    %v4376 = vld [vmem:[#allocation11 + $0x3f0] sm:$0xff]
    %v4377 = vld [vmem:[#allocation11 + $0x3f8] sm:$0xff]
    %v4378 = vld [vmem:[#allocation11 + $0x400] sm:$0xff]
    %v4379 = vld [vmem:[#allocation11 + $0x408] sm:$0xff]
    %v4380 = vld [vmem:[#allocation11 + $0x410] sm:$0xff]
    %v4381 = vld [vmem:[#allocation11 + $0x418] sm:$0xff]
    %v4382 = vld [vmem:[#allocation11 + $0x420] sm:$0xff]
    %v4383 = vld [vmem:[#allocation11 + $0x428] sm:$0xff]
    %v4384 = vld [vmem:[#allocation11 + $0x430] sm:$0xff]
    %v4385 = vld [vmem:[#allocation11 + $0x438] sm:$0xff]
    %v4386 = vld [vmem:[#allocation11 + $0x440] sm:$0xff]
    %v4387 = vld [vmem:[#allocation11 + $0x448] sm:$0xff]
    %v4388 = vld [vmem:[#allocation11 + $0x450] sm:$0xff]
    %v4389 = vld [vmem:[#allocation11 + $0x458] sm:$0xff]
    %v4390 = vld [vmem:[#allocation11 + $0x460] sm:$0xff]
    %v4391 = vld [vmem:[#allocation11 + $0x468] sm:$0xff]
    %v4392 = vld [vmem:[#allocation11 + $0x470] sm:$0xff]
    %v4393 = vld [vmem:[#allocation11 + $0x478] sm:$0xff]
    %v4394 = vld [vmem:[#allocation11 + $0x480] sm:$0xff]
    %v4395 = vld [vmem:[#allocation11 + $0x488] sm:$0xff]
    %v4396 = vld [vmem:[#allocation11 + $0x490] sm:$0xff]
    %v4397 = vld [vmem:[#allocation11 + $0x498] sm:$0xff]
    %v4398 = vld [vmem:[#allocation11 + $0x4a0] sm:$0xff]
    %v4399 = vld [vmem:[#allocation11 + $0x4a8] sm:$0xff]
    %v4400 = vld [vmem:[#allocation11 + $0x4b0] sm:$0xff]
    %v4401 = vld [vmem:[#allocation11 + $0x4b8] sm:$0xff]
    %v4402 = vld [vmem:[#allocation11 + $0x4c0] sm:$0xff]
    %v4403 = vld [vmem:[#allocation11 + $0x4c8] sm:$0xff]
    %v4404 = vld [vmem:[#allocation11 + $0x4d0] sm:$0xff]
    %v4405 = vld [vmem:[#allocation11 + $0x4d8] sm:$0xff]
    %v4406 = vld [vmem:[#allocation11 + $0x4e0] sm:$0xff]
    %v4407 = vld [vmem:[#allocation11 + $0x4e8] sm:$0xff]
    %v4408 = vld [vmem:[#allocation11 + $0x4f0] sm:$0xff]
    %v4409 = vld [vmem:[#allocation11 + $0x4f8] sm:$0xff]
    %v4410 = vld [vmem:[#allocation13] sm:$0xf]
    %v4412 = vlaneseq
    %v4413 = vshrl.u32 %v4412, 7
    %v4414 = vsub.s32 0, %v4413
    %v4415 = vrot.slane %v4410, %v4414
    %v4416 = vlaneseq
    %v4417 = vshrl.u32 %v4416, 7
    %v4418 = vsub.s32 1, %v4417
    %v4419 = vrot.slane %v4410, %v4418
    %v4420 = vlaneseq
    %v4421 = vshrl.u32 %v4420, 7
    %v4422 = vsub.s32 2, %v4421
    %v4423 = vrot.slane %v4410, %v4422
    %v4424 = vlaneseq
    %v4425 = vshrl.u32 %v4424, 7
    %v4426 = vsub.s32 3, %v4425
    %v4427 = vrot.slane %v4410, %v4426
    %v4592 = vunpack.c.l.b16 %v4250
    %v4593 = vunpack.c.h.b16 %v4250
    %v4594 = vunpack.c.l.b16 %v4251
    %v4595 = vunpack.c.h.b16 %v4251
    %v4596 = vunpack.c.l.b16 %v4252
    %v4597 = vunpack.c.h.b16 %v4252
    %v4598 = vunpack.c.l.b16 %v4253
    %v4599 = vunpack.c.h.b16 %v4253
    %v4600 = vunpack.c.l.b16 %v4254
    %v4601 = vunpack.c.h.b16 %v4254
    %v4602 = vunpack.c.l.b16 %v4255
    %v4603 = vunpack.c.h.b16 %v4255
    %v4604 = vunpack.c.l.b16 %v4256
    %v4605 = vunpack.c.h.b16 %v4256
    %v4606 = vunpack.c.l.b16 %v4257
    %v4607 = vunpack.c.h.b16 %v4257
    %v4608 = vunpack.c.l.b16 %v4258
    %v4609 = vunpack.c.h.b16 %v4258
    %v4610 = vunpack.c.l.b16 %v4259
    %v4611 = vunpack.c.h.b16 %v4259
    %v4612 = vunpack.c.l.b16 %v4260
    %v4613 = vunpack.c.h.b16 %v4260
    %v4614 = vunpack.c.l.b16 %v4261
    %v4615 = vunpack.c.h.b16 %v4261
    %v4616 = vunpack.c.l.b16 %v4262
    %v4617 = vunpack.c.h.b16 %v4262
    %v4618 = vunpack.c.l.b16 %v4263
    %v4619 = vunpack.c.h.b16 %v4263
    %v4620 = vunpack.c.l.b16 %v4264
    %v4621 = vunpack.c.h.b16 %v4264
    %v4622 = vunpack.c.l.b16 %v4265
    %v4623 = vunpack.c.h.b16 %v4265
    %v4624 = vunpack.c.l.b16 %v4266
    %v4625 = vunpack.c.h.b16 %v4266
    %v4626 = vunpack.c.l.b16 %v4267
    %v4627 = vunpack.c.h.b16 %v4267
    %v4628 = vunpack.c.l.b16 %v4268
    %v4629 = vunpack.c.h.b16 %v4268
    %v4630 = vunpack.c.l.b16 %v4269
    %v4631 = vunpack.c.h.b16 %v4269
    %v4632 = vunpack.c.l.b16 %v4270
    %v4633 = vunpack.c.h.b16 %v4270
    %v4634 = vunpack.c.l.b16 %v4271
    %v4635 = vunpack.c.h.b16 %v4271
    %v4636 = vunpack.c.l.b16 %v4272
    %v4637 = vunpack.c.h.b16 %v4272
    %v4638 = vunpack.c.l.b16 %v4273
    %v4639 = vunpack.c.h.b16 %v4273
    %v4640 = vunpack.c.l.b16 %v4274
    %v4641 = vunpack.c.h.b16 %v4274
    %v4642 = vunpack.c.l.b16 %v4275
    %v4643 = vunpack.c.h.b16 %v4275
    %v4644 = vunpack.c.l.b16 %v4276
    %v4645 = vunpack.c.h.b16 %v4276
    %v4646 = vunpack.c.l.b16 %v4277
    %v4647 = vunpack.c.h.b16 %v4277
    %v4648 = vunpack.c.l.b16 %v4278
    %v4649 = vunpack.c.h.b16 %v4278
    %v4650 = vunpack.c.l.b16 %v4279
    %v4651 = vunpack.c.h.b16 %v4279
    %v4652 = vunpack.c.l.b16 %v4280
    %v4653 = vunpack.c.h.b16 %v4280
    %v4654 = vunpack.c.l.b16 %v4281
    %v4655 = vunpack.c.h.b16 %v4281
    %v4656 = vunpack.c.l.b16 %v4282
    %v4657 = vunpack.c.h.b16 %v4282
    %v4658 = vunpack.c.l.b16 %v4283
    %v4659 = vunpack.c.h.b16 %v4283
    %v4660 = vunpack.c.l.b16 %v4284
    %v4661 = vunpack.c.h.b16 %v4284
    %v4662 = vunpack.c.l.b16 %v4285
    %v4663 = vunpack.c.h.b16 %v4285
    %v4664 = vunpack.c.l.b16 %v4286
    %v4665 = vunpack.c.h.b16 %v4286
    %v4666 = vunpack.c.l.b16 %v4287
    %v4667 = vunpack.c.h.b16 %v4287
    %v4668 = vunpack.c.l.b16 %v4288
    %v4669 = vunpack.c.h.b16 %v4288
    %v4670 = vunpack.c.l.b16 %v4289
    %v4671 = vunpack.c.h.b16 %v4289
    %v4672 = vunpack.c.l.b16 %v4290
    %v4673 = vunpack.c.h.b16 %v4290
    %v4674 = vunpack.c.l.b16 %v4291
    %v4675 = vunpack.c.h.b16 %v4291
    %v4676 = vunpack.c.l.b16 %v4292
    %v4677 = vunpack.c.h.b16 %v4292
    %v4678 = vunpack.c.l.b16 %v4293
    %v4679 = vunpack.c.h.b16 %v4293
    %v4680 = vunpack.c.l.b16 %v4294
    %v4681 = vunpack.c.h.b16 %v4294
    %v4682 = vunpack.c.l.b16 %v4295
    %v4683 = vunpack.c.h.b16 %v4295
    %v4684 = vunpack.c.l.b16 %v4296
    %v4685 = vunpack.c.h.b16 %v4296
    %v4686 = vunpack.c.l.b16 %v4297
    %v4687 = vunpack.c.h.b16 %v4297
    %v4688 = vunpack.c.l.b16 %v4298
    %v4689 = vunpack.c.h.b16 %v4298
    %v4690 = vunpack.c.l.b16 %v4299
    %v4691 = vunpack.c.h.b16 %v4299
    %v4692 = vunpack.c.l.b16 %v4300
    %v4693 = vunpack.c.h.b16 %v4300
    %v4694 = vunpack.c.l.b16 %v4301
    %v4695 = vunpack.c.h.b16 %v4301
    %v4696 = vunpack.c.l.b16 %v4302
    %v4697 = vunpack.c.h.b16 %v4302
    %v4698 = vunpack.c.l.b16 %v4303
    %v4699 = vunpack.c.h.b16 %v4303
    %v4700 = vunpack.c.l.b16 %v4304
    %v4701 = vunpack.c.h.b16 %v4304
    %v4702 = vunpack.c.l.b16 %v4305
    %v4703 = vunpack.c.h.b16 %v4305
    %v4704 = vunpack.c.l.b16 %v4306
    %v4705 = vunpack.c.h.b16 %v4306
    %v4706 = vunpack.c.l.b16 %v4307
    %v4707 = vunpack.c.h.b16 %v4307
    %v4708 = vunpack.c.l.b16 %v4308
    %v4709 = vunpack.c.h.b16 %v4308
    %v4710 = vunpack.c.l.b16 %v4309
    %v4711 = vunpack.c.h.b16 %v4309
    %v4712 = vunpack.c.l.b16 %v4310
    %v4713 = vunpack.c.h.b16 %v4310
    %v4714 = vunpack.c.l.b16 %v4311
    %v4715 = vunpack.c.h.b16 %v4311
    %v4716 = vunpack.c.l.b16 %v4312
    %v4717 = vunpack.c.h.b16 %v4312
    %v4718 = vunpack.c.l.b16 %v4313
    %v4719 = vunpack.c.h.b16 %v4313
    %v4720 = vunpack.c.l.b16 %v4314
    %v4721 = vunpack.c.h.b16 %v4314
    %v4722 = vunpack.c.l.b16 %v4315
    %v4723 = vunpack.c.h.b16 %v4315
    %v4724 = vunpack.c.l.b16 %v4316
    %v4725 = vunpack.c.h.b16 %v4316
    %v4726 = vunpack.c.l.b16 %v4317
    %v4727 = vunpack.c.h.b16 %v4317
    %v4728 = vunpack.c.l.b16 %v4318
    %v4729 = vunpack.c.h.b16 %v4318
    %v4730 = vunpack.c.l.b16 %v4319
    %v4731 = vunpack.c.h.b16 %v4319
    %v4732 = vunpack.c.l.b16 %v4320
    %v4733 = vunpack.c.h.b16 %v4320
    %v4734 = vunpack.c.l.b16 %v4321
    %v4735 = vunpack.c.h.b16 %v4321
    %v4736 = vunpack.c.l.b16 %v4322
    %v4737 = vunpack.c.h.b16 %v4322
    %v4738 = vunpack.c.l.b16 %v4323
    %v4739 = vunpack.c.h.b16 %v4323
    %v4740 = vunpack.c.l.b16 %v4324
    %v4741 = vunpack.c.h.b16 %v4324
    %v4742 = vunpack.c.l.b16 %v4325
    %v4743 = vunpack.c.h.b16 %v4325
    %v4744 = vunpack.c.l.b16 %v4326
    %v4745 = vunpack.c.h.b16 %v4326
    %v4746 = vunpack.c.l.b16 %v4327
    %v4747 = vunpack.c.h.b16 %v4327
    %v4748 = vunpack.c.l.b16 %v4328
    %v4749 = vunpack.c.h.b16 %v4328
    %v4750 = vunpack.c.l.b16 %v4329
    %v4751 = vunpack.c.h.b16 %v4329
    %v4752 = vunpack.c.l.b16 %v4330
    %v4753 = vunpack.c.h.b16 %v4330
    %v4754 = vunpack.c.l.b16 %v4331
    %v4755 = vunpack.c.h.b16 %v4331
    %v4756 = vunpack.c.l.b16 %v4332
    %v4757 = vunpack.c.h.b16 %v4332
    %v4758 = vunpack.c.l.b16 %v4333
    %v4759 = vunpack.c.h.b16 %v4333
    %v4760 = vunpack.c.l.b16 %v4334
    %v4761 = vunpack.c.h.b16 %v4334
    %v4762 = vunpack.c.l.b16 %v4335
    %v4763 = vunpack.c.h.b16 %v4335
    %v4764 = vunpack.c.l.b16 %v4336
    %v4765 = vunpack.c.h.b16 %v4336
    %v4766 = vunpack.c.l.b16 %v4337
    %v4767 = vunpack.c.h.b16 %v4337
    %v4768 = vunpack.c.l.b16 %v4338
    %v4769 = vunpack.c.h.b16 %v4338
    %v4770 = vunpack.c.l.b16 %v4339
    %v4771 = vunpack.c.h.b16 %v4339
    %v4772 = vunpack.c.l.b16 %v4340
    %v4773 = vunpack.c.h.b16 %v4340
    %v4774 = vunpack.c.l.b16 %v4341
    %v4775 = vunpack.c.h.b16 %v4341
    %v4776 = vunpack.c.l.b16 %v4342
    %v4777 = vunpack.c.h.b16 %v4342
    %v4778 = vunpack.c.l.b16 %v4343
    %v4779 = vunpack.c.h.b16 %v4343
    %v4780 = vunpack.c.l.b16 %v4344
    %v4781 = vunpack.c.h.b16 %v4344
    %v4782 = vunpack.c.l.b16 %v4345
    %v4783 = vunpack.c.h.b16 %v4345
    %v4784 = vunpack.c.l.b16 %v4346
    %v4785 = vunpack.c.h.b16 %v4346
    %v4786 = vunpack.c.l.b16 %v4347
    %v4787 = vunpack.c.h.b16 %v4347
    %v4788 = vunpack.c.l.b16 %v4348
    %v4789 = vunpack.c.h.b16 %v4348
    %v4790 = vunpack.c.l.b16 %v4349
    %v4791 = vunpack.c.h.b16 %v4349
    %v4792 = vunpack.c.l.b16 %v4350
    %v4793 = vunpack.c.h.b16 %v4350
    %v4794 = vunpack.c.l.b16 %v4351
    %v4795 = vunpack.c.h.b16 %v4351
    %v4796 = vunpack.c.l.b16 %v4352
    %v4797 = vunpack.c.h.b16 %v4352
    %v4798 = vunpack.c.l.b16 %v4353
    %v4799 = vunpack.c.h.b16 %v4353
    %v4800 = vunpack.c.l.b16 %v4354
    %v4801 = vunpack.c.h.b16 %v4354
    %v4802 = vunpack.c.l.b16 %v4355
    %v4803 = vunpack.c.h.b16 %v4355
    %v4804 = vunpack.c.l.b16 %v4356
    %v4805 = vunpack.c.h.b16 %v4356
    %v4806 = vunpack.c.l.b16 %v4357
    %v4807 = vunpack.c.h.b16 %v4357
    %v4808 = vunpack.c.l.b16 %v4358
    %v4809 = vunpack.c.h.b16 %v4358
    %v4810 = vunpack.c.l.b16 %v4359
    %v4811 = vunpack.c.h.b16 %v4359
    %v4812 = vunpack.c.l.b16 %v4360
    %v4813 = vunpack.c.h.b16 %v4360
    %v4814 = vunpack.c.l.b16 %v4361
    %v4815 = vunpack.c.h.b16 %v4361
    %v4816 = vunpack.c.l.b16 %v4362
    %v4817 = vunpack.c.h.b16 %v4362
    %v4818 = vunpack.c.l.b16 %v4363
    %v4819 = vunpack.c.h.b16 %v4363
    %v4820 = vunpack.c.l.b16 %v4364
    %v4821 = vunpack.c.h.b16 %v4364
    %v4822 = vunpack.c.l.b16 %v4365
    %v4823 = vunpack.c.h.b16 %v4365
    %v4824 = vunpack.c.l.b16 %v4366
    %v4825 = vunpack.c.h.b16 %v4366
    %v4826 = vunpack.c.l.b16 %v4367
    %v4827 = vunpack.c.h.b16 %v4367
    %v4828 = vunpack.c.l.b16 %v4368
    %v4829 = vunpack.c.h.b16 %v4368
    %v4830 = vunpack.c.l.b16 %v4369
    %v4831 = vunpack.c.h.b16 %v4369
    %v4832 = vunpack.c.l.b16 %v4370
    %v4833 = vunpack.c.h.b16 %v4370
    %v4834 = vunpack.c.l.b16 %v4371
    %v4835 = vunpack.c.h.b16 %v4371
    %v4836 = vunpack.c.l.b16 %v4372
    %v4837 = vunpack.c.h.b16 %v4372
    %v4838 = vunpack.c.l.b16 %v4373
    %v4839 = vunpack.c.h.b16 %v4373
    %v4840 = vunpack.c.l.b16 %v4374
    %v4841 = vunpack.c.h.b16 %v4374
    %v4842 = vunpack.c.l.b16 %v4375
    %v4843 = vunpack.c.h.b16 %v4375
    %v4844 = vunpack.c.l.b16 %v4376
    %v4845 = vunpack.c.h.b16 %v4376
    %v4846 = vunpack.c.l.b16 %v4377
    %v4847 = vunpack.c.h.b16 %v4377
    %v4848 = vunpack.c.l.b16 %v4378
    %v4849 = vunpack.c.h.b16 %v4378
    %v4850 = vunpack.c.l.b16 %v4379
    %v4851 = vunpack.c.h.b16 %v4379
    %v4852 = vunpack.c.l.b16 %v4380
    %v4853 = vunpack.c.h.b16 %v4380
    %v4854 = vunpack.c.l.b16 %v4381
    %v4855 = vunpack.c.h.b16 %v4381
    %v4856 = vunpack.c.l.b16 %v4382
    %v4857 = vunpack.c.h.b16 %v4382
    %v4858 = vunpack.c.l.b16 %v4383
    %v4859 = vunpack.c.h.b16 %v4383
    %v4860 = vunpack.c.l.b16 %v4384
    %v4861 = vunpack.c.h.b16 %v4384
    %v4862 = vunpack.c.l.b16 %v4385
    %v4863 = vunpack.c.h.b16 %v4385
    %v4864 = vunpack.c.l.b16 %v4386
    %v4865 = vunpack.c.h.b16 %v4386
    %v4866 = vunpack.c.l.b16 %v4387
    %v4867 = vunpack.c.h.b16 %v4387
    %v4868 = vunpack.c.l.b16 %v4388
    %v4869 = vunpack.c.h.b16 %v4388
    %v4870 = vunpack.c.l.b16 %v4389
    %v4871 = vunpack.c.h.b16 %v4389
    %v4872 = vunpack.c.l.b16 %v4390
    %v4873 = vunpack.c.h.b16 %v4390
    %v4874 = vunpack.c.l.b16 %v4391
    %v4875 = vunpack.c.h.b16 %v4391
    %v4876 = vunpack.c.l.b16 %v4392
    %v4877 = vunpack.c.h.b16 %v4392
    %v4878 = vunpack.c.l.b16 %v4393
    %v4879 = vunpack.c.h.b16 %v4393
    %v4880 = vunpack.c.l.b16 %v4394
    %v4881 = vunpack.c.h.b16 %v4394
    %v4882 = vunpack.c.l.b16 %v4395
    %v4883 = vunpack.c.h.b16 %v4395
    %v4884 = vunpack.c.l.b16 %v4396
    %v4885 = vunpack.c.h.b16 %v4396
    %v4886 = vunpack.c.l.b16 %v4397
    %v4887 = vunpack.c.h.b16 %v4397
    %v4888 = vunpack.c.l.b16 %v4398
    %v4889 = vunpack.c.h.b16 %v4398
    %v4890 = vunpack.c.l.b16 %v4399
    %v4891 = vunpack.c.h.b16 %v4399
    %v4892 = vunpack.c.l.b16 %v4400
    %v4893 = vunpack.c.h.b16 %v4400
    %v4894 = vunpack.c.l.b16 %v4401
    %v4895 = vunpack.c.h.b16 %v4401
    %v4896 = vunpack.c.l.b16 %v4402
    %v4897 = vunpack.c.h.b16 %v4402
    %v4898 = vunpack.c.l.b16 %v4403
    %v4899 = vunpack.c.h.b16 %v4403
    %v4900 = vunpack.c.l.b16 %v4404
    %v4901 = vunpack.c.h.b16 %v4404
    %v4902 = vunpack.c.l.b16 %v4405
    %v4903 = vunpack.c.h.b16 %v4405
    %v4904 = vunpack.c.l.b16 %v4406
    %v4905 = vunpack.c.h.b16 %v4406
    %v4906 = vunpack.c.l.b16 %v4407
    %v4907 = vunpack.c.h.b16 %v4407
    %v4908 = vunpack.c.l.b16 %v4408
    %v4909 = vunpack.c.h.b16 %v4408
    %v4910 = vunpack.c.l.b16 %v4409
    %v4911 = vunpack.c.h.b16 %v4409
    %v4912 = vpack.c.b16 %v4596, %v4592
    %v4913 = vpack.c.b16 %v4597, %v4593
    %v4914 = vpack.c.b16 %v4598, %v4594
    %v4915 = vpack.c.b16 %v4599, %v4595
    %v4916 = vpack.c.b16 %v4604, %v4600
    %v4917 = vpack.c.b16 %v4605, %v4601
    %v4918 = vpack.c.b16 %v4606, %v4602
    %v4919 = vpack.c.b16 %v4607, %v4603
    %v4920 = vpack.c.b16 %v4612, %v4608
    %v4921 = vpack.c.b16 %v4613, %v4609
    %v4922 = vpack.c.b16 %v4614, %v4610
    %v4923 = vpack.c.b16 %v4615, %v4611
    %v4924 = vpack.c.b16 %v4620, %v4616
    %v4925 = vpack.c.b16 %v4621, %v4617
    %v4926 = vpack.c.b16 %v4622, %v4618
    %v4927 = vpack.c.b16 %v4623, %v4619
    %v4928 = vpack.c.b16 %v4628, %v4624
    %v4929 = vpack.c.b16 %v4629, %v4625
    %v4930 = vpack.c.b16 %v4630, %v4626
    %v4931 = vpack.c.b16 %v4631, %v4627
    %v4932 = vpack.c.b16 %v4636, %v4632
    %v4933 = vpack.c.b16 %v4637, %v4633
    %v4934 = vpack.c.b16 %v4638, %v4634
    %v4935 = vpack.c.b16 %v4639, %v4635
    %v4936 = vpack.c.b16 %v4644, %v4640
    %v4937 = vpack.c.b16 %v4645, %v4641
    %v4938 = vpack.c.b16 %v4646, %v4642
    %v4939 = vpack.c.b16 %v4647, %v4643
    %v4940 = vpack.c.b16 %v4652, %v4648
    %v4941 = vpack.c.b16 %v4653, %v4649
    %v4942 = vpack.c.b16 %v4654, %v4650
    %v4943 = vpack.c.b16 %v4655, %v4651
    %v4944 = vpack.c.b16 %v4660, %v4656
    %v4945 = vpack.c.b16 %v4661, %v4657
    %v4946 = vpack.c.b16 %v4662, %v4658
    %v4947 = vpack.c.b16 %v4663, %v4659
    %v4948 = vpack.c.b16 %v4668, %v4664
    %v4949 = vpack.c.b16 %v4669, %v4665
    %v4950 = vpack.c.b16 %v4670, %v4666
    %v4951 = vpack.c.b16 %v4671, %v4667
    %v4952 = vpack.c.b16 %v4676, %v4672
    %v4953 = vpack.c.b16 %v4677, %v4673
    %v4954 = vpack.c.b16 %v4678, %v4674
    %v4955 = vpack.c.b16 %v4679, %v4675
    %v4956 = vpack.c.b16 %v4684, %v4680
    %v4957 = vpack.c.b16 %v4685, %v4681
    %v4958 = vpack.c.b16 %v4686, %v4682
    %v4959 = vpack.c.b16 %v4687, %v4683
    %v4960 = vpack.c.b16 %v4692, %v4688
    %v4961 = vpack.c.b16 %v4693, %v4689
    %v4962 = vpack.c.b16 %v4694, %v4690
    %v4963 = vpack.c.b16 %v4695, %v4691
    %v4964 = vpack.c.b16 %v4700, %v4696
    %v4965 = vpack.c.b16 %v4701, %v4697
    %v4966 = vpack.c.b16 %v4702, %v4698
    %v4967 = vpack.c.b16 %v4703, %v4699
    %v4968 = vpack.c.b16 %v4708, %v4704
    %v4969 = vpack.c.b16 %v4709, %v4705
    %v4970 = vpack.c.b16 %v4710, %v4706
    %v4971 = vpack.c.b16 %v4711, %v4707
    %v4972 = vpack.c.b16 %v4716, %v4712
    %v4973 = vpack.c.b16 %v4717, %v4713
    %v4974 = vpack.c.b16 %v4718, %v4714
    %v4975 = vpack.c.b16 %v4719, %v4715
    %v4976 = vpack.c.b16 %v4724, %v4720
    %v4977 = vpack.c.b16 %v4725, %v4721
    %v4978 = vpack.c.b16 %v4726, %v4722
    %v4979 = vpack.c.b16 %v4727, %v4723
    %v4980 = vpack.c.b16 %v4732, %v4728
    %v4981 = vpack.c.b16 %v4733, %v4729
    %v4982 = vpack.c.b16 %v4734, %v4730
    %v4983 = vpack.c.b16 %v4735, %v4731
    %v4984 = vpack.c.b16 %v4740, %v4736
    %v4985 = vpack.c.b16 %v4741, %v4737
    %v4986 = vpack.c.b16 %v4742, %v4738
    %v4987 = vpack.c.b16 %v4743, %v4739
    %v4988 = vpack.c.b16 %v4748, %v4744
    %v4989 = vpack.c.b16 %v4749, %v4745
    %v4990 = vpack.c.b16 %v4750, %v4746
    %v4991 = vpack.c.b16 %v4751, %v4747
    %v4992 = vpack.c.b16 %v4756, %v4752
    %v4993 = vpack.c.b16 %v4757, %v4753
    %v4994 = vpack.c.b16 %v4758, %v4754
    %v4995 = vpack.c.b16 %v4759, %v4755
    %v4996 = vpack.c.b16 %v4764, %v4760
    %v4997 = vpack.c.b16 %v4765, %v4761
    %v4998 = vpack.c.b16 %v4766, %v4762
    %v4999 = vpack.c.b16 %v4767, %v4763
    %v5000 = vpack.c.b16 %v4772, %v4768
    %v5001 = vpack.c.b16 %v4773, %v4769
    %v5002 = vpack.c.b16 %v4774, %v4770
    %v5003 = vpack.c.b16 %v4775, %v4771
    %v5004 = vpack.c.b16 %v4780, %v4776
    %v5005 = vpack.c.b16 %v4781, %v4777
    %v5006 = vpack.c.b16 %v4782, %v4778
    %v5007 = vpack.c.b16 %v4783, %v4779
    %v5008 = vpack.c.b16 %v4788, %v4784
    %v5009 = vpack.c.b16 %v4789, %v4785
    %v5010 = vpack.c.b16 %v4790, %v4786
    %v5011 = vpack.c.b16 %v4791, %v4787
    %v5012 = vpack.c.b16 %v4796, %v4792
    %v5013 = vpack.c.b16 %v4797, %v4793
    %v5014 = vpack.c.b16 %v4798, %v4794
    %v5015 = vpack.c.b16 %v4799, %v4795
    %v5016 = vpack.c.b16 %v4804, %v4800
    %v5017 = vpack.c.b16 %v4805, %v4801
    %v5018 = vpack.c.b16 %v4806, %v4802
    %v5019 = vpack.c.b16 %v4807, %v4803
    %v5020 = vpack.c.b16 %v4812, %v4808
    %v5021 = vpack.c.b16 %v4813, %v4809
    %v5022 = vpack.c.b16 %v4814, %v4810
    %v5023 = vpack.c.b16 %v4815, %v4811
    %v5024 = vpack.c.b16 %v4820, %v4816
    %v5025 = vpack.c.b16 %v4821, %v4817
    %v5026 = vpack.c.b16 %v4822, %v4818
    %v5027 = vpack.c.b16 %v4823, %v4819
    %v5028 = vpack.c.b16 %v4828, %v4824
    %v5029 = vpack.c.b16 %v4829, %v4825
    %v5030 = vpack.c.b16 %v4830, %v4826
    %v5031 = vpack.c.b16 %v4831, %v4827
    %v5032 = vpack.c.b16 %v4836, %v4832
    %v5033 = vpack.c.b16 %v4837, %v4833
    %v5034 = vpack.c.b16 %v4838, %v4834
    %v5035 = vpack.c.b16 %v4839, %v4835
    %v5036 = vpack.c.b16 %v4844, %v4840
    %v5037 = vpack.c.b16 %v4845, %v4841
    %v5038 = vpack.c.b16 %v4846, %v4842
    %v5039 = vpack.c.b16 %v4847, %v4843
    %v5040 = vpack.c.b16 %v4852, %v4848
    %v5041 = vpack.c.b16 %v4853, %v4849
    %v5042 = vpack.c.b16 %v4854, %v4850
    %v5043 = vpack.c.b16 %v4855, %v4851
    %v5044 = vpack.c.b16 %v4860, %v4856
    %v5045 = vpack.c.b16 %v4861, %v4857
    %v5046 = vpack.c.b16 %v4862, %v4858
    %v5047 = vpack.c.b16 %v4863, %v4859
    %v5048 = vpack.c.b16 %v4868, %v4864
    %v5049 = vpack.c.b16 %v4869, %v4865
    %v5050 = vpack.c.b16 %v4870, %v4866
    %v5051 = vpack.c.b16 %v4871, %v4867
    %v5052 = vpack.c.b16 %v4876, %v4872
    %v5053 = vpack.c.b16 %v4877, %v4873
    %v5054 = vpack.c.b16 %v4878, %v4874
    %v5055 = vpack.c.b16 %v4879, %v4875
    %v5056 = vpack.c.b16 %v4884, %v4880
    %v5057 = vpack.c.b16 %v4885, %v4881
    %v5058 = vpack.c.b16 %v4886, %v4882
    %v5059 = vpack.c.b16 %v4887, %v4883
    %v5060 = vpack.c.b16 %v4892, %v4888
    %v5061 = vpack.c.b16 %v4893, %v4889
    %v5062 = vpack.c.b16 %v4894, %v4890
    %v5063 = vpack.c.b16 %v4895, %v4891
    %v5064 = vpack.c.b16 %v4900, %v4896
    %v5065 = vpack.c.b16 %v4901, %v4897
    %v5066 = vpack.c.b16 %v4902, %v4898
    %v5067 = vpack.c.b16 %v4903, %v4899
    %v5068 = vpack.c.b16 %v4908, %v4904
    %v5069 = vpack.c.b16 %v4909, %v4905
    %v5070 = vpack.c.b16 %v4910, %v4906
    %v5071 = vpack.c.b16 %v4911, %v4907
    %5232 = vmatprep.subr.bf16.mxu0 %v4913
    %5233 = vmatpush1.bf16.msra.mxu0 %v4912
    %5234 = vmatprep.subr.bf16.mxu0 %v4917
    %5235 = vmatpush1.bf16.msra.mxu0 %v4916
    %5236 = vmatprep.subr.bf16.mxu0 %v4921
    %5237 = vmatpush1.bf16.msra.mxu0 %v4920
    %5238 = vmatprep.subr.bf16.mxu0 %v4925
    %5239 = vmatpush1.bf16.msra.mxu0 %v4924
    %5240 = vmatprep.subr.bf16.mxu0 %v4929
    %5241 = vmatpush1.bf16.msra.mxu0 %v4928
    %5242 = vmatprep.subr.bf16.mxu0 %v4933
    %5243 = vmatpush1.bf16.msra.mxu0 %v4932
    %5244 = vmatprep.subr.bf16.mxu0 %v4937
    %5245 = vmatpush1.bf16.msra.mxu0 %v4936
    %5246 = vmatprep.subr.bf16.mxu0 %v4941
    %5247 = vmatpush1.bf16.msra.mxu0 %v4940
    %5248 = vmatprep.subr.bf16.mxu0 %v4945
    %5249 = vmatpush1.bf16.msra.mxu0 %v4944
    %5250 = vmatprep.subr.bf16.mxu0 %v4949
    %5251 = vmatpush1.bf16.msra.mxu0 %v4948
    %5252 = vmatprep.subr.bf16.mxu0 %v4953
    %5253 = vmatpush1.bf16.msra.mxu0 %v4952
    %5254 = vmatprep.subr.bf16.mxu0 %v4957
    %5255 = vmatpush1.bf16.msra.mxu0 %v4956
    %5256 = vmatprep.subr.bf16.mxu0 %v4961
    %5257 = vmatpush1.bf16.msra.mxu0 %v4960
    %5258 = vmatprep.subr.bf16.mxu0 %v4965
    %5259 = vmatpush1.bf16.msra.mxu0 %v4964
    %5260 = vmatprep.subr.bf16.mxu0 %v4969
    %5261 = vmatpush1.bf16.msra.mxu0 %v4968
    %5262 = vmatprep.subr.bf16.mxu0 %v4973
    %5263 = vmatpush1.bf16.msra.mxu0 %v4972
    %5264 = vmatprep.mubr.bf16.mxu0 %v4246
    %5265 = vmatmul.mubr.bf16.gmra.mrb[0].mxu0 %v4245
    %v5266 = vpop.f32.mrb[0].mxu0
    %v5267 = vadd.f32 %v4415, %v5266
    %v5268 = vpop.f32.mrb[0].mxu0
    %v5269 = vadd.f32 %v4419, %v5268
    %v5270 = vpop.f32.mrb[0].mxu0
    %v5271 = vpop.f32.mrb[0].mxu0
    %5272 = vdwg.mxu0
    %5273 = vmatprep.subr.bf16.mxu0 %v4977
    %5274 = vmatpush1.bf16.msra.mxu0 %v4976
    %5275 = vmatprep.subr.bf16.mxu0 %v4981
    %5276 = vmatpush1.bf16.msra.mxu0 %v4980
    %5277 = vmatprep.subr.bf16.mxu0 %v4985
    %5278 = vmatpush1.bf16.msra.mxu0 %v4984
    %5279 = vmatprep.subr.bf16.mxu0 %v4989
    %5280 = vmatpush1.bf16.msra.mxu0 %v4988
    %5281 = vmatprep.subr.bf16.mxu0 %v4993
    %5282 = vmatpush1.bf16.msra.mxu0 %v4992
    %5283 = vmatprep.subr.bf16.mxu0 %v4997
    %5284 = vmatpush1.bf16.msra.mxu0 %v4996
    %5285 = vmatprep.subr.bf16.mxu0 %v5001
    %5286 = vmatpush1.bf16.msra.mxu0 %v5000
    %5287 = vmatprep.subr.bf16.mxu0 %v5005
    %5288 = vmatpush1.bf16.msra.mxu0 %v5004
    %5289 = vmatprep.subr.bf16.mxu0 %v5009
    %5290 = vmatpush1.bf16.msra.mxu0 %v5008
    %5291 = vmatprep.subr.bf16.mxu0 %v5013
    %5292 = vmatpush1.bf16.msra.mxu0 %v5012
    %5293 = vmatprep.subr.bf16.mxu0 %v5017
    %5294 = vmatpush1.bf16.msra.mxu0 %v5016
    %5295 = vmatprep.subr.bf16.mxu0 %v5021
    %5296 = vmatpush1.bf16.msra.mxu0 %v5020
    %5297 = vmatprep.subr.bf16.mxu0 %v5025
    %5298 = vmatpush1.bf16.msra.mxu0 %v5024
    %5299 = vmatprep.subr.bf16.mxu0 %v5029
    %5300 = vmatpush1.bf16.msra.mxu0 %v5028
    %5301 = vmatprep.subr.bf16.mxu0 %v5033
    %5302 = vmatpush1.bf16.msra.mxu0 %v5032
    %5303 = vmatprep.subr.bf16.mxu0 %v5037
    %5304 = vmatpush1.bf16.msra.mxu0 %v5036
    %5305 = vmatprep.mubr.bf16.mxu0 %v4248
    %5306 = vmatmul.mubr.bf16.gmra.mrb[0].mxu0 %v4247
    %v5307 = vpop.f32.mrb[0].mxu0
    %v5308 = vadd.f32 %v5267, %v5307
    %v5309 = vpop.f32.mrb[0].mxu0
    %v5310 = vadd.f32 %v5269, %v5309
    %v5311 = vpop.f32.mrb[0].mxu0
    %v5312 = vpop.f32.mrb[0].mxu0
    %5313 = vdwg.mxu0
    %5314 = vmatprep.subr.bf16.mxu0 %v5041
    %5315 = vmatpush1.bf16.msra.mxu0 %v5040
    %5316 = vmatprep.subr.bf16.mxu0 %v5045
    %5317 = vmatpush1.bf16.msra.mxu0 %v5044
    %5318 = vmatprep.subr.bf16.mxu0 %v5049
    %5319 = vmatpush1.bf16.msra.mxu0 %v5048
    %5320 = vmatprep.subr.bf16.mxu0 %v5053
    %5321 = vmatpush1.bf16.msra.mxu0 %v5052
    %5322 = vmatprep.subr.bf16.mxu0 %v5057
    %5323 = vmatpush1.bf16.msra.mxu0 %v5056
    %5324 = vmatprep.subr.bf16.mxu0 %v5061
    %5325 = vmatpush1.bf16.msra.mxu0 %v5060
    %5326 = vmatprep.subr.bf16.mxu0 %v5065
    %5327 = vmatpush1.bf16.msra.mxu0 %v5064
    %5328 = vmatprep.subr.bf16.mxu0 %v5069
    %5329 = vmatpush1.bf16.msra.mxu0 %v5068
    %5330 = vmatprep.subr.bf16.mxu0 0
    %5331 = vmatpush1.bf16.msra.mxu0 0
    %5332 = vmatprep.subr.bf16.mxu0 0
    %5333 = vmatpush1.bf16.msra.mxu0 0
    %5334 = vmatprep.subr.bf16.mxu0 0
    %5335 = vmatpush1.bf16.msra.mxu0 0
    %5336 = vmatprep.subr.bf16.mxu0 0
    %5337 = vmatpush1.bf16.msra.mxu0 0
    %5338 = vmatprep.subr.bf16.mxu0 0
    %5339 = vmatpush1.bf16.msra.mxu0 0
    %5340 = vmatprep.subr.bf16.mxu0 0
    %5341 = vmatpush1.bf16.msra.mxu0 0
    %5342 = vmatprep.subr.bf16.mxu0 0
    %5343 = vmatpush1.bf16.msra.mxu0 0
    %5344 = vmatprep.subr.bf16.mxu0 0
    %5345 = vmatpush1.bf16.msra.mxu0 0
    %5346 = vmatprep.mubr.bf16.mxu0 0
    %5347 = vmatmul.mubr.bf16.gmra.mrb[0].mxu0 %v4249
    %v5348 = vpop.f32.mrb[0].mxu0
    %v5349 = vadd.f32 %v5308, %v5348
    %v5350 = vpop.f32.mrb[0].mxu0
    %v5351 = vadd.f32 %v5310, %v5350
    %v5352 = vpop.f32.mrb[0].mxu0
    %v5353 = vpop.f32.mrb[0].mxu0
    %5354 = vdwg.mxu0
    %5355 = vmatprep.subr.bf16.mxu0 %v4915
    %5356 = vmatpush1.bf16.msra.mxu0 %v4914
    %5357 = vmatprep.subr.bf16.mxu0 %v4919
    %5358 = vmatpush1.bf16.msra.mxu0 %v4918
    %5359 = vmatprep.subr.bf16.mxu0 %v4923
    %5360 = vmatpush1.bf16.msra.mxu0 %v4922
    %5361 = vmatprep.subr.bf16.mxu0 %v4927
    %5362 = vmatpush1.bf16.msra.mxu0 %v4926
    %5363 = vmatprep.subr.bf16.mxu0 %v4931
    %5364 = vmatpush1.bf16.msra.mxu0 %v4930
    %5365 = vmatprep.subr.bf16.mxu0 %v4935
    %5366 = vmatpush1.bf16.msra.mxu0 %v4934
    %5367 = vmatprep.subr.bf16.mxu0 %v4939
    %5368 = vmatpush1.bf16.msra.mxu0 %v4938
    %5369 = vmatprep.subr.bf16.mxu0 %v4943
    %5370 = vmatpush1.bf16.msra.mxu0 %v4942
    %5371 = vmatprep.subr.bf16.mxu0 %v4947
    %5372 = vmatpush1.bf16.msra.mxu0 %v4946
    %5373 = vmatprep.subr.bf16.mxu0 %v4951
    %5374 = vmatpush1.bf16.msra.mxu0 %v4950
    %5375 = vmatprep.subr.bf16.mxu0 %v4955
    %5376 = vmatpush1.bf16.msra.mxu0 %v4954
    %5377 = vmatprep.subr.bf16.mxu0 %v4959
    %5378 = vmatpush1.bf16.msra.mxu0 %v4958
    %5379 = vmatprep.subr.bf16.mxu0 %v4963
    %5380 = vmatpush1.bf16.msra.mxu0 %v4962
    %5381 = vmatprep.subr.bf16.mxu0 %v4967
    %5382 = vmatpush1.bf16.msra.mxu0 %v4966
    %5383 = vmatprep.subr.bf16.mxu0 %v4971
    %5384 = vmatpush1.bf16.msra.mxu0 %v4970
    %5385 = vmatprep.subr.bf16.mxu0 %v4975
    %5386 = vmatpush1.bf16.msra.mxu0 %v4974
    %5387 = vmatprep.mubr.bf16.mxu0 %v4246
    %5388 = vmatmul.mubr.bf16.gmra.mrb[0].mxu0 %v4245
    %v5389 = vpop.f32.mrb[0].mxu0
    %v5390 = vadd.f32 %v4423, %v5389
    %v5391 = vpop.f32.mrb[0].mxu0
    %v5392 = vadd.f32 %v4427, %v5391
    %v5393 = vpop.f32.mrb[0].mxu0
    %v5394 = vpop.f32.mrb[0].mxu0
    %5395 = vdwg.mxu0
    %5396 = vmatprep.subr.bf16.mxu0 %v4979
    %5397 = vmatpush1.bf16.msra.mxu0 %v4978
    %5398 = vmatprep.subr.bf16.mxu0 %v4983
    %5399 = vmatpush1.bf16.msra.mxu0 %v4982
    %5400 = vmatprep.subr.bf16.mxu0 %v4987
    %5401 = vmatpush1.bf16.msra.mxu0 %v4986
    %5402 = vmatprep.subr.bf16.mxu0 %v4991
    %5403 = vmatpush1.bf16.msra.mxu0 %v4990
    %5404 = vmatprep.subr.bf16.mxu0 %v4995
    %5405 = vmatpush1.bf16.msra.mxu0 %v4994
    %5406 = vmatprep.subr.bf16.mxu0 %v4999
    %5407 = vmatpush1.bf16.msra.mxu0 %v4998
    %5408 = vmatprep.subr.bf16.mxu0 %v5003
    %5409 = vmatpush1.bf16.msra.mxu0 %v5002
    %5410 = vmatprep.subr.bf16.mxu0 %v5007
    %5411 = vmatpush1.bf16.msra.mxu0 %v5006
    %5412 = vmatprep.subr.bf16.mxu0 %v5011
    %5413 = vmatpush1.bf16.msra.mxu0 %v5010
    %5414 = vmatprep.subr.bf16.mxu0 %v5015
    %5415 = vmatpush1.bf16.msra.mxu0 %v5014
    %5416 = vmatprep.subr.bf16.mxu0 %v5019
    %5417 = vmatpush1.bf16.msra.mxu0 %v5018
    %5418 = vmatprep.subr.bf16.mxu0 %v5023
    %5419 = vmatpush1.bf16.msra.mxu0 %v5022
    %5420 = vmatprep.subr.bf16.mxu0 %v5027
    %5421 = vmatpush1.bf16.msra.mxu0 %v5026
    %5422 = vmatprep.subr.bf16.mxu0 %v5031
    %5423 = vmatpush1.bf16.msra.mxu0 %v5030
    %5424 = vmatprep.subr.bf16.mxu0 %v5035
    %5425 = vmatpush1.bf16.msra.mxu0 %v5034
    %5426 = vmatprep.subr.bf16.mxu0 %v5039
    %5427 = vmatpush1.bf16.msra.mxu0 %v5038
    %5428 = vmatprep.mubr.bf16.mxu0 %v4248
    %5429 = vmatmul.mubr.bf16.gmra.mrb[0].mxu0 %v4247
    %v5430 = vpop.f32.mrb[0].mxu0
    %v5431 = vadd.f32 %v5390, %v5430
    %v5432 = vpop.f32.mrb[0].mxu0
    %v5433 = vadd.f32 %v5392, %v5432
    %v5434 = vpop.f32.mrb[0].mxu0
    %v5435 = vpop.f32.mrb[0].mxu0
    %5436 = vdwg.mxu0
    %5437 = vmatprep.subr.bf16.mxu0 %v5043
    %5438 = vmatpush1.bf16.msra.mxu0 %v5042
    %5439 = vmatprep.subr.bf16.mxu0 %v5047
    %5440 = vmatpush1.bf16.msra.mxu0 %v5046
    %5441 = vmatprep.subr.bf16.mxu0 %v5051
    %5442 = vmatpush1.bf16.msra.mxu0 %v5050
    %5443 = vmatprep.subr.bf16.mxu0 %v5055
    %5444 = vmatpush1.bf16.msra.mxu0 %v5054
    %5445 = vmatprep.subr.bf16.mxu0 %v5059
    %5446 = vmatpush1.bf16.msra.mxu0 %v5058
    %5447 = vmatprep.subr.bf16.mxu0 %v5063
    %5448 = vmatpush1.bf16.msra.mxu0 %v5062
    %5449 = vmatprep.subr.bf16.mxu0 %v5067
    %5450 = vmatpush1.bf16.msra.mxu0 %v5066
    %5451 = vmatprep.subr.bf16.mxu0 %v5071
    %5452 = vmatpush1.bf16.msra.mxu0 %v5070
    %5453 = vmatprep.subr.bf16.mxu0 0
    %5454 = vmatpush1.bf16.msra.mxu0 0
    %5455 = vmatprep.subr.bf16.mxu0 0
    %5456 = vmatpush1.bf16.msra.mxu0 0
    %5457 = vmatprep.subr.bf16.mxu0 0
    %5458 = vmatpush1.bf16.msra.mxu0 0
    %5459 = vmatprep.subr.bf16.mxu0 0
    %5460 = vmatpush1.bf16.msra.mxu0 0
    %5461 = vmatprep.subr.bf16.mxu0 0
    %5462 = vmatpush1.bf16.msra.mxu0 0
    %5463 = vmatprep.subr.bf16.mxu0 0
    %5464 = vmatpush1.bf16.msra.mxu0 0
    %5465 = vmatprep.subr.bf16.mxu0 0
    %5466 = vmatpush1.bf16.msra.mxu0 0
    %5467 = vmatprep.subr.bf16.mxu0 0
    %5468 = vmatpush1.bf16.msra.mxu0 0
    %5469 = vmatprep.mubr.bf16.mxu0 0
    %5470 = vmatmul.mubr.bf16.gmra.mrb[0].mxu0 %v4249
    %v5471 = vpop.f32.mrb[0].mxu0
    %v5472 = vadd.f32 %v5431, %v5471
    %v5473 = vpop.f32.mrb[0].mxu0
    %v5474 = vadd.f32 %v5433, %v5473
    %v5475 = vpop.f32.mrb[0].mxu0
    %v5476 = vpop.f32.mrb[0].mxu0
    %5477 = vdwg.mxu0
    %v5478 = vmax.f32 %v5349, 0.0
    %v5479 = vmax.f32 %v5351, 0.0
    %v5480 = vmax.f32 %v5472, 0.0
    %v5481 = vmax.f32 %v5474, 0.0
    %v5482 = vpack.c.bf16 %v5478, %v5478
    %v5483 = vpack.c.bf16 %v5479, %v5479
    %v5484 = vpack.c.bf16 %v5480, %v5480
    %v5485 = vpack.c.bf16 %v5481, %v5481
    %v5486 = vld [vmem:[#allocation14] sm:$0xf]
    %v5487 = vld [vmem:[#allocation14 + $0x4] sm:$0xf]
    %v5488 = vld [vmem:[#allocation14 + $0x8] sm:$0xf]
    %v5489 = vld [vmem:[#allocation14 + $0xc] sm:$0xf]
    %v5490 = vld [vmem:[#allocation14 + $0x10] sm:$0xf]
    %v5491 = vld [vmem:[#allocation14 + $0x14] sm:$0xf]
    %v5492 = vld [vmem:[#allocation14 + $0x18] sm:$0xf]
    %v5493 = vld [vmem:[#allocation14 + $0x1c] sm:$0xf]
    %v5494 = vld [vmem:[#allocation14 + $0x20] sm:$0xf]
    %v5495 = vld [vmem:[#allocation14 + $0x24] sm:$0xf]
    %v5496 = vld [vmem:[#allocation14 + $0x28] sm:$0xf]
    %v5497 = vld [vmem:[#allocation14 + $0x2c] sm:$0xf]
    %v5498 = vld [vmem:[#allocation14 + $0x30] sm:$0xf]
    %v5499 = vld [vmem:[#allocation14 + $0x34] sm:$0xf]
    %v5500 = vld [vmem:[#allocation14 + $0x38] sm:$0xf]
    %v5501 = vld [vmem:[#allocation14 + $0x3c] sm:$0xf]
    %v5502 = vld [vmem:[#allocation14 + $0x40] sm:$0xf]
    %v5503 = vld [vmem:[#allocation14 + $0x44] sm:$0xf]
    %v5504 = vld [vmem:[#allocation14 + $0x48] sm:$0xf]
    %v5505 = vld [vmem:[#allocation14 + $0x4c] sm:$0xf]
    %v5506 = vld [vmem:[#allocation14 + $0x50] sm:$0xf]
    %v5507 = vld [vmem:[#allocation14 + $0x54] sm:$0xf]
    %v5508 = vld [vmem:[#allocation14 + $0x58] sm:$0xf]
    %v5509 = vld [vmem:[#allocation14 + $0x5c] sm:$0xf]
    %v5510 = vld [vmem:[#allocation14 + $0x60] sm:$0xf]
    %v5511 = vld [vmem:[#allocation14 + $0x64] sm:$0xf]
    %v5512 = vld [vmem:[#allocation14 + $0x68] sm:$0xf]
    %v5513 = vld [vmem:[#allocation14 + $0x6c] sm:$0xf]
    %v5514 = vld [vmem:[#allocation14 + $0x70] sm:$0xf]
    %v5515 = vld [vmem:[#allocation14 + $0x74] sm:$0xf]
    %v5516 = vld [vmem:[#allocation14 + $0x78] sm:$0xf]
    %v5517 = vld [vmem:[#allocation14 + $0x7c] sm:$0xf]
    %v5518 = vld [vmem:[#allocation14 + $0x80] sm:$0xf]
    %v5519 = vld [vmem:[#allocation14 + $0x84] sm:$0xf]
    %v5520 = vld [vmem:[#allocation14 + $0x88] sm:$0xf]
    %v5521 = vld [vmem:[#allocation14 + $0x8c] sm:$0xf]
    %v5522 = vld [vmem:[#allocation14 + $0x90] sm:$0xf]
    %v5523 = vld [vmem:[#allocation14 + $0x94] sm:$0xf]
    %v5524 = vld [vmem:[#allocation14 + $0x98] sm:$0xf]
    %v5525 = vld [vmem:[#allocation14 + $0x9c] sm:$0xf]
    %v5526 = vld [vmem:[#allocation14 + $0xa0] sm:$0xf]
    %v5527 = vld [vmem:[#allocation14 + $0xa4] sm:$0xf]
    %v5528 = vld [vmem:[#allocation14 + $0xa8] sm:$0xf]
    %v5529 = vld [vmem:[#allocation14 + $0xac] sm:$0xf]
    %v5530 = vld [vmem:[#allocation14 + $0xb0] sm:$0xf]
    %v5531 = vld [vmem:[#allocation14 + $0xb4] sm:$0xf]
    %v5532 = vld [vmem:[#allocation14 + $0xb8] sm:$0xf]
    %v5533 = vld [vmem:[#allocation14 + $0xbc] sm:$0xf]
    %v5534 = vld [vmem:[#allocation14 + $0xc0] sm:$0xf]
    %v5535 = vld [vmem:[#allocation14 + $0xc4] sm:$0xf]
    %v5536 = vld [vmem:[#allocation14 + $0xc8] sm:$0xf]
    %v5537 = vld [vmem:[#allocation14 + $0xcc] sm:$0xf]
    %v5538 = vld [vmem:[#allocation14 + $0xd0] sm:$0xf]
    %v5539 = vld [vmem:[#allocation14 + $0xd4] sm:$0xf]
    %v5540 = vld [vmem:[#allocation14 + $0xd8] sm:$0xf]
    %v5541 = vld [vmem:[#allocation14 + $0xdc] sm:$0xf]
    %v5542 = vld [vmem:[#allocation14 + $0xe0] sm:$0xf]
    %v5543 = vld [vmem:[#allocation14 + $0xe4] sm:$0xf]
    %v5544 = vld [vmem:[#allocation14 + $0xe8] sm:$0xf]
    %v5545 = vld [vmem:[#allocation14 + $0xec] sm:$0xf]
    %v5546 = vld [vmem:[#allocation14 + $0xf0] sm:$0xf]
    %v5547 = vld [vmem:[#allocation14 + $0xf4] sm:$0xf]
    %v5548 = vld [vmem:[#allocation14 + $0xf8] sm:$0xf]
    %v5549 = vld [vmem:[#allocation14 + $0xfc] sm:$0xf]
    %v5550 = vld [vmem:[#allocation16] sm:$0x1]
    %v5552 = vlaneseq
    %v5553 = vshrl.u32 %v5552, 7
    %v5554 = vsub.s32 0, %v5553
    %v5555 = vrot.slane %v5550, %v5554
    %v5621 = vunpack.c.l.b16 %v5486
    %v5622 = vunpack.c.l.b16 %v5487
    %v5623 = vunpack.c.l.b16 %v5488
    %v5624 = vunpack.c.l.b16 %v5489
    %v5625 = vunpack.c.l.b16 %v5490
    %v5626 = vunpack.c.l.b16 %v5491
    %v5627 = vunpack.c.l.b16 %v5492
    %v5628 = vunpack.c.l.b16 %v5493
    %v5629 = vunpack.c.l.b16 %v5494
    %v5630 = vunpack.c.l.b16 %v5495
    %v5631 = vunpack.c.l.b16 %v5496
    %v5632 = vunpack.c.l.b16 %v5497
    %v5633 = vunpack.c.l.b16 %v5498
    %v5634 = vunpack.c.l.b16 %v5499
    %v5635 = vunpack.c.l.b16 %v5500
    %v5636 = vunpack.c.l.b16 %v5501
    %v5637 = vunpack.c.l.b16 %v5502
    %v5638 = vunpack.c.l.b16 %v5503
    %v5639 = vunpack.c.l.b16 %v5504
    %v5640 = vunpack.c.l.b16 %v5505
    %v5641 = vunpack.c.l.b16 %v5506
    %v5642 = vunpack.c.l.b16 %v5507
    %v5643 = vunpack.c.l.b16 %v5508
    %v5644 = vunpack.c.l.b16 %v5509
    %v5645 = vunpack.c.l.b16 %v5510
    %v5646 = vunpack.c.l.b16 %v5511
    %v5647 = vunpack.c.l.b16 %v5512
    %v5648 = vunpack.c.l.b16 %v5513
    %v5649 = vunpack.c.l.b16 %v5514
    %v5650 = vunpack.c.l.b16 %v5515
    %v5651 = vunpack.c.l.b16 %v5516
    %v5652 = vunpack.c.l.b16 %v5517
    %v5653 = vunpack.c.l.b16 %v5518
    %v5654 = vunpack.c.l.b16 %v5519
    %v5655 = vunpack.c.l.b16 %v5520
    %v5656 = vunpack.c.l.b16 %v5521
    %v5657 = vunpack.c.l.b16 %v5522
    %v5658 = vunpack.c.l.b16 %v5523
    %v5659 = vunpack.c.l.b16 %v5524
    %v5660 = vunpack.c.l.b16 %v5525
    %v5661 = vunpack.c.l.b16 %v5526
    %v5662 = vunpack.c.l.b16 %v5527
    %v5663 = vunpack.c.l.b16 %v5528
    %v5664 = vunpack.c.l.b16 %v5529
    %v5665 = vunpack.c.l.b16 %v5530
    %v5666 = vunpack.c.l.b16 %v5531
    %v5667 = vunpack.c.l.b16 %v5532
    %v5668 = vunpack.c.l.b16 %v5533
    %v5669 = vunpack.c.l.b16 %v5534
    %v5670 = vunpack.c.l.b16 %v5535
    %v5671 = vunpack.c.l.b16 %v5536
    %v5672 = vunpack.c.l.b16 %v5537
    %v5673 = vunpack.c.l.b16 %v5538
    %v5674 = vunpack.c.l.b16 %v5539
    %v5675 = vunpack.c.l.b16 %v5540
    %v5676 = vunpack.c.l.b16 %v5541
    %v5677 = vunpack.c.l.b16 %v5542
    %v5678 = vunpack.c.l.b16 %v5543
    %v5679 = vunpack.c.l.b16 %v5544
    %v5680 = vunpack.c.l.b16 %v5545
    %v5681 = vunpack.c.l.b16 %v5546
    %v5682 = vunpack.c.l.b16 %v5547
    %v5683 = vunpack.c.l.b16 %v5548
    %v5684 = vunpack.c.l.b16 %v5549
    %v5685 = vpack.c.b16 %v5622, %v5621
    %v5686 = vpack.c.b16 %v5624, %v5623
    %v5687 = vpack.c.b16 %v5626, %v5625
    %v5688 = vpack.c.b16 %v5628, %v5627
    %v5689 = vpack.c.b16 %v5630, %v5629
    %v5690 = vpack.c.b16 %v5632, %v5631
    %v5691 = vpack.c.b16 %v5634, %v5633
    %v5692 = vpack.c.b16 %v5636, %v5635
    %v5693 = vpack.c.b16 %v5638, %v5637
    %v5694 = vpack.c.b16 %v5640, %v5639
    %v5695 = vpack.c.b16 %v5642, %v5641
    %v5696 = vpack.c.b16 %v5644, %v5643
    %v5697 = vpack.c.b16 %v5646, %v5645
    %v5698 = vpack.c.b16 %v5648, %v5647
    %v5699 = vpack.c.b16 %v5650, %v5649
    %v5700 = vpack.c.b16 %v5652, %v5651
    %v5701 = vpack.c.b16 %v5654, %v5653
    %v5702 = vpack.c.b16 %v5656, %v5655
    %v5703 = vpack.c.b16 %v5658, %v5657
    %v5704 = vpack.c.b16 %v5660, %v5659
    %v5705 = vpack.c.b16 %v5662, %v5661
    %v5706 = vpack.c.b16 %v5664, %v5663
    %v5707 = vpack.c.b16 %v5666, %v5665
    %v5708 = vpack.c.b16 %v5668, %v5667
    %v5709 = vpack.c.b16 %v5670, %v5669
    %v5710 = vpack.c.b16 %v5672, %v5671
    %v5711 = vpack.c.b16 %v5674, %v5673
    %v5712 = vpack.c.b16 %v5676, %v5675
    %v5713 = vpack.c.b16 %v5678, %v5677
    %v5714 = vpack.c.b16 %v5680, %v5679
    %v5715 = vpack.c.b16 %v5682, %v5681
    %v5716 = vpack.c.b16 %v5684, %v5683
    %5749 = vmatprep.subr.bf16.mxu0 0
    %5750 = vmatpush1.bf16.msra.mxu0 %v5685
    %5751 = vmatprep.subr.bf16.mxu0 0
    %5752 = vmatpush1.bf16.msra.mxu0 %v5686
    %5753 = vmatprep.subr.bf16.mxu0 0
    %5754 = vmatpush1.bf16.msra.mxu0 %v5687
    %5755 = vmatprep.subr.bf16.mxu0 0
    %5756 = vmatpush1.bf16.msra.mxu0 %v5688
    %5757 = vmatprep.subr.bf16.mxu0 0
    %5758 = vmatpush1.bf16.msra.mxu0 %v5689
    %5759 = vmatprep.subr.bf16.mxu0 0
    %5760 = vmatpush1.bf16.msra.mxu0 %v5690
    %5761 = vmatprep.subr.bf16.mxu0 0
    %5762 = vmatpush1.bf16.msra.mxu0 %v5691
    %5763 = vmatprep.subr.bf16.mxu0 0
    %5764 = vmatpush1.bf16.msra.mxu0 %v5692
    %5765 = vmatprep.subr.bf16.mxu0 0
    %5766 = vmatpush1.bf16.msra.mxu0 %v5693
    %5767 = vmatprep.subr.bf16.mxu0 0
    %5768 = vmatpush1.bf16.msra.mxu0 %v5694
    %5769 = vmatprep.subr.bf16.mxu0 0
    %5770 = vmatpush1.bf16.msra.mxu0 %v5695
    %5771 = vmatprep.subr.bf16.mxu0 0
    %5772 = vmatpush1.bf16.msra.mxu0 %v5696
    %5773 = vmatprep.subr.bf16.mxu0 0
    %5774 = vmatpush1.bf16.msra.mxu0 %v5697
    %5775 = vmatprep.subr.bf16.mxu0 0
    %5776 = vmatpush1.bf16.msra.mxu0 %v5698
    %5777 = vmatprep.subr.bf16.mxu0 0
    %5778 = vmatpush1.bf16.msra.mxu0 %v5699
    %5779 = vmatprep.subr.bf16.mxu0 0
    %5780 = vmatpush1.bf16.msra.mxu0 %v5700
    %5781 = vmatprep.mubr.bf16.mxu0 %v5483
    %5782 = vmatmul.mubr.bf16.gmra.mrb[0].mxu0 %v5482
    %v5783 = vpop.f32.mrb[0].mxu0
    %v5784 = vadd.f32 %v5555, %v5783
    %v5785 = vpop.f32.mrb[0].mxu0
    %v5786 = vpop.f32.mrb[0].mxu0
    %v5787 = vpop.f32.mrb[0].mxu0
    %5788 = vdwg.mxu0
    %5789 = vmatprep.subr.bf16.mxu0 0
    %5790 = vmatpush1.bf16.msra.mxu0 %v5701
    %5791 = vmatprep.subr.bf16.mxu0 0
    %5792 = vmatpush1.bf16.msra.mxu0 %v5702
    %5793 = vmatprep.subr.bf16.mxu0 0
    %5794 = vmatpush1.bf16.msra.mxu0 %v5703
    %5795 = vmatprep.subr.bf16.mxu0 0
    %5796 = vmatpush1.bf16.msra.mxu0 %v5704
    %5797 = vmatprep.subr.bf16.mxu0 0
    %5798 = vmatpush1.bf16.msra.mxu0 %v5705
    %5799 = vmatprep.subr.bf16.mxu0 0
    %5800 = vmatpush1.bf16.msra.mxu0 %v5706
    %5801 = vmatprep.subr.bf16.mxu0 0
    %5802 = vmatpush1.bf16.msra.mxu0 %v5707
    %5803 = vmatprep.subr.bf16.mxu0 0
    %5804 = vmatpush1.bf16.msra.mxu0 %v5708
    %5805 = vmatprep.subr.bf16.mxu0 0
    %5806 = vmatpush1.bf16.msra.mxu0 %v5709
    %5807 = vmatprep.subr.bf16.mxu0 0
    %5808 = vmatpush1.bf16.msra.mxu0 %v5710
    %5809 = vmatprep.subr.bf16.mxu0 0
    %5810 = vmatpush1.bf16.msra.mxu0 %v5711
    %5811 = vmatprep.subr.bf16.mxu0 0
    %5812 = vmatpush1.bf16.msra.mxu0 %v5712
    %5813 = vmatprep.subr.bf16.mxu0 0
    %5814 = vmatpush1.bf16.msra.mxu0 %v5713
    %5815 = vmatprep.subr.bf16.mxu0 0
    %5816 = vmatpush1.bf16.msra.mxu0 %v5714
    %5817 = vmatprep.subr.bf16.mxu0 0
    %5818 = vmatpush1.bf16.msra.mxu0 %v5715
    %5819 = vmatprep.subr.bf16.mxu0 0
    %5820 = vmatpush1.bf16.msra.mxu0 %v5716
    %5821 = vmatprep.mubr.bf16.mxu0 %v5485
    %5822 = vmatmul.mubr.bf16.gmra.mrb[0].mxu0 %v5484
    %v5823 = vpop.f32.mrb[0].mxu0
    %v5824 = vadd.f32 %v5784, %v5823
    %v5825 = vpop.f32.mrb[0].mxu0
    %v5826 = vpop.f32.mrb[0].mxu0
    %v5827 = vpop.f32.mrb[0].mxu0
    %5828 = vdwg.mxu0
    %v5829 = vxor.u32 %v5824, 2147483648
    %v5830 = vmul.f32 %v5829, 1.442695
    %v5831 = vpow.pop %v5830
    %v5832 = vadd.f32 %v5831, 1.0
    %v5833 = vrcp.pop %v5832
    %v5834 = vmul.f32 1.0, %v5833
    %5835 = vst [vmem:[#allocation17] sm:$0xff] %v5834
    // Predicated region
    $region74: #{tpu_custom_call.1} parent=1 // pred_check
      _
    $region75: #{tpu_custom_call.1} parent=1 // pred_check_branch
      %5837 = sbr.rel (0) target = $region77
    $region76: #{tpu_custom_call.1} parent=1 // pred_region
      %s5839 = ssub.s32 128, 128
      %5840 = vsyncadd [#allocation4], %s5839
      %s5842 = sshll.u32 [#allocation17], 4
      %s5843 = int_to_ptr.vmem [resolvable:$true] %s5842
      %5845 = dma.vmem_to_hbm [thread:$0]  %s5843, 128, %s9, [#allocation4]
    $region77: #{tpu_custom_call.1} parent=1 // pred_fallthru
      _
    // Predicated region
    $region78: #{tpu_custom_call.1} parent=1 // pred_check
      _
    $region79: #{tpu_custom_call.1} parent=1 // pred_check_branch
      %5847 = sbr.rel (0) target = $region81
    $region80: #{tpu_custom_call.1} parent=1 // pred_region
      %5848 = dma.done [#allocation4], 128
    $region81: #{tpu_custom_call.1} parent=1 // pred_fallthru
      _
    %5849 = vsyncpa [#allocation3], 1
    %5850 = vsyncpa [#allocation6], 1
    %5851 = vsyncpa [#allocation9], 1
    %5852 = vsyncpa [#allocation12], 1
    %5853 = vsyncpa [#allocation15], 1
    %5854 = vsyncpa [#allocation4], 1

</llo_original>
